<compile_context>
chip_gen: v7x
topology: tpu7x:2x2x1
jax: 0.10.0
libtpu: 0.0.40
codegen_flags: <defaults>
</compile_context>

<pallas_src>
import math
import functools

import jax
import jax.numpy as jnp
from jax.experimental import pallas as pl
from jax.experimental.pallas import tpu as pltpu


def _gelu_tanh(x):
    # GELU(approximate='tanh'): 0.5*x*(1+tanh(sqrt(2/pi)*(x+0.044715*x^3)))
    # Python-float constants are weakly typed, so this stays in x.dtype
    # (bf16 on v6e/v7x, f32 on v5e).
    c = math.sqrt(2.0 / math.pi)
    return 0.5 * x * (1.0 + jnp.tanh(c * x * (1.0 + 0.044715 * x * x)))


# ----------------------------------------------------------------------------
# Kernels
# ----------------------------------------------------------------------------

def _mlp_kernel_resident(x_ref, w1_ref, b1_ref, w2_ref, b2_ref, o_ref, *,
                         gelu_dtype):
    """Whole hidden dim in one shot; weights are VMEM-resident."""
    h = jnp.dot(x_ref[...], w1_ref[...], preferred_element_type=jnp.float32)
    h = h.astype(gelu_dtype) + b1_ref[...]
    h = _gelu_tanh(h)
    y = jnp.dot(h.astype(w2_ref.dtype), w2_ref[...],
                preferred_element_type=jnp.float32)
    o_ref[...] = (y + b2_ref[...]).astype(o_ref.dtype)


def _mlp_kernel_chunked_accum_out(x_ref, w1_ref, b1_ref, w2_ref, b2_ref, o_ref,
                                  *, gelu_dtype):
    """H-chunked reduction; f32 output tile is the accumulator (no scratch)."""
    k = pl.program_id(1)

    @pl.when(k == 0)
    def _():
        # Fold b2 into the init instead of a finalize add.
        o_ref[...] = jnp.broadcast_to(b2_ref[...], o_ref.shape)

    h = jnp.dot(x_ref[...], w1_ref[...], preferred_element_type=jnp.float32)
    h = h.astype(gelu_dtype) + b1_ref[...]
    h = _gelu_tanh(h)
    o_ref[...] += jnp.dot(h.astype(w2_ref.dtype), w2_ref[...],
                          preferred_element_type=jnp.float32)


def _mlp_kernel_chunked_scratch(x_ref, w1_ref, b1_ref, w2_ref, b2_ref, o_ref,
                                acc_ref, *, gelu_dtype):
    """H-chunked reduction with f32 scratch (used when output dtype != f32)."""
    k = pl.program_id(1)

    @pl.when(k == 0)
    def _():
        acc_ref[...] = jnp.broadcast_to(b2_ref[...], acc_ref.shape)

    h = jnp.dot(x_ref[...], w1_ref[...], preferred_element_type=jnp.float32)
    h = h.astype(gelu_dtype) + b1_ref[...]
    h = _gelu_tanh(h)
    acc_ref[...] += jnp.dot(h.astype(w2_ref.dtype), w2_ref[...],
                            preferred_element_type=jnp.float32)

    @pl.when(k == pl.num_programs(1) - 1)
    def _():
        o_ref[...] = acc_ref[...].astype(o_ref.dtype)


# ----------------------------------------------------------------------------
# Host-side helpers
# ----------------------------------------------------------------------------

def _tpu_generation():
    try:
        d = jax.devices()[0]
        if d.platform != "tpu":
            return 0
        kind = d.device_kind.lower()
        for g in (7, 6, 5, 4):
            if f"v{g}" in kind:
                return g
    except Exception:
        pass
    return 0


def _supports_single_buffer():
    if not hasattr(pl, "Buffered"):
        return False
    try:
        pl.BlockSpec((8, 128), lambda i: (0, 0), pipeline_mode=pl.Buffered(1))
        return True
    except Exception:
        return False


def _pick_tile_m(M, target):
    """Largest divisor of M that is a multiple of 8 and <= target (else M)."""
    t = (min(target, M) // 8) * 8
    for cand in range(t, 0, -8):
        if M % cand == 0:
            return cand
    return M  # M not a multiple of 8: use the full extent (legal block shape).


def prepare_mlp_params(w1, b1, w2, b2):
    """One-time parameter prep (hoists the per-call casts out of the step).

    Weights are stored transposed vs. torch.nn.Linear so the kernel runs plain
    row @ matrix products on the MXU.  b1 is stored in the GELU compute dtype
    (bf16 on v6e/v7x, f32 on v5e/older); b2 stays f32 (added in f32).
    """
    gen = _tpu_generation()
    gelu_dtype = jnp.bfloat16 if gen >= 6 else jnp.float32
    return dict(
        w1=w1.astype(jnp.bfloat16),
        b1=b1.reshape(1, -1).astype(gelu_dtype),
        w2=w2.astype(jnp.bfloat16),
        b2=b2.reshape(1, -1).astype(jnp.float32),
    )


def mlp_pallas(x, params, *, tile_m=None, tile_h=None, force_chunked=False):
    """x: (B, T, C).  params from prepare_mlp_params (w1:(C,4C), w2:(4C,C))."""
    B, T, C = x.shape
    w1, b1, w2, b2 = params["w1"], params["b1"], params["w2"], params["b2"]
    H = w1.shape[1]
    M = B * T
    out_dtype = x.dtype
    out_sz = jnp.dtype(out_dtype).itemsize
    gelu_dtype = b1.dtype
    gelu_sz = jnp.dtype(gelu_dtype).itemsize

    assert C % 128 == 0 and H % 128 == 0, "feature dims must be multiples of 128"
    assert w1.shape == (C, H) and w2.shape == (H, C)

    gen = _tpu_generation()
    # Generation-aware VMEM budget: v7x has only 64 MiB per TensorCore, so do
    # not request all of it; v5e/v6e have 128 MiB.
    if gen >= 7:
        vmem_budget = 52 << 20
    elif gen in (5, 6):
        vmem_budget = 100 << 20
    else:
        vmem_budget = 48 << 20

    x2d = x.reshape(M, C)
    if x2d.dtype != jnp.bfloat16:
        # TODO(synk): have the producer emit bf16 activations to avoid this
        # extra HBM round trip per call.
        x2d = x2d.astype(jnp.bfloat16)

    def resident_need(tm, wbuf):
        return (2 * tm * C * 2                        # x tile (bf16, dbl-buf)
                + wbuf * (C * H * 2 + H * C * 2)      # W1 + W2 (resident)
                + 2 * (H * gelu_sz + C * 4)           # b1, b2
                + 2 * tm * C * out_sz                 # out tile
                + tm * H * (4 + gelu_sz + 2))         # h: f32 + gelu + bf16 copy

    def chunked_need(tm, th):
        return (2 * tm * C * 2
                + 2 * (C * th * 2 + th * C * 2)       # W1/W2 chunks (dbl-buf)
                + 2 * (th * gelu_sz + C * 4)
                + 2 * tm * C * out_sz
                + (0 if out_dtype == jnp.float32 else tm * C * 4)
                + tm * th * (4 + gelu_sz + 2))

    def run(single_buffer):
        wbuf = 1 if single_buffer else 2

        tm_res = _pick_tile_m(M, tile_m if tile_m is not None else 256)
        use_resident = ((not force_chunked)
                        and resident_need(tm_res, wbuf) <= int(0.9 * vmem_budget))

        if use_resident:
            tm = tm_res
            need = resident_need(tm, wbuf)
            grid = (M // tm,)

            def wspec(shape):
                if single_buffer:
                    return pl.BlockSpec(shape, lambda i: (0, 0),
                                        pipeline_mode=pl.Buffered(1))
                return pl.BlockSpec(shape, lambda i: (0, 0))

            in_specs = [
                pl.BlockSpec((tm, C), lambda i: (i, 0)),   # x row tile
                wspec((C, H)),                             # W1 (resident, 1 copy)
                pl.BlockSpec((1, H), lambda i: (0, 0)),    # b1
                wspec((H, C)),                             # W2 (resident, 1 copy)
                pl.BlockSpec((1, C), lambda i: (0, 0)),    # b2
            ]
            out_specs = pl.BlockSpec((tm, C), lambda i: (i, 0))
            kernel = functools.partial(_mlp_kernel_resident,
                                       gelu_dtype=gelu_dtype)
            scratch_shapes = []
            dim_sem = ("parallel",)
            weight_passes = 1
        else:
            # Larger row tiles when streaming weights (arithmetic intensity
            # ~ tile_m flops/byte; v6e needs the most).
            tm_target = tile_m if tile_m is not None else (1024 if gen == 6 else 512)
            tm = _pick_tile_m(M, tm_target)
            th = tile_h
            if th is None:
                for _ in range(8):
                    for cand in (2048, 1024, 512, 256, 128):
                        if H % cand == 0 and chunked_need(tm, cand) <= int(0.9 * vmem_budget):
                            th = cand
                            break
                    if th is not None:
                        break
                    new_tm = _pick_tile_m(M, max(tm // 2, 8))
                    if new_tm == tm:
                        break
                    tm = new_tm
            if th is None:
                th = 128
            assert H % th == 0 and th % 128 == 0 and M % tm == 0
            need = chunked_need(tm, th)
            grid = (M // tm, H // th)

            in_specs = [
                pl.BlockSpec((tm, C), lambda i, k: (i, 0)),   # x row tile
                pl.BlockSpec((C, th), lambda i, k: (0, k)),   # W1 chunk
                pl.BlockSpec((1, th), lambda i, k: (0, k)),   # b1 chunk
                pl.BlockSpec((th, C), lambda i, k: (k, 0)),   # W2 chunk
                pl.BlockSpec((1, C), lambda i, k: (0, 0)),    # b2
            ]
            out_specs = pl.BlockSpec((tm, C), lambda i, k: (i, 0))
            if out_dtype == jnp.float32:
                # Output tile is VMEM-resident across k and already f32:
                # accumulate into it directly (no scratch, no epilogue copy).
                kernel = functools.partial(_mlp_kernel_chunked_accum_out,
                                           gelu_dtype=gelu_dtype)
                scratch_shapes = []
            else:
                kernel = functools.partial(_mlp_kernel_chunked_scratch,
                                           gelu_dtype=gelu_dtype)
                scratch_shapes = [pltpu.VMEM((tm, C), jnp.float32)]
            dim_sem = ("parallel", "arbitrary")
            weight_passes = M // tm

        vmem_limit = int(min(vmem_budget,
                             max(16 << 20, int(need * 1.25) + (2 << 20))))

        cost = pl.CostEstimate(
            flops=4 * M * C * H,                 # two matmuls
            transcendentals=M * H,               # tanh per hidden element
            bytes_accessed=int(
                x2d.size * 2
                + weight_passes * (w1.size * w1.dtype.itemsize
                                   + w2.size * w2.dtype.itemsize
                                   + b1.size * b1.dtype.itemsize)
                + b2.size * 4
                + M * C * out_sz),
        )

        return pl.pallas_call(
            kernel,
            out_shape=jax.ShapeDtypeStruct((M, C), out_dtype),
            grid_spec=pltpu.PrefetchScalarGridSpec(
                num_scalar_prefetch=0,
                grid=grid,
                in_specs=in_specs,
                out_specs=out_specs,
                scratch_shapes=scratch_shapes,
            ),
            compiler_params=pltpu.CompilerParams(
                dimension_semantics=dim_sem,
                vmem_limit_bytes=vmem_limit,
            ),
            cost_estimate=cost,
        )(x2d, w1, b1, w2, b2)

    want_single = _supports_single_buffer()
    try:
        out = run(single_buffer=want_single)
    except Exception:
        if not want_single:
            raise
        # Fall back to default (double-buffered) weight specs if Buffered(1)
        # is rejected by this Pallas/Mosaic version.
        out = run(single_buffer=False)

    return out.reshape(B, T, C)


def mlp_reference(x, w1, b1, w2, b2):
    h = jnp.einsum("btc,ch->bth", x, w1) + b1
    h = _gelu_tanh(h)
    return jnp.einsum("bth,hc->btc", h, w2) + b2


if __name__ == "__main__":
    # Small config consistent with the module: n_embd=128, hidden=4*128=512.
    # M = B*T = 512 rows; resident plan uses grid (2,) of 256-row tiles.
    B, T, C = 2, 256, 128
    H = 4 * C

    key = jax.random.PRNGKey(0)
    kx, k1, k2, k3, k4 = jax.random.split(key, 5)

    x = jax.random.normal(kx, (B, T, C), dtype=jnp.float32)

    # Deterministic init mimicking nn.Linear (uniform +-1/sqrt(in_features)).
    bound1 = 1.0 / math.sqrt(C)
    w1 = jax.random.uniform(k1, (C, H), jnp.float32, -bound1, bound1)
    b1 = jax.random.uniform(k2, (H,), jnp.float32, -bound1, bound1)
    bound2 = 1.0 / math.sqrt(H)
    w2 = jax.random.uniform(k3, (H, C), jnp.float32, -bound2, bound2)
    b2 = jax.random.uniform(k4, (C,), jnp.float32, -bound2, bound2)

    # One-time parameter preparation (bf16 weight casts hoisted out of the call).
    params = prepare_mlp_params(w1, b1, w2, b2)

    y_ref = mlp_reference(x, w1, b1, w2, b2)

    # Default path: weights resident in VMEM, single "parallel" grid axis.
    y = mlp_pallas(x, params)
    jax.block_until_ready(y)
    assert y.shape == (B, T, C)
    # bf16 MXU operands (and bf16 GELU on v6e/v7x) with f32 accumulation.
    assert jnp.allclose(y, y_ref, atol=3e-2, rtol=3e-2), "resident path mismatch"

    # Also exercise the H-chunked fallback (used when weights exceed VMEM):
    # 2x2 grid so the accumulate-into-output path sees multiple H chunks.
    y_c = mlp_pallas(x, params, tile_m=256, tile_h=256, force_chunked=True)
    jax.block_until_ready(y_c)
    assert jnp.allclose(y_c, y_ref, atol=3e-2, rtol=3e-2), "chunked path mismatch"

    print("KERNEL_OK")
</pallas_src>

<mosaic_0001>
module attributes {stable_mosaic.version = 11 : i64} {
  func.func @_mlp_kernel_resident(%arg0: i32, %arg1: memref<256x128xbf16, #tpu.memory_space<vmem>>, %arg2: memref<128x512xbf16, #tpu.memory_space<vmem>>, %arg3: memref<1x512xf32, #tpu.memory_space<vmem>>, %arg4: memref<512x128xbf16, #tpu.memory_space<vmem>>, %arg5: memref<1x128xf32, #tpu.memory_space<vmem>>, %arg6: memref<256x128xf32, #tpu.memory_space<vmem>>) attributes {dimension_semantics = [#tpu.dimension_semantics<parallel>], iteration_bounds = array<i64: 2>, scalar_prefetch = 0 : i64, scratch_operands = 0 : i64, tpu.core_type = #tpu.core_type<tc>, window_params = [{transform_indices = @transform_0, window_bounds = array<i64: 256, 128>}, {pipeline_mode = #tpu.pipeline_mode<synchronous>, transform_indices = @transform_1, window_bounds = array<i64: 128, 512>}, {pipeline_mode = #tpu.pipeline_mode<synchronous>, transform_indices = @transform_2, window_bounds = array<i64: 1, 512>}, {pipeline_mode = #tpu.pipeline_mode<synchronous>, transform_indices = @transform_3, window_bounds = array<i64: 512, 128>}, {pipeline_mode = #tpu.pipeline_mode<synchronous>, transform_indices = @transform_4, window_bounds = array<i64: 1, 128>}, {transform_indices = @transform_5, window_bounds = array<i64: 256, 128>}]} {
    %c0 = arith.constant 0 : index
    %c0_0 = arith.constant 0 : index
    %0 = vector.load %arg1[%c0, %c0_0] : memref<256x128xbf16, #tpu.memory_space<vmem>>, vector<256x128xbf16>
    %c0_1 = arith.constant 0 : index
    %c0_2 = arith.constant 0 : index
    %1 = vector.load %arg2[%c0_1, %c0_2] : memref<128x512xbf16, #tpu.memory_space<vmem>>, vector<128x512xbf16>
    %cst = arith.constant dense<0.000000e+00> : vector<256x512xf32>
    %2 = tpu.matmul %0, %1, %cst {dimension_numbers = #tpu.dot_dimension_numbers<[1], [0], [0], [1], [0, 0, 1, 1], [], []>} : vector<256x128xbf16>, vector<128x512xbf16>, vector<256x512xf32> -> vector<256x512xf32>
    %c0_3 = arith.constant 0 : index
    %c0_4 = arith.constant 0 : index
    %3 = vector.load %arg3[%c0_3, %c0_4] : memref<1x512xf32, #tpu.memory_space<vmem>>, vector<1x512xf32>
    %4 = vector.broadcast %3 : vector<1x512xf32> to vector<256x512xf32>
    %5 = arith.addf %2, %4 : vector<256x512xf32>
    %cst_5 = arith.constant 5.000000e-01 : f32
    %6 = vector.broadcast %cst_5 : f32 to vector<256x512xf32>
    %7 = arith.mulf %6, %5 : vector<256x512xf32>
    %cst_6 = arith.constant 0.797884583 : f32
    %8 = vector.broadcast %cst_6 : f32 to vector<256x512xf32>
    %9 = arith.mulf %8, %5 : vector<256x512xf32>
    %cst_7 = arith.constant 4.471500e-02 : f32
    %10 = vector.broadcast %cst_7 : f32 to vector<256x512xf32>
    %11 = arith.mulf %10, %5 : vector<256x512xf32>
    %12 = arith.mulf %11, %5 : vector<256x512xf32>
    %cst_8 = arith.constant 1.000000e+00 : f32
    %13 = vector.broadcast %cst_8 : f32 to vector<256x512xf32>
    %14 = arith.addf %13, %12 : vector<256x512xf32>
    %15 = arith.mulf %9, %14 : vector<256x512xf32>
    %16 = math.tanh %15 : vector<256x512xf32>
    %cst_9 = arith.constant 1.000000e+00 : f32
    %17 = vector.broadcast %cst_9 : f32 to vector<256x512xf32>
    %18 = arith.addf %17, %16 : vector<256x512xf32>
    %19 = arith.mulf %7, %18 : vector<256x512xf32>
    %20 = arith.truncf %19 : vector<256x512xf32> to vector<256x512xbf16>
    %c0_10 = arith.constant 0 : index
    %c0_11 = arith.constant 0 : index
    %21 = vector.load %arg4[%c0_10, %c0_11] : memref<512x128xbf16, #tpu.memory_space<vmem>>, vector<512x128xbf16>
    %cst_12 = arith.constant dense<0.000000e+00> : vector<256x128xf32>
    %22 = tpu.matmul %20, %21, %cst_12 {dimension_numbers = #tpu.dot_dimension_numbers<[1], [0], [0], [1], [0, 0, 1, 1], [], []>} : vector<256x512xbf16>, vector<512x128xbf16>, vector<256x128xf32> -> vector<256x128xf32>
    %c0_13 = arith.constant 0 : index
    %c0_14 = arith.constant 0 : index
    %23 = vector.load %arg5[%c0_13, %c0_14] : memref<1x128xf32, #tpu.memory_space<vmem>>, vector<1x128xf32>
    %24 = vector.broadcast %23 : vector<1x128xf32> to vector<256x128xf32>
    %25 = arith.addf %22, %24 : vector<256x128xf32>
    %c0_15 = arith.constant 0 : index
    %c0_16 = arith.constant 0 : index
    %26 = vector.load %arg6[%c0_15, %c0_16] : memref<256x128xf32, #tpu.memory_space<vmem>>, vector<256x128xf32>
    tpu.vector_store %arg6[%c0_15, %c0_16], %25 {strides = array<i32>} : memref<256x128xf32, #tpu.memory_space<vmem>>, vector<256x128xf32>,
    return
  }
  func.func @transform_0(%arg0: i32) -> (i32, i32) {
    %c0_i32 = arith.constant 0 : i32
    %c0_i32_0 = arith.constant 0 : i32
    return %arg0, %c0_i32 : i32, i32
  }
  func.func @transform_1(%arg0: i32) -> (i32, i32) {
    %c0_i32 = arith.constant 0 : i32
    %c0_i32_0 = arith.constant 0 : i32
    %c0_i32_1 = arith.constant 0 : i32
    return %c0_i32, %c0_i32_0 : i32, i32
  }
  func.func @transform_2(%arg0: i32) -> (i32, i32) {
    %c0_i32 = arith.constant 0 : i32
    %c0_i32_0 = arith.constant 0 : i32
    %c0_i32_1 = arith.constant 0 : i32
    return %c0_i32, %c0_i32_0 : i32, i32
  }
  func.func @transform_3(%arg0: i32) -> (i32, i32) {
    %c0_i32 = arith.constant 0 : i32
    %c0_i32_0 = arith.constant 0 : i32
    %c0_i32_1 = arith.constant 0 : i32
    return %c0_i32, %c0_i32_0 : i32, i32
  }
  func.func @transform_4(%arg0: i32) -> (i32, i32) {
    %c0_i32 = arith.constant 0 : i32
    %c0_i32_0 = arith.constant 0 : i32
    %c0_i32_1 = arith.constant 0 : i32
    return %c0_i32, %c0_i32_0 : i32, i32
  }
  func.func @transform_5(%arg0: i32) -> (i32, i32) {
    %c0_i32 = arith.constant 0 : i32
    %c0_i32_0 = arith.constant 0 : i32
    return %arg0, %c0_i32 : i32, i32
  }
}

module attributes {stable_mosaic.version = 11 : i64} {
  func.func @_mlp_kernel_resident(%arg0: i32, %arg1: memref<256x128xbf16, #tpu.memory_space<vmem>>, %arg2: memref<128x512xbf16, #tpu.memory_space<vmem>>, %arg3: memref<1x512xf32, #tpu.memory_space<vmem>>, %arg4: memref<512x128xbf16, #tpu.memory_space<vmem>>, %arg5: memref<1x128xf32, #tpu.memory_space<vmem>>, %arg6: memref<256x128xf32, #tpu.memory_space<vmem>>) attributes {dimension_semantics = [#tpu.dimension_semantics<parallel>], iteration_bounds = array<i64: 2>, scalar_prefetch = 0 : i64, scratch_operands = 0 : i64, tpu.core_type = #tpu.core_type<tc>, window_params = [{transform_indices = @transform_0, window_bounds = array<i64: 256, 128>}, {pipeline_mode = #tpu.pipeline_mode<synchronous>, transform_indices = @transform_1, window_bounds = array<i64: 128, 512>}, {pipeline_mode = #tpu.pipeline_mode<synchronous>, transform_indices = @transform_2, window_bounds = array<i64: 1, 512>}, {pipeline_mode = #tpu.pipeline_mode<synchronous>, transform_indices = @transform_3, window_bounds = array<i64: 512, 128>}, {pipeline_mode = #tpu.pipeline_mode<synchronous>, transform_indices = @transform_4, window_bounds = array<i64: 1, 128>}, {transform_indices = @transform_5, window_bounds = array<i64: 256, 128>}]} {
    %c0 = arith.constant 0 : index
    %c0_0 = arith.constant 0 : index
    %0 = vector.load %arg1[%c0, %c0_0] : memref<256x128xbf16, #tpu.memory_space<vmem>>, vector<256x128xbf16>
    %c0_1 = arith.constant 0 : index
    %c0_2 = arith.constant 0 : index
    %1 = vector.load %arg2[%c0_1, %c0_2] : memref<128x512xbf16, #tpu.memory_space<vmem>>, vector<128x512xbf16>
    %cst = arith.constant dense<0.000000e+00> : vector<256x512xf32>
    %2 = tpu.matmul %0, %1, %cst {dimension_numbers = #tpu.dot_dimension_numbers<[1], [0], [0], [1], [0, 0, 1, 1], [], []>} : vector<256x128xbf16>, vector<128x512xbf16>, vector<256x512xf32> -> vector<256x512xf32>
    %c0_3 = arith.constant 0 : index
    %c0_4 = arith.constant 0 : index
    %3 = vector.load %arg3[%c0_3, %c0_4] : memref<1x512xf32, #tpu.memory_space<vmem>>, vector<1x512xf32>
    %4 = vector.broadcast %3 : vector<1x512xf32> to vector<256x512xf32>
    %5 = arith.addf %2, %4 : vector<256x512xf32>
    %cst_5 = arith.constant 5.000000e-01 : f32
    %6 = vector.broadcast %cst_5 : f32 to vector<256x512xf32>
    %7 = arith.mulf %6, %5 : vector<256x512xf32>
    %cst_6 = arith.constant 0.797884583 : f32
    %8 = vector.broadcast %cst_6 : f32 to vector<256x512xf32>
    %9 = arith.mulf %8, %5 : vector<256x512xf32>
    %cst_7 = arith.constant 4.471500e-02 : f32
    %10 = vector.broadcast %cst_7 : f32 to vector<256x512xf32>
    %11 = arith.mulf %10, %5 : vector<256x512xf32>
    %12 = arith.mulf %11, %5 : vector<256x512xf32>
    %cst_8 = arith.constant 1.000000e+00 : f32
    %13 = vector.broadcast %cst_8 : f32 to vector<256x512xf32>
    %14 = arith.addf %13, %12 : vector<256x512xf32>
    %15 = arith.mulf %9, %14 : vector<256x512xf32>
    %16 = math.tanh %15 : vector<256x512xf32>
    %cst_9 = arith.constant 1.000000e+00 : f32
    %17 = vector.broadcast %cst_9 : f32 to vector<256x512xf32>
    %18 = arith.addf %17, %16 : vector<256x512xf32>
    %19 = arith.mulf %7, %18 : vector<256x512xf32>
    %20 = arith.truncf %19 : vector<256x512xf32> to vector<256x512xbf16>
    %c0_10 = arith.constant 0 : index
    %c0_11 = arith.constant 0 : index
    %21 = vector.load %arg4[%c0_10, %c0_11] : memref<512x128xbf16, #tpu.memory_space<vmem>>, vector<512x128xbf16>
    %cst_12 = arith.constant dense<0.000000e+00> : vector<256x128xf32>
    %22 = tpu.matmul %20, %21, %cst_12 {dimension_numbers = #tpu.dot_dimension_numbers<[1], [0], [0], [1], [0, 0, 1, 1], [], []>} : vector<256x512xbf16>, vector<512x128xbf16>, vector<256x128xf32> -> vector<256x128xf32>
    %c0_13 = arith.constant 0 : index
    %c0_14 = arith.constant 0 : index
    %23 = vector.load %arg5[%c0_13, %c0_14] : memref<1x128xf32, #tpu.memory_space<vmem>>, vector<1x128xf32>
    %24 = vector.broadcast %23 : vector<1x128xf32> to vector<256x128xf32>
    %25 = arith.addf %22, %24 : vector<256x128xf32>
    %c0_15 = arith.constant 0 : index
    %c0_16 = arith.constant 0 : index
    %26 = vector.load %arg6[%c0_15, %c0_16] : memref<256x128xf32, #tpu.memory_space<vmem>>, vector<256x128xf32>
    tpu.vector_store %arg6[%c0_15, %c0_16], %25 {strides = array<i32>} : memref<256x128xf32, #tpu.memory_space<vmem>>, vector<256x128xf32>,
    return
  }
  func.func @transform_0(%arg0: i32) -> (i32, i32) {
    %c0_i32 = arith.constant 0 : i32
    %c0_i32_0 = arith.constant 0 : i32
    return %arg0, %c0_i32 : i32, i32
  }
  func.func @transform_1(%arg0: i32) -> (i32, i32) {
    %c0_i32 = arith.constant 0 : i32
    %c0_i32_0 = arith.constant 0 : i32
    %c0_i32_1 = arith.constant 0 : i32
    return %c0_i32, %c0_i32_0 : i32, i32
  }
  func.func @transform_2(%arg0: i32) -> (i32, i32) {
    %c0_i32 = arith.constant 0 : i32
    %c0_i32_0 = arith.constant 0 : i32
    %c0_i32_1 = arith.constant 0 : i32
    return %c0_i32, %c0_i32_0 : i32, i32
  }
  func.func @transform_3(%arg0: i32) -> (i32, i32) {
    %c0_i32 = arith.constant 0 : i32
    %c0_i32_0 = arith.constant 0 : i32
    %c0_i32_1 = arith.constant 0 : i32
    return %c0_i32, %c0_i32_0 : i32, i32
  }
  func.func @transform_4(%arg0: i32) -> (i32, i32) {
    %c0_i32 = arith.constant 0 : i32
    %c0_i32_0 = arith.constant 0 : i32
    %c0_i32_1 = arith.constant 0 : i32
    return %c0_i32, %c0_i32_0 : i32, i32
  }
  func.func @transform_5(%arg0: i32) -> (i32, i32) {
    %c0_i32 = arith.constant 0 : i32
    %c0_i32_0 = arith.constant 0 : i32
    return %arg0, %c0_i32 : i32, i32
  }
}

</mosaic_0001>

<llo_original>
// kernel: tpu_custom_call.1
$region0: #{tpu_custom_call.1}
  #allocation0 [shape = 'u32[]', space=smem, size = 0x4, offset = 0x4, fixed_abs, tag = 'smem constant byte address 0x4 - core index']
  #allocation1 [shape = 'u32[144,128]{1,0:T(1,128)}', space=vmem, size = 0x12000, scoped, tag = 'internal scratch']
  %s0 = inlined_call_operand.hbm [shape: bf16[512,128], index: 0, kind: input, shape index: {}]
  %s1 = inlined_call_operand.hbm [shape: bf16[128,512], index: 1, kind: input, shape index: {}]
  %s2 = inlined_call_operand.vmem [shape: f32[1,512], index: 2, kind: input, shape index: {}]
  %s3 = inlined_call_operand.hbm [shape: bf16[512,128], index: 3, kind: input, shape index: {}]
  %s4 = inlined_call_operand.vmem [shape: f32[1,128], index: 4, kind: input, shape index: {}]
  %s5 = inlined_call_operand.hbm [shape: f32[512,128], index: 5, kind: output, shape index: {}]
  %s6 = sld [smem:[#allocation0]]
  $region65: #{tpu_custom_call.1} parent=0
    _
  %s8 = ssub.s32 1, %s6
  %s9 = scalar_select 0, %s8, %s6
  $region1: #{tpu_custom_call.1} parent=0
    #allocation2 [shape = 'u8[131072]{0}', space=vmem, size = 0x20000, scoped, tag = 'input window, operand 0']
    #allocation3 [shape = 's32[2]{0}', space=sflag, size = 0x8, scoped, tag = 'scoped memory for tpu_custom_call.1']
    #allocation4 [shape = 's32[2]{0}', space=sflag, size = 0x8, scoped, tag = 'scoped memory for tpu_custom_call.1']
    #allocation5 [shape = 'u8[131072]{0}', space=vmem, size = 0x20000, scoped, tag = 'input window, operand 1, single buffered']
    #allocation6 [shape = 's32[1]{0}', space=sflag, size = 0x4, scoped, tag = 'scoped memory for tpu_custom_call.1']
    #allocation7 [shape = 'u8[131072]{0}', space=vmem, size = 0x20000, scoped, tag = 'input window, operand 3, single buffered']
    #allocation8 [shape = 'u8[262144]{0}', space=vmem, size = 0x40000, scoped, tag = 'output window, operand 0']
    %10 = vsyncpa [#allocation3], 0
    %s11 = scalar_lea.sflag [#allocation3], 1
    %12 = vsyncpa %s11, 0
    %13 = vsyncpa [#allocation6], 0
    %14 = vsyncpa [#allocation4], 0
    %s15 = scalar_lea.sflag [#allocation4], 1
    %16 = vsyncpa %s15, 0
    loop: start=0, step=1, limit=4
    $region2: #{tpu_custom_call.1} parent=1 // loop_pre_header
      _
    $region3: #{tpu_custom_call.1} parent=1 // loop_header
      %s18 = sphi 0, %s22
      %p19 = scmp.ge.s32.totalorder %s18, 4
      %s28 = sphi 0, %s30
      %s31 = sphi 0, %s28
      %s32 = sphi 0, %s31
      %s48 = sphi 0, %s32
      %s52 = sphi 0, %s52
      %s54 = sphi 0, %s52
      %s55 = sphi 0, %s54
      %s69 = sphi 0, %s55
      %s73 = sphi 0, %s73
      %s75 = sphi 0, %s73
      %s76 = sphi 0, %s75
      %s90 = sphi 0, %s76
      %s94 = sphi 0, %s94
      %s96 = sphi 0, %s94
      %s97 = sphi 0, %s96
      %s111 = sphi 0, %s97
      %s115 = sphi 0, %s115
      %s117 = sphi 0, %s115
      %s118 = sphi 0, %s117
      %s132 = sphi 0, %s118
      %s138 = sphi 0, %s140
      %s141 = sphi 0, %s138
      %s142 = sphi 0, %s141
      %s158 = sphi 0, %s142
    $region4: #{tpu_custom_call.1} parent=1 // loop_header_branch
      %21 = sbr.rel (%p19) target = $region8
    $region5: #{tpu_custom_call.1} parent=1 // loop_body
      %s23 = ssub.s32 %s18, 1
      %s24 = ssub.s32 %s18, 2
      %s25 = sadd.s32 %s18, 1
      %s26 = ssub.s32 %s18, %s25
      %p27 = scmp.eq.s32.totalorder %s26, 0
      %s29 = sadd.s32 %s28, 1
      %s30 = scalar_select %p27, %s28, %s29
      %p33 = pneg %p27
      %p34 = scmp.eq.s32.totalorder %s18, 1
      %p35 = por %p33, %p34
      %p36 = scmp.ne.s32.totalorder %s28, %s31
      %p37 = scmp.eq.s32.totalorder %s18, 0
      %p38 = por %p36, %p37
      %p39 = scmp.ne.s32.totalorder %s28, %s31
      %p40 = scmp.eq.s32.totalorder %s23, 1
      %p41 = por %p39, %p40
      %p42 = scmp.ne.s32.totalorder %s31, %s32
      %p43 = scmp.eq.s32.totalorder %s23, 0
      %p44 = por %p42, %p43
      %p45 = scmp.ne.s32.totalorder %s31, %s32
      %p46 = scmp.eq.s32.totalorder %s24, 1
      %p47 = por %p45, %p46
      %p49 = scmp.ne.s32.totalorder %s32, %s48
      %p50 = scmp.eq.s32.totalorder %s24, 0
      %p51 = por %p49, %p50
      %s53 = sadd.s32 %s52, 1
      %p56 = scmp.eq.s32.totalorder %s18, 1
      %p57 = scmp.ne.s32.totalorder %s52, %s54
      %p58 = scmp.eq.s32.totalorder %s18, 0
      %p59 = por %p57, %p58
      %p60 = scmp.ne.s32.totalorder %s52, %s54
      %p61 = scmp.eq.s32.totalorder %s23, 1
      %p62 = por %p60, %p61
      %p63 = scmp.ne.s32.totalorder %s54, %s55
      %p64 = scmp.eq.s32.totalorder %s23, 0
      %p65 = por %p63, %p64
      %p66 = scmp.ne.s32.totalorder %s54, %s55
      %p67 = scmp.eq.s32.totalorder %s24, 1
      %p68 = por %p66, %p67
      %p70 = scmp.ne.s32.totalorder %s55, %s69
      %p71 = scmp.eq.s32.totalorder %s24, 0
      %p72 = por %p70, %p71
      %s74 = sadd.s32 %s73, 1
      %p77 = scmp.eq.s32.totalorder %s18, 1
      %p78 = scmp.ne.s32.totalorder %s73, %s75
      %p79 = scmp.eq.s32.totalorder %s18, 0
      %p80 = por %p78, %p79
      %p81 = scmp.ne.s32.totalorder %s73, %s75
      %p82 = scmp.eq.s32.totalorder %s23, 1
      %p83 = por %p81, %p82
      %p84 = scmp.ne.s32.totalorder %s75, %s76
      %p85 = scmp.eq.s32.totalorder %s23, 0
      %p86 = por %p84, %p85
      %p87 = scmp.ne.s32.totalorder %s75, %s76
      %p88 = scmp.eq.s32.totalorder %s24, 1
      %p89 = por %p87, %p88
      %p91 = scmp.ne.s32.totalorder %s76, %s90
      %p92 = scmp.eq.s32.totalorder %s24, 0
      %p93 = por %p91, %p92
      %s95 = sadd.s32 %s94, 1
      %p98 = scmp.eq.s32.totalorder %s18, 1
      %p99 = scmp.ne.s32.totalorder %s94, %s96
      %p100 = scmp.eq.s32.totalorder %s18, 0
      %p101 = por %p99, %p100
      %p102 = scmp.ne.s32.totalorder %s94, %s96
      %p103 = scmp.eq.s32.totalorder %s23, 1
      %p104 = por %p102, %p103
      %p105 = scmp.ne.s32.totalorder %s96, %s97
      %p106 = scmp.eq.s32.totalorder %s23, 0
      %p107 = por %p105, %p106
      %p108 = scmp.ne.s32.totalorder %s96, %s97
      %p109 = scmp.eq.s32.totalorder %s24, 1
      %p110 = por %p108, %p109
      %p112 = scmp.ne.s32.totalorder %s97, %s111
      %p113 = scmp.eq.s32.totalorder %s24, 0
      %p114 = por %p112, %p113
      %s116 = sadd.s32 %s115, 1
      %p119 = scmp.eq.s32.totalorder %s18, 1
      %p120 = scmp.ne.s32.totalorder %s115, %s117
      %p121 = scmp.eq.s32.totalorder %s18, 0
      %p122 = por %p120, %p121
      %p123 = scmp.ne.s32.totalorder %s115, %s117
      %p124 = scmp.eq.s32.totalorder %s23, 1
      %p125 = por %p123, %p124
      %p126 = scmp.ne.s32.totalorder %s117, %s118
      %p127 = scmp.eq.s32.totalorder %s23, 0
      %p128 = por %p126, %p127
      %p129 = scmp.ne.s32.totalorder %s117, %s118
      %p130 = scmp.eq.s32.totalorder %s24, 1
      %p131 = por %p129, %p130
      %p133 = scmp.ne.s32.totalorder %s118, %s132
      %p134 = scmp.eq.s32.totalorder %s24, 0
      %p135 = por %p133, %p134
      %s136 = ssub.s32 %s18, %s25
      %p137 = scmp.eq.s32.totalorder %s136, 0
      %s139 = sadd.s32 %s138, 1
      %s140 = scalar_select %p137, %s138, %s139
      %p143 = pneg %p137
      %p144 = scmp.eq.s32.totalorder %s18, 1
      %p145 = por %p143, %p144
      %p146 = scmp.ne.s32.totalorder %s138, %s141
      %p147 = scmp.eq.s32.totalorder %s18, 0
      %p148 = por %p146, %p147
      %p149 = scmp.ne.s32.totalorder %s138, %s141
      %p150 = scmp.eq.s32.totalorder %s23, 1
      %p151 = por %p149, %p150
      %p152 = scmp.ne.s32.totalorder %s141, %s142
      %p153 = scmp.eq.s32.totalorder %s23, 0
      %p154 = por %p152, %p153
      %p155 = scmp.ne.s32.totalorder %s141, %s142
      %p156 = scmp.eq.s32.totalorder %s24, 1
      %p157 = por %p155, %p156
      %p159 = scmp.ne.s32.totalorder %s142, %s158
      %p160 = scmp.eq.s32.totalorder %s24, 0
      %p161 = por %p159, %p160
      %p162 = scmp.le.s32.totalorder 1, %s18
      %p163 = scmp.lt.s32.totalorder %s18, 3
      %p164 = pnand %p162, %p163
      %p165 = pneg %p164
      // Predicated region
      $region9: #{tpu_custom_call.1} parent=5 // pred_check
        _
      $region10: #{tpu_custom_call.1} parent=5 // pred_check_branch
        %167 = sbr.rel (%p164) target = $region12
      $region11: #{tpu_custom_call.1} parent=5 // pred_region
        %s168 = ssub.s32 %s18, 1
        // Predicated region
        $region13: #{tpu_custom_call.1} parent=11 // pred_check
          %p169 = pneg %p65
        $region14: #{tpu_custom_call.1} parent=11 // pred_check_branch
          %171 = sbr.rel (%p169) target = $region16
        $region15: #{tpu_custom_call.1} parent=11 // pred_region
          %s173 = ssub.s32 4096, 4096
          %174 = vsyncadd [#allocation6], %s173
          %s175 = sshll.u32 [#allocation5], 4
          %s176 = int_to_ptr.vmem [resolvable:$true] %s175
          %181 = dma.hbm_to_vmem [thread:$0]  %s1, 4096, %s176, [#allocation6], 256, 256, 16
        $region16: #{tpu_custom_call.1} parent=11 // pred_fallthru
          _
        // Predicated region
        $region17: #{tpu_custom_call.1} parent=11 // pred_check
          %p182 = pneg %p86
        $region18: #{tpu_custom_call.1} parent=11 // pred_check_branch
          %184 = sbr.rel (%p182) target = $region20
        $region19: #{tpu_custom_call.1} parent=11 // pred_region
          _
        $region20: #{tpu_custom_call.1} parent=11 // pred_fallthru
          _
        // Predicated region
        $region21: #{tpu_custom_call.1} parent=11 // pred_check
          %p185 = pneg %p107
        $region22: #{tpu_custom_call.1} parent=11 // pred_check_branch
          %187 = sbr.rel (%p185) target = $region24
        $region23: #{tpu_custom_call.1} parent=11 // pred_region
          %s189 = ssub.s32 4096, 4096
          %190 = vsyncadd [#allocation6], %s189
          %s191 = sshll.u32 [#allocation7], 4
          %s192 = int_to_ptr.vmem [resolvable:$true] %s191
          %197 = dma.hbm_to_vmem [thread:$0]  %s3, 4096, %s192, [#allocation6], 64, 64, 4
        $region24: #{tpu_custom_call.1} parent=11 // pred_fallthru
          _
        // Predicated region
        $region25: #{tpu_custom_call.1} parent=11 // pred_check
          %p198 = pneg %p128
        $region26: #{tpu_custom_call.1} parent=11 // pred_check_branch
          %200 = sbr.rel (%p198) target = $region28
        $region27: #{tpu_custom_call.1} parent=11 // pred_region
          _
        $region28: #{tpu_custom_call.1} parent=11 // pred_fallthru
          _
      $region12: #{tpu_custom_call.1} parent=5 // pred_fallthru
        _
      %p201 = scmp.lt.s32.totalorder %s18, 2
      // Predicated region
      $region29: #{tpu_custom_call.1} parent=5 // pred_check
        %p202 = pneg %p201
      $region30: #{tpu_custom_call.1} parent=5 // pred_check_branch
        %204 = sbr.rel (%p202) target = $region32
      $region31: #{tpu_custom_call.1} parent=5 // pred_region
        // Predicated region
        $region33: #{tpu_custom_call.1} parent=31 // pred_check
          %p205 = pneg %p38
        $region34: #{tpu_custom_call.1} parent=31 // pred_check_branch
          %207 = sbr.rel (%p205) target = $region36
        $region35: #{tpu_custom_call.1} parent=31 // pred_region
          %s208 = sand.u32 %s28, 1
          %s209 = scalar_lea.sflag [#allocation3], %s208
          %s210 = sand.u32 %s28, 1
          %s211 = smul.addr %s210, 128
          %s212 = scalar_lea.vmem [#allocation2], %s211
          %s213 = smul.u32 32, %s18
          %s215 = ssub.s32 2048, 2048
          %216 = vsyncadd %s209, %s215
          %s217 = smul.addr %s213, 64
          %s218 = scalar_lea.hbm %s0, %s217
          %s219 = sshll.u32 %s212, 4
          %s220 = int_to_ptr.vmem [resolvable:$true] %s219
          %225 = dma.hbm_to_vmem [thread:$0]  %s218, 2048, %s220, %s209, 64, 64, 4
        $region36: #{tpu_custom_call.1} parent=31 // pred_fallthru
          _
      $region32: #{tpu_custom_call.1} parent=5 // pred_fallthru
        _
      %p226 = scmp.le.s32.totalorder 1, %s18
      %p227 = scmp.lt.s32.totalorder %s18, 3
      %p228 = pnand %p226, %p227
      %p229 = pneg %p228
      // Predicated region
      $region37: #{tpu_custom_call.1} parent=5 // pred_check
        _
      $region38: #{tpu_custom_call.1} parent=5 // pred_check_branch
        %231 = sbr.rel (%p228) target = $region40
      $region39: #{tpu_custom_call.1} parent=5 // pred_region
        %s232 = ssub.s32 %s18, 1
        %s233 = sand.u32 %s31, 1
        %s234 = scalar_lea.sflag [#allocation3], %s233
        %s235 = sand.u32 %s31, 1
        %s236 = smul.addr %s235, 128
        %s237 = scalar_lea.vmem [#allocation2], %s236
        // Predicated region
        $region41: #{tpu_custom_call.1} parent=39 // pred_check
          %p238 = pneg %p44
        $region42: #{tpu_custom_call.1} parent=39 // pred_check_branch
          %240 = sbr.rel (%p238) target = $region44
        $region43: #{tpu_custom_call.1} parent=39 // pred_region
          %241 = dma.done %s234, 2048
        $region44: #{tpu_custom_call.1} parent=39 // pred_fallthru
          _
        // Predicated region
        $region45: #{tpu_custom_call.1} parent=39 // pred_check
          %p242 = pneg %p65
        $region46: #{tpu_custom_call.1} parent=39 // pred_check_branch
          %244 = sbr.rel (%p242) target = $region48
        $region47: #{tpu_custom_call.1} parent=39 // pred_region
          %245 = dma.done [#allocation6], 4096
        $region48: #{tpu_custom_call.1} parent=39 // pred_fallthru
          _
        // Predicated region
        $region49: #{tpu_custom_call.1} parent=39 // pred_check
          %p246 = pneg %p107
        $region50: #{tpu_custom_call.1} parent=39 // pred_check_branch
          %248 = sbr.rel (%p246) target = $region52
        $region51: #{tpu_custom_call.1} parent=39 // pred_region
          %249 = dma.done [#allocation6], 4096
        $region52: #{tpu_custom_call.1} parent=39 // pred_fallthru
          _
        %s250 = sand.u32 %s31, 1
        %s251 = scalar_lea.sflag [#allocation3], %s250
        %s252 = sand.u32 %s31, 1
        %s253 = smul.addr %s252, 128
        %s254 = scalar_lea.vmem [#allocation2], %s253
        %p255 = pneg %p44
        %p256 = pneg %p41
        %p257 = pneg %p65
        %p258 = pneg %p62
        %p259 = pneg %p86
        %p260 = pneg %p83
        %p261 = pneg %p107
        %p262 = pneg %p104
        %p263 = pneg %p128
        %p264 = pneg %p125
        %p265 = pneg %p154
        %p266 = pneg %p151
        %s267 = sand.u32 %s141, 1
        %s268 = scalar_lea.sflag [#allocation4], %s267
        %s269 = sand.u32 %s141, 1
        %s270 = smul.addr %s269, 256
        %s271 = scalar_lea.vmem [#allocation8], %s270
        %s272 = smul.u32 32, %s23
        %s273 = smul.u32 32, %s23
        %v275 = vld [vmem:[%s237] sm:$0xf]
        %v276 = vld [vmem:[%s237 + $0x4] sm:$0xf]
        %v277 = vld [vmem:[%s237 + $0x8] sm:$0xf]
        %v278 = vld [vmem:[%s237 + $0xc] sm:$0xf]
        %v279 = vld [vmem:[%s237 + $0x10] sm:$0xf]
        %v280 = vld [vmem:[%s237 + $0x14] sm:$0xf]
        %v281 = vld [vmem:[%s237 + $0x18] sm:$0xf]
        %v282 = vld [vmem:[%s237 + $0x1c] sm:$0xf]
        %v283 = vld [vmem:[%s237 + $0x20] sm:$0xf]
        %v284 = vld [vmem:[%s237 + $0x24] sm:$0xf]
        %v285 = vld [vmem:[%s237 + $0x28] sm:$0xf]
        %v286 = vld [vmem:[%s237 + $0x2c] sm:$0xf]
        %v287 = vld [vmem:[%s237 + $0x30] sm:$0xf]
        %v288 = vld [vmem:[%s237 + $0x34] sm:$0xf]
        %v289 = vld [vmem:[%s237 + $0x38] sm:$0xf]
        %v290 = vld [vmem:[%s237 + $0x3c] sm:$0xf]
        %v291 = vld [vmem:[%s237 + $0x40] sm:$0xf]
        %v292 = vld [vmem:[%s237 + $0x44] sm:$0xf]
        %v293 = vld [vmem:[%s237 + $0x48] sm:$0xf]
        %v294 = vld [vmem:[%s237 + $0x4c] sm:$0xf]
        %v295 = vld [vmem:[%s237 + $0x50] sm:$0xf]
        %v296 = vld [vmem:[%s237 + $0x54] sm:$0xf]
        %v297 = vld [vmem:[%s237 + $0x58] sm:$0xf]
        %v298 = vld [vmem:[%s237 + $0x5c] sm:$0xf]
        %v299 = vld [vmem:[%s237 + $0x60] sm:$0xf]
        %v300 = vld [vmem:[%s237 + $0x64] sm:$0xf]
        %v301 = vld [vmem:[%s237 + $0x68] sm:$0xf]
        %v302 = vld [vmem:[%s237 + $0x6c] sm:$0xf]
        %v303 = vld [vmem:[%s237 + $0x70] sm:$0xf]
        %v304 = vld [vmem:[%s237 + $0x74] sm:$0xf]
        %v305 = vld [vmem:[%s237 + $0x78] sm:$0xf]
        %v306 = vld [vmem:[%s237 + $0x7c] sm:$0xf]
        %v307 = vld [vmem:[#allocation5] sm:$0xff]
        %v308 = vld [vmem:[#allocation5 + $0x8] sm:$0xff]
        %v309 = vld [vmem:[#allocation5 + $0x10] sm:$0xff]
        %v310 = vld [vmem:[#allocation5 + $0x18] sm:$0xff]
        %v311 = vld [vmem:[#allocation5 + $0x20] sm:$0xff]
        %v312 = vld [vmem:[#allocation5 + $0x28] sm:$0xff]
        %v313 = vld [vmem:[#allocation5 + $0x30] sm:$0xff]
        %v314 = vld [vmem:[#allocation5 + $0x38] sm:$0xff]
        %v315 = vld [vmem:[#allocation5 + $0x40] sm:$0xff]
        %v316 = vld [vmem:[#allocation5 + $0x48] sm:$0xff]
        %v317 = vld [vmem:[#allocation5 + $0x50] sm:$0xff]
        %v318 = vld [vmem:[#allocation5 + $0x58] sm:$0xff]
        %v319 = vld [vmem:[#allocation5 + $0x60] sm:$0xff]
        %v320 = vld [vmem:[#allocation5 + $0x68] sm:$0xff]
        %v321 = vld [vmem:[#allocation5 + $0x70] sm:$0xff]
        %v322 = vld [vmem:[#allocation5 + $0x78] sm:$0xff]
        %v323 = vld [vmem:[#allocation5 + $0x80] sm:$0xff]
        %v324 = vld [vmem:[#allocation5 + $0x88] sm:$0xff]
        %v325 = vld [vmem:[#allocation5 + $0x90] sm:$0xff]
        %v326 = vld [vmem:[#allocation5 + $0x98] sm:$0xff]
        %v327 = vld [vmem:[#allocation5 + $0xa0] sm:$0xff]
        %v328 = vld [vmem:[#allocation5 + $0xa8] sm:$0xff]
        %v329 = vld [vmem:[#allocation5 + $0xb0] sm:$0xff]
        %v330 = vld [vmem:[#allocation5 + $0xb8] sm:$0xff]
        %v331 = vld [vmem:[#allocation5 + $0xc0] sm:$0xff]
        %v332 = vld [vmem:[#allocation5 + $0xc8] sm:$0xff]
        %v333 = vld [vmem:[#allocation5 + $0xd0] sm:$0xff]
        %v334 = vld [vmem:[#allocation5 + $0xd8] sm:$0xff]
        %v335 = vld [vmem:[#allocation5 + $0xe0] sm:$0xff]
        %v336 = vld [vmem:[#allocation5 + $0xe8] sm:$0xff]
        %v337 = vld [vmem:[#allocation5 + $0xf0] sm:$0xff]
        %v338 = vld [vmem:[#allocation5 + $0xf8] sm:$0xff]
        %v339 = vld [vmem:[%s2] sm:$0xf]
        %v341 = vlaneseq
        %v342 = vshrl.u32 %v341, 7
        %v343 = vsub.s32 0, %v342
        %v344 = vrot.slane %v339, %v343
        %v345 = vlaneseq
        %v346 = vshrl.u32 %v345, 7
        %v347 = vsub.s32 1, %v346
        %v348 = vrot.slane %v339, %v347
        %v349 = vlaneseq
        %v350 = vshrl.u32 %v349, 7
        %v351 = vsub.s32 2, %v350
        %v352 = vrot.slane %v339, %v351
        %v353 = vlaneseq
        %v354 = vshrl.u32 %v353, 7
        %v355 = vsub.s32 3, %v354
        %v356 = vrot.slane %v339, %v355
        %v393 = vunpack.c.l.b16 %v275
        %v394 = vunpack.c.l.b16 %v276
        %v395 = vunpack.c.l.b16 %v277
        %v396 = vunpack.c.l.b16 %v278
        %v397 = vunpack.c.l.b16 %v279
        %v398 = vunpack.c.l.b16 %v280
        %v399 = vunpack.c.l.b16 %v281
        %v400 = vunpack.c.l.b16 %v282
        %v401 = vunpack.c.l.b16 %v283
        %v402 = vunpack.c.l.b16 %v284
        %v403 = vunpack.c.l.b16 %v285
        %v404 = vunpack.c.l.b16 %v286
        %v405 = vunpack.c.l.b16 %v287
        %v406 = vunpack.c.l.b16 %v288
        %v407 = vunpack.c.l.b16 %v289
        %v408 = vunpack.c.l.b16 %v290
        %v409 = vunpack.c.l.b16 %v291
        %v410 = vunpack.c.l.b16 %v292
        %v411 = vunpack.c.l.b16 %v293
        %v412 = vunpack.c.l.b16 %v294
        %v413 = vunpack.c.l.b16 %v295
        %v414 = vunpack.c.l.b16 %v296
        %v415 = vunpack.c.l.b16 %v297
        %v416 = vunpack.c.l.b16 %v298
        %v417 = vunpack.c.l.b16 %v299
        %v418 = vunpack.c.l.b16 %v300
        %v419 = vunpack.c.l.b16 %v301
        %v420 = vunpack.c.l.b16 %v302
        %v421 = vunpack.c.l.b16 %v303
        %v422 = vunpack.c.l.b16 %v304
        %v423 = vunpack.c.l.b16 %v305
        %v424 = vunpack.c.l.b16 %v306
        %v425 = vpack.c.b16 %v394, %v393
        %v426 = vpack.c.b16 %v396, %v395
        %v427 = vpack.c.b16 %v398, %v397
        %v428 = vpack.c.b16 %v400, %v399
        %v429 = vpack.c.b16 %v402, %v401
        %v430 = vpack.c.b16 %v404, %v403
        %v431 = vpack.c.b16 %v406, %v405
        %v432 = vpack.c.b16 %v408, %v407
        %v433 = vpack.c.b16 %v410, %v409
        %v434 = vpack.c.b16 %v412, %v411
        %v435 = vpack.c.b16 %v414, %v413
        %v436 = vpack.c.b16 %v416, %v415
        %v437 = vpack.c.b16 %v418, %v417
        %v438 = vpack.c.b16 %v420, %v419
        %v439 = vpack.c.b16 %v422, %v421
        %v440 = vpack.c.b16 %v424, %v423
        %v489 = vunpack.c.l.b16 %v307
        %v490 = vunpack.c.h.b16 %v307
        %v491 = vunpack.c.l.b16 %v308
        %v492 = vunpack.c.h.b16 %v308
        %v493 = vunpack.c.l.b16 %v309
        %v494 = vunpack.c.h.b16 %v309
        %v495 = vunpack.c.l.b16 %v310
        %v496 = vunpack.c.h.b16 %v310
        %v497 = vunpack.c.l.b16 %v311
        %v498 = vunpack.c.h.b16 %v311
        %v499 = vunpack.c.l.b16 %v312
        %v500 = vunpack.c.h.b16 %v312
        %v501 = vunpack.c.l.b16 %v313
        %v502 = vunpack.c.h.b16 %v313
        %v503 = vunpack.c.l.b16 %v314
        %v504 = vunpack.c.h.b16 %v314
        %v505 = vunpack.c.l.b16 %v315
        %v506 = vunpack.c.h.b16 %v315
        %v507 = vunpack.c.l.b16 %v316
        %v508 = vunpack.c.h.b16 %v316
        %v509 = vunpack.c.l.b16 %v317
        %v510 = vunpack.c.h.b16 %v317
        %v511 = vunpack.c.l.b16 %v318
        %v512 = vunpack.c.h.b16 %v318
        %v513 = vunpack.c.l.b16 %v319
        %v514 = vunpack.c.h.b16 %v319
        %v515 = vunpack.c.l.b16 %v320
        %v516 = vunpack.c.h.b16 %v320
        %v517 = vunpack.c.l.b16 %v321
        %v518 = vunpack.c.h.b16 %v321
        %v519 = vunpack.c.l.b16 %v322
        %v520 = vunpack.c.h.b16 %v322
        %v521 = vunpack.c.l.b16 %v323
        %v522 = vunpack.c.h.b16 %v323
        %v523 = vunpack.c.l.b16 %v324
        %v524 = vunpack.c.h.b16 %v324
        %v525 = vunpack.c.l.b16 %v325
        %v526 = vunpack.c.h.b16 %v325
        %v527 = vunpack.c.l.b16 %v326
        %v528 = vunpack.c.h.b16 %v326
        %v529 = vunpack.c.l.b16 %v327
        %v530 = vunpack.c.h.b16 %v327
        %v531 = vunpack.c.l.b16 %v328
        %v532 = vunpack.c.h.b16 %v328
        %v533 = vunpack.c.l.b16 %v329
        %v534 = vunpack.c.h.b16 %v329
        %v535 = vunpack.c.l.b16 %v330
        %v536 = vunpack.c.h.b16 %v330
        %v537 = vunpack.c.l.b16 %v331
        %v538 = vunpack.c.h.b16 %v331
        %v539 = vunpack.c.l.b16 %v332
        %v540 = vunpack.c.h.b16 %v332
        %v541 = vunpack.c.l.b16 %v333
        %v542 = vunpack.c.h.b16 %v333
        %v543 = vunpack.c.l.b16 %v334
        %v544 = vunpack.c.h.b16 %v334
        %v545 = vunpack.c.l.b16 %v335
        %v546 = vunpack.c.h.b16 %v335
        %v547 = vunpack.c.l.b16 %v336
        %v548 = vunpack.c.h.b16 %v336
        %v549 = vunpack.c.l.b16 %v337
        %v550 = vunpack.c.h.b16 %v337
        %v551 = vunpack.c.l.b16 %v338
        %v552 = vunpack.c.h.b16 %v338
        %v553 = vpack.c.b16 %v493, %v489
        %v554 = vpack.c.b16 %v494, %v490
        %v555 = vpack.c.b16 %v495, %v491
        %v556 = vpack.c.b16 %v496, %v492
        %v557 = vpack.c.b16 %v501, %v497
        %v558 = vpack.c.b16 %v502, %v498
        %v559 = vpack.c.b16 %v503, %v499
        %v560 = vpack.c.b16 %v504, %v500
        %v561 = vpack.c.b16 %v509, %v505
        %v562 = vpack.c.b16 %v510, %v506
        %v563 = vpack.c.b16 %v511, %v507
        %v564 = vpack.c.b16 %v512, %v508
        %v565 = vpack.c.b16 %v517, %v513
        %v566 = vpack.c.b16 %v518, %v514
        %v567 = vpack.c.b16 %v519, %v515
        %v568 = vpack.c.b16 %v520, %v516
        %v569 = vpack.c.b16 %v525, %v521
        %v570 = vpack.c.b16 %v526, %v522
        %v571 = vpack.c.b16 %v527, %v523
        %v572 = vpack.c.b16 %v528, %v524
        %v573 = vpack.c.b16 %v533, %v529
        %v574 = vpack.c.b16 %v534, %v530
        %v575 = vpack.c.b16 %v535, %v531
        %v576 = vpack.c.b16 %v536, %v532
        %v577 = vpack.c.b16 %v541, %v537
        %v578 = vpack.c.b16 %v542, %v538
        %v579 = vpack.c.b16 %v543, %v539
        %v580 = vpack.c.b16 %v544, %v540
        %v581 = vpack.c.b16 %v549, %v545
        %v582 = vpack.c.b16 %v550, %v546
        %v583 = vpack.c.b16 %v551, %v547
        %v584 = vpack.c.b16 %v552, %v548
        %617 = vmatprep.subr.bf16.mxu0 %v554
        %618 = vmatpush1.bf16.msra.mxu0 %v553
        %619 = vmatprep.subr.bf16.mxu0 %v558
        %620 = vmatpush1.bf16.msra.mxu0 %v557
        %621 = vmatprep.subr.bf16.mxu0 %v562
        %622 = vmatpush1.bf16.msra.mxu0 %v561
        %623 = vmatprep.subr.bf16.mxu0 %v566
        %624 = vmatpush1.bf16.msra.mxu0 %v565
        %625 = vmatprep.subr.bf16.mxu0 %v570
        %626 = vmatpush1.bf16.msra.mxu0 %v569
        %627 = vmatprep.subr.bf16.mxu0 %v574
        %628 = vmatpush1.bf16.msra.mxu0 %v573
        %629 = vmatprep.subr.bf16.mxu0 %v578
        %630 = vmatpush1.bf16.msra.mxu0 %v577
        %631 = vmatprep.subr.bf16.mxu0 %v582
        %632 = vmatpush1.bf16.msra.mxu0 %v581
        %633 = vmatprep.subr.bf16.mxu0 0
        %634 = vmatpush1.bf16.msra.mxu0 0
        %635 = vmatprep.subr.bf16.mxu0 0
        %636 = vmatpush1.bf16.msra.mxu0 0
        %637 = vmatprep.subr.bf16.mxu0 0
        %638 = vmatpush1.bf16.msra.mxu0 0
        %639 = vmatprep.subr.bf16.mxu0 0
        %640 = vmatpush1.bf16.msra.mxu0 0
        %641 = vmatprep.subr.bf16.mxu0 0
        %642 = vmatpush1.bf16.msra.mxu0 0
        %643 = vmatprep.subr.bf16.mxu0 0
        %644 = vmatpush1.bf16.msra.mxu0 0
        %645 = vmatprep.subr.bf16.mxu0 0
        %646 = vmatpush1.bf16.msra.mxu0 0
        %647 = vmatprep.subr.bf16.mxu0 0
        %648 = vmatpush1.bf16.msra.mxu0 0
        %649 = vmatprep.mubr.bf16.mxu0 0
        %650 = vmatmul.mubr.bf16.gmra.mrb[0].mxu0 %v425
        %v651 = vpop.f32.mrb[0].mxu0
        %v652 = vadd.f32 %v344, %v651
        %v653 = vpop.f32.mrb[0].mxu0
        %v654 = vadd.f32 %v348, %v653
        %v655 = vpop.f32.mrb[0].mxu0
        %v656 = vadd.f32 %v344, %v655
        %v657 = vpop.f32.mrb[0].mxu0
        %v658 = vadd.f32 %v348, %v657
        %659 = vmatprep.mubr.bf16.mxu0 0
        %660 = vmatmul.mubr.bf16.gmra.mrb[0].mxu0 %v426
        %v661 = vpop.f32.mrb[0].mxu0
        %v662 = vadd.f32 %v344, %v661
        %v663 = vpop.f32.mrb[0].mxu0
        %v664 = vadd.f32 %v348, %v663
        %v665 = vpop.f32.mrb[0].mxu0
        %v666 = vadd.f32 %v344, %v665
        %v667 = vpop.f32.mrb[0].mxu0
        %v668 = vadd.f32 %v348, %v667
        %669 = vmatprep.mubr.bf16.mxu0 0
        %670 = vmatmul.mubr.bf16.gmra.mrb[0].mxu0 %v427
        %v671 = vpop.f32.mrb[0].mxu0
        %v672 = vadd.f32 %v344, %v671
        %v673 = vpop.f32.mrb[0].mxu0
        %v674 = vadd.f32 %v348, %v673
        %v675 = vpop.f32.mrb[0].mxu0
        %v676 = vadd.f32 %v344, %v675
        %v677 = vpop.f32.mrb[0].mxu0
        %v678 = vadd.f32 %v348, %v677
        %679 = vmatprep.mubr.bf16.mxu0 0
        %680 = vmatmul.mubr.bf16.gmra.mrb[0].mxu0 %v428
        %v681 = vpop.f32.mrb[0].mxu0
        %v682 = vadd.f32 %v344, %v681
        %v683 = vpop.f32.mrb[0].mxu0
        %v684 = vadd.f32 %v348, %v683
        %v685 = vpop.f32.mrb[0].mxu0
        %v686 = vadd.f32 %v344, %v685
        %v687 = vpop.f32.mrb[0].mxu0
        %v688 = vadd.f32 %v348, %v687
        %689 = vmatprep.mubr.bf16.mxu0 0
        %690 = vmatmul.mubr.bf16.gmra.mrb[0].mxu0 %v429
        %v691 = vpop.f32.mrb[0].mxu0
        %v692 = vadd.f32 %v344, %v691
        %v693 = vpop.f32.mrb[0].mxu0
        %v694 = vadd.f32 %v348, %v693
        %v695 = vpop.f32.mrb[0].mxu0
        %v696 = vadd.f32 %v344, %v695
        %v697 = vpop.f32.mrb[0].mxu0
        %v698 = vadd.f32 %v348, %v697
        %699 = vmatprep.mubr.bf16.mxu0 0
        %700 = vmatmul.mubr.bf16.gmra.mrb[0].mxu0 %v430
        %v701 = vpop.f32.mrb[0].mxu0
        %v702 = vadd.f32 %v344, %v701
        %v703 = vpop.f32.mrb[0].mxu0
        %v704 = vadd.f32 %v348, %v703
        %v705 = vpop.f32.mrb[0].mxu0
        %v706 = vadd.f32 %v344, %v705
        %v707 = vpop.f32.mrb[0].mxu0
        %v708 = vadd.f32 %v348, %v707
        %709 = vmatprep.mubr.bf16.mxu0 0
        %710 = vmatmul.mubr.bf16.gmra.mrb[0].mxu0 %v431
        %v711 = vpop.f32.mrb[0].mxu0
        %v712 = vadd.f32 %v344, %v711
        %v713 = vpop.f32.mrb[0].mxu0
        %v714 = vadd.f32 %v348, %v713
        %v715 = vpop.f32.mrb[0].mxu0
        %v716 = vadd.f32 %v344, %v715
        %v717 = vpop.f32.mrb[0].mxu0
        %v718 = vadd.f32 %v348, %v717
        %719 = vmatprep.mubr.bf16.mxu0 0
        %720 = vmatmul.mubr.bf16.gmra.mrb[0].mxu0 %v432
        %v721 = vpop.f32.mrb[0].mxu0
        %v722 = vadd.f32 %v344, %v721
        %v723 = vpop.f32.mrb[0].mxu0
        %v724 = vadd.f32 %v348, %v723
        %v725 = vpop.f32.mrb[0].mxu0
        %v726 = vadd.f32 %v344, %v725
        %v727 = vpop.f32.mrb[0].mxu0
        %v728 = vadd.f32 %v348, %v727
        %729 = vmatprep.mubr.bf16.mxu0 0
        %730 = vmatmul.mubr.bf16.gmra.mrb[0].mxu0 %v433
        %v731 = vpop.f32.mrb[0].mxu0
        %v732 = vadd.f32 %v344, %v731
        %v733 = vpop.f32.mrb[0].mxu0
        %v734 = vadd.f32 %v348, %v733
        %v735 = vpop.f32.mrb[0].mxu0
        %v736 = vadd.f32 %v344, %v735
        %v737 = vpop.f32.mrb[0].mxu0
        %v738 = vadd.f32 %v348, %v737
        %739 = vmatprep.mubr.bf16.mxu0 0
        %740 = vmatmul.mubr.bf16.gmra.mrb[0].mxu0 %v434
        %v741 = vpop.f32.mrb[0].mxu0
        %v742 = vadd.f32 %v344, %v741
        %v743 = vpop.f32.mrb[0].mxu0
        %v744 = vadd.f32 %v348, %v743
        %v745 = vpop.f32.mrb[0].mxu0
        %v746 = vadd.f32 %v344, %v745
        %v747 = vpop.f32.mrb[0].mxu0
        %v748 = vadd.f32 %v348, %v747
        %749 = vmatprep.mubr.bf16.mxu0 0
        %750 = vmatmul.mubr.bf16.gmra.mrb[0].mxu0 %v435
        %v751 = vpop.f32.mrb[0].mxu0
        %v752 = vadd.f32 %v344, %v751
        %v753 = vpop.f32.mrb[0].mxu0
        %v754 = vadd.f32 %v348, %v753
        %v755 = vpop.f32.mrb[0].mxu0
        %v756 = vadd.f32 %v344, %v755
        %v757 = vpop.f32.mrb[0].mxu0
        %v758 = vadd.f32 %v348, %v757
        %759 = vmatprep.mubr.bf16.mxu0 0
        %760 = vmatmul.mubr.bf16.gmra.mrb[0].mxu0 %v436
        %v761 = vpop.f32.mrb[0].mxu0
        %v762 = vadd.f32 %v344, %v761
        %v763 = vpop.f32.mrb[0].mxu0
        %v764 = vadd.f32 %v348, %v763
        %v765 = vpop.f32.mrb[0].mxu0
        %v766 = vadd.f32 %v344, %v765
        %v767 = vpop.f32.mrb[0].mxu0
        %v768 = vadd.f32 %v348, %v767
        %769 = vmatprep.mubr.bf16.mxu0 0
        %770 = vmatmul.mubr.bf16.gmra.mrb[0].mxu0 %v437
        %v771 = vpop.f32.mrb[0].mxu0
        %v772 = vadd.f32 %v344, %v771
        %v773 = vpop.f32.mrb[0].mxu0
        %v774 = vadd.f32 %v348, %v773
        %v775 = vpop.f32.mrb[0].mxu0
        %v776 = vadd.f32 %v344, %v775
        %v777 = vpop.f32.mrb[0].mxu0
        %v778 = vadd.f32 %v348, %v777
        %779 = vmatprep.mubr.bf16.mxu0 0
        %780 = vmatmul.mubr.bf16.gmra.mrb[0].mxu0 %v438
        %v781 = vpop.f32.mrb[0].mxu0
        %v782 = vadd.f32 %v344, %v781
        %v783 = vpop.f32.mrb[0].mxu0
        %v784 = vadd.f32 %v348, %v783
        %v785 = vpop.f32.mrb[0].mxu0
        %v786 = vadd.f32 %v344, %v785
        %v787 = vpop.f32.mrb[0].mxu0
        %v788 = vadd.f32 %v348, %v787
        %789 = vmatprep.mubr.bf16.mxu0 0
        %790 = vmatmul.mubr.bf16.gmra.mrb[0].mxu0 %v439
        %v791 = vpop.f32.mrb[0].mxu0
        %v792 = vadd.f32 %v344, %v791
        %v793 = vpop.f32.mrb[0].mxu0
        %v794 = vadd.f32 %v348, %v793
        %v795 = vpop.f32.mrb[0].mxu0
        %v796 = vadd.f32 %v344, %v795
        %v797 = vpop.f32.mrb[0].mxu0
        %v798 = vadd.f32 %v348, %v797
        %799 = vmatprep.mubr.bf16.mxu0 0
        %800 = vmatmul.mubr.bf16.gmra.mrb[0].mxu0 %v440
        %v801 = vpop.f32.mrb[0].mxu0
        %v802 = vadd.f32 %v344, %v801
        %v803 = vpop.f32.mrb[0].mxu0
        %v804 = vadd.f32 %v348, %v803
        %v805 = vpop.f32.mrb[0].mxu0
        %v806 = vadd.f32 %v344, %v805
        %v807 = vpop.f32.mrb[0].mxu0
        %v808 = vadd.f32 %v348, %v807
        %809 = vdwg.mxu0
        %810 = vmatprep.subr.bf16.mxu0 %v556
        %811 = vmatpush1.bf16.msra.mxu0 %v555
        %812 = vmatprep.subr.bf16.mxu0 %v560
        %813 = vmatpush1.bf16.msra.mxu0 %v559
        %814 = vmatprep.subr.bf16.mxu0 %v564
        %815 = vmatpush1.bf16.msra.mxu0 %v563
        %816 = vmatprep.subr.bf16.mxu0 %v568
        %817 = vmatpush1.bf16.msra.mxu0 %v567
        %818 = vmatprep.subr.bf16.mxu0 %v572
        %819 = vmatpush1.bf16.msra.mxu0 %v571
        %820 = vmatprep.subr.bf16.mxu0 %v576
        %821 = vmatpush1.bf16.msra.mxu0 %v575
        %822 = vmatprep.subr.bf16.mxu0 %v580
        %823 = vmatpush1.bf16.msra.mxu0 %v579
        %824 = vmatprep.subr.bf16.mxu0 %v584
        %825 = vmatpush1.bf16.msra.mxu0 %v583
        %826 = vmatprep.subr.bf16.mxu0 0
        %827 = vmatpush1.bf16.msra.mxu0 0
        %828 = vmatprep.subr.bf16.mxu0 0
        %829 = vmatpush1.bf16.msra.mxu0 0
        %830 = vmatprep.subr.bf16.mxu0 0
        %831 = vmatpush1.bf16.msra.mxu0 0
        %832 = vmatprep.subr.bf16.mxu0 0
        %833 = vmatpush1.bf16.msra.mxu0 0
        %834 = vmatprep.subr.bf16.mxu0 0
        %835 = vmatpush1.bf16.msra.mxu0 0
        %836 = vmatprep.subr.bf16.mxu0 0
        %837 = vmatpush1.bf16.msra.mxu0 0
        %838 = vmatprep.subr.bf16.mxu0 0
        %839 = vmatpush1.bf16.msra.mxu0 0
        %840 = vmatprep.subr.bf16.mxu0 0
        %841 = vmatpush1.bf16.msra.mxu0 0
        %842 = vmatprep.mubr.bf16.mxu0 0
        %843 = vmatmul.mubr.bf16.gmra.mrb[0].mxu0 %v425
        %v844 = vpop.f32.mrb[0].mxu0
        %v845 = vadd.f32 %v352, %v844
        %v846 = vpop.f32.mrb[0].mxu0
        %v847 = vadd.f32 %v356, %v846
        %v848 = vpop.f32.mrb[0].mxu0
        %v849 = vadd.f32 %v352, %v848
        %v850 = vpop.f32.mrb[0].mxu0
        %v851 = vadd.f32 %v356, %v850
        %852 = vmatprep.mubr.bf16.mxu0 0
        %853 = vmatmul.mubr.bf16.gmra.mrb[0].mxu0 %v426
        %v854 = vpop.f32.mrb[0].mxu0
        %v855 = vadd.f32 %v352, %v854
        %v856 = vpop.f32.mrb[0].mxu0
        %v857 = vadd.f32 %v356, %v856
        %v858 = vpop.f32.mrb[0].mxu0
        %v859 = vadd.f32 %v352, %v858
        %v860 = vpop.f32.mrb[0].mxu0
        %v861 = vadd.f32 %v356, %v860
        %862 = vmatprep.mubr.bf16.mxu0 0
        %863 = vmatmul.mubr.bf16.gmra.mrb[0].mxu0 %v427
        %v864 = vpop.f32.mrb[0].mxu0
        %v865 = vadd.f32 %v352, %v864
        %v866 = vpop.f32.mrb[0].mxu0
        %v867 = vadd.f32 %v356, %v866
        %v868 = vpop.f32.mrb[0].mxu0
        %v869 = vadd.f32 %v352, %v868
        %v870 = vpop.f32.mrb[0].mxu0
        %v871 = vadd.f32 %v356, %v870
        %872 = vmatprep.mubr.bf16.mxu0 0
        %873 = vmatmul.mubr.bf16.gmra.mrb[0].mxu0 %v428
        %v874 = vpop.f32.mrb[0].mxu0
        %v875 = vadd.f32 %v352, %v874
        %v876 = vpop.f32.mrb[0].mxu0
        %v877 = vadd.f32 %v356, %v876
        %v878 = vpop.f32.mrb[0].mxu0
        %v879 = vadd.f32 %v352, %v878
        %v880 = vpop.f32.mrb[0].mxu0
        %v881 = vadd.f32 %v356, %v880
        %882 = vmatprep.mubr.bf16.mxu0 0
        %883 = vmatmul.mubr.bf16.gmra.mrb[0].mxu0 %v429
        %v884 = vpop.f32.mrb[0].mxu0
        %v885 = vadd.f32 %v352, %v884
        %v886 = vpop.f32.mrb[0].mxu0
        %v887 = vadd.f32 %v356, %v886
        %v888 = vpop.f32.mrb[0].mxu0
        %v889 = vadd.f32 %v352, %v888
        %v890 = vpop.f32.mrb[0].mxu0
        %v891 = vadd.f32 %v356, %v890
        %892 = vmatprep.mubr.bf16.mxu0 0
        %893 = vmatmul.mubr.bf16.gmra.mrb[0].mxu0 %v430
        %v894 = vpop.f32.mrb[0].mxu0
        %v895 = vadd.f32 %v352, %v894
        %v896 = vpop.f32.mrb[0].mxu0
        %v897 = vadd.f32 %v356, %v896
        %v898 = vpop.f32.mrb[0].mxu0
        %v899 = vadd.f32 %v352, %v898
        %v900 = vpop.f32.mrb[0].mxu0
        %v901 = vadd.f32 %v356, %v900
        %902 = vmatprep.mubr.bf16.mxu0 0
        %903 = vmatmul.mubr.bf16.gmra.mrb[0].mxu0 %v431
        %v904 = vpop.f32.mrb[0].mxu0
        %v905 = vadd.f32 %v352, %v904
        %v906 = vpop.f32.mrb[0].mxu0
        %v907 = vadd.f32 %v356, %v906
        %v908 = vpop.f32.mrb[0].mxu0
        %v909 = vadd.f32 %v352, %v908
        %v910 = vpop.f32.mrb[0].mxu0
        %v911 = vadd.f32 %v356, %v910
        %912 = vmatprep.mubr.bf16.mxu0 0
        %913 = vmatmul.mubr.bf16.gmra.mrb[0].mxu0 %v432
        %v914 = vpop.f32.mrb[0].mxu0
        %v915 = vadd.f32 %v352, %v914
        %v916 = vpop.f32.mrb[0].mxu0
        %v917 = vadd.f32 %v356, %v916
        %v918 = vpop.f32.mrb[0].mxu0
        %v919 = vadd.f32 %v352, %v918
        %v920 = vpop.f32.mrb[0].mxu0
        %v921 = vadd.f32 %v356, %v920
        %922 = vmatprep.mubr.bf16.mxu0 0
        %923 = vmatmul.mubr.bf16.gmra.mrb[0].mxu0 %v433
        %v924 = vpop.f32.mrb[0].mxu0
        %v925 = vadd.f32 %v352, %v924
        %v926 = vpop.f32.mrb[0].mxu0
        %v927 = vadd.f32 %v356, %v926
        %v928 = vpop.f32.mrb[0].mxu0
        %v929 = vadd.f32 %v352, %v928
        %v930 = vpop.f32.mrb[0].mxu0
        %v931 = vadd.f32 %v356, %v930
        %932 = vmatprep.mubr.bf16.mxu0 0
        %933 = vmatmul.mubr.bf16.gmra.mrb[0].mxu0 %v434
        %v934 = vpop.f32.mrb[0].mxu0
        %v935 = vadd.f32 %v352, %v934
        %v936 = vpop.f32.mrb[0].mxu0
        %v937 = vadd.f32 %v356, %v936
        %v938 = vpop.f32.mrb[0].mxu0
        %v939 = vadd.f32 %v352, %v938
        %v940 = vpop.f32.mrb[0].mxu0
        %v941 = vadd.f32 %v356, %v940
        %942 = vmatprep.mubr.bf16.mxu0 0
        %943 = vmatmul.mubr.bf16.gmra.mrb[0].mxu0 %v435
        %v944 = vpop.f32.mrb[0].mxu0
        %v945 = vadd.f32 %v352, %v944
        %v946 = vpop.f32.mrb[0].mxu0
        %v947 = vadd.f32 %v356, %v946
        %v948 = vpop.f32.mrb[0].mxu0
        %v949 = vadd.f32 %v352, %v948
        %v950 = vpop.f32.mrb[0].mxu0
        %v951 = vadd.f32 %v356, %v950
        %952 = vmatprep.mubr.bf16.mxu0 0
        %953 = vmatmul.mubr.bf16.gmra.mrb[0].mxu0 %v436
        %v954 = vpop.f32.mrb[0].mxu0
        %v955 = vadd.f32 %v352, %v954
        %v956 = vpop.f32.mrb[0].mxu0
        %v957 = vadd.f32 %v356, %v956
        %v958 = vpop.f32.mrb[0].mxu0
        %v959 = vadd.f32 %v352, %v958
        %v960 = vpop.f32.mrb[0].mxu0
        %v961 = vadd.f32 %v356, %v960
        %962 = vmatprep.mubr.bf16.mxu0 0
        %963 = vmatmul.mubr.bf16.gmra.mrb[0].mxu0 %v437
        %v964 = vpop.f32.mrb[0].mxu0
        %v965 = vadd.f32 %v352, %v964
        %v966 = vpop.f32.mrb[0].mxu0
        %v967 = vadd.f32 %v356, %v966
        %v968 = vpop.f32.mrb[0].mxu0
        %v969 = vadd.f32 %v352, %v968
        %v970 = vpop.f32.mrb[0].mxu0
        %v971 = vadd.f32 %v356, %v970
        %972 = vmatprep.mubr.bf16.mxu0 0
        %973 = vmatmul.mubr.bf16.gmra.mrb[0].mxu0 %v438
        %v974 = vpop.f32.mrb[0].mxu0
        %v975 = vadd.f32 %v352, %v974
        %v976 = vpop.f32.mrb[0].mxu0
        %v977 = vadd.f32 %v356, %v976
        %v978 = vpop.f32.mrb[0].mxu0
        %v979 = vadd.f32 %v352, %v978
        %v980 = vpop.f32.mrb[0].mxu0
        %v981 = vadd.f32 %v356, %v980
        %982 = vmatprep.mubr.bf16.mxu0 0
        %983 = vmatmul.mubr.bf16.gmra.mrb[0].mxu0 %v439
        %v984 = vpop.f32.mrb[0].mxu0
        %v985 = vadd.f32 %v352, %v984
        %v986 = vpop.f32.mrb[0].mxu0
        %v987 = vadd.f32 %v356, %v986
        %v988 = vpop.f32.mrb[0].mxu0
        %v989 = vadd.f32 %v352, %v988
        %v990 = vpop.f32.mrb[0].mxu0
        %v991 = vadd.f32 %v356, %v990
        %992 = vmatprep.mubr.bf16.mxu0 0
        %993 = vmatmul.mubr.bf16.gmra.mrb[0].mxu0 %v440
        %v994 = vpop.f32.mrb[0].mxu0
        %v995 = vadd.f32 %v352, %v994
        %v996 = vpop.f32.mrb[0].mxu0
        %v997 = vadd.f32 %v356, %v996
        %v998 = vpop.f32.mrb[0].mxu0
        %v999 = vadd.f32 %v352, %v998
        %v1000 = vpop.f32.mrb[0].mxu0
        %v1001 = vadd.f32 %v356, %v1000
        %1002 = vdwg.mxu0
        %v1003 = vmul.f32 %v652, 0.5
        %v1004 = vmul.f32 %v654, 0.5
        %v1005 = vmul.f32 %v845, 0.5
        %v1006 = vmul.f32 %v847, 0.5
        %v1007 = vmul.f32 %v656, 0.5
        %v1008 = vmul.f32 %v658, 0.5
        %v1009 = vmul.f32 %v849, 0.5
        %v1010 = vmul.f32 %v851, 0.5
        %v1011 = vmul.f32 %v662, 0.5
        %v1012 = vmul.f32 %v664, 0.5
        %v1013 = vmul.f32 %v855, 0.5
        %v1014 = vmul.f32 %v857, 0.5
        %v1015 = vmul.f32 %v666, 0.5
        %v1016 = vmul.f32 %v668, 0.5
        %v1017 = vmul.f32 %v859, 0.5
        %v1018 = vmul.f32 %v861, 0.5
        %v1019 = vmul.f32 %v672, 0.5
        %v1020 = vmul.f32 %v674, 0.5
        %v1021 = vmul.f32 %v865, 0.5
        %v1022 = vmul.f32 %v867, 0.5
        %v1023 = vmul.f32 %v676, 0.5
        %v1024 = vmul.f32 %v678, 0.5
        %v1025 = vmul.f32 %v869, 0.5
        %v1026 = vmul.f32 %v871, 0.5
        %v1027 = vmul.f32 %v682, 0.5
        %v1028 = vmul.f32 %v684, 0.5
        %v1029 = vmul.f32 %v875, 0.5
        %v1030 = vmul.f32 %v877, 0.5
        %v1031 = vmul.f32 %v686, 0.5
        %v1032 = vmul.f32 %v688, 0.5
        %v1033 = vmul.f32 %v879, 0.5
        %v1034 = vmul.f32 %v881, 0.5
        %v1035 = vmul.f32 %v692, 0.5
        %v1036 = vmul.f32 %v694, 0.5
        %v1037 = vmul.f32 %v885, 0.5
        %v1038 = vmul.f32 %v887, 0.5
        %v1039 = vmul.f32 %v696, 0.5
        %v1040 = vmul.f32 %v698, 0.5
        %v1041 = vmul.f32 %v889, 0.5
        %v1042 = vmul.f32 %v891, 0.5
        %v1043 = vmul.f32 %v702, 0.5
        %v1044 = vmul.f32 %v704, 0.5
        %v1045 = vmul.f32 %v895, 0.5
        %v1046 = vmul.f32 %v897, 0.5
        %v1047 = vmul.f32 %v706, 0.5
        %v1048 = vmul.f32 %v708, 0.5
        %v1049 = vmul.f32 %v899, 0.5
        %v1050 = vmul.f32 %v901, 0.5
        %v1051 = vmul.f32 %v712, 0.5
        %v1052 = vmul.f32 %v714, 0.5
        %v1053 = vmul.f32 %v905, 0.5
        %v1054 = vmul.f32 %v907, 0.5
        %v1055 = vmul.f32 %v716, 0.5
        %v1056 = vmul.f32 %v718, 0.5
        %v1057 = vmul.f32 %v909, 0.5
        %v1058 = vmul.f32 %v911, 0.5
        %v1059 = vmul.f32 %v722, 0.5
        %v1060 = vmul.f32 %v724, 0.5
        %v1061 = vmul.f32 %v915, 0.5
        %v1062 = vmul.f32 %v917, 0.5
        %v1063 = vmul.f32 %v726, 0.5
        %v1064 = vmul.f32 %v728, 0.5
        %v1065 = vmul.f32 %v919, 0.5
        %v1066 = vmul.f32 %v921, 0.5
        %v1067 = vmul.f32 %v732, 0.5
        %v1068 = vmul.f32 %v734, 0.5
        %v1069 = vmul.f32 %v925, 0.5
        %v1070 = vmul.f32 %v927, 0.5
        %v1071 = vmul.f32 %v736, 0.5
        %v1072 = vmul.f32 %v738, 0.5
        %v1073 = vmul.f32 %v929, 0.5
        %v1074 = vmul.f32 %v931, 0.5
        %v1075 = vmul.f32 %v742, 0.5
        %v1076 = vmul.f32 %v744, 0.5
        %v1077 = vmul.f32 %v935, 0.5
        %v1078 = vmul.f32 %v937, 0.5
        %v1079 = vmul.f32 %v746, 0.5
        %v1080 = vmul.f32 %v748, 0.5
        %v1081 = vmul.f32 %v939, 0.5
        %v1082 = vmul.f32 %v941, 0.5
        %v1083 = vmul.f32 %v752, 0.5
        %v1084 = vmul.f32 %v754, 0.5
        %v1085 = vmul.f32 %v945, 0.5
        %v1086 = vmul.f32 %v947, 0.5
        %v1087 = vmul.f32 %v756, 0.5
        %v1088 = vmul.f32 %v758, 0.5
        %v1089 = vmul.f32 %v949, 0.5
        %v1090 = vmul.f32 %v951, 0.5
        %v1091 = vmul.f32 %v762, 0.5
        %v1092 = vmul.f32 %v764, 0.5
        %v1093 = vmul.f32 %v955, 0.5
        %v1094 = vmul.f32 %v957, 0.5
        %v1095 = vmul.f32 %v766, 0.5
        %v1096 = vmul.f32 %v768, 0.5
        %v1097 = vmul.f32 %v959, 0.5
        %v1098 = vmul.f32 %v961, 0.5
        %v1099 = vmul.f32 %v772, 0.5
        %v1100 = vmul.f32 %v774, 0.5
        %v1101 = vmul.f32 %v965, 0.5
        %v1102 = vmul.f32 %v967, 0.5
        %v1103 = vmul.f32 %v776, 0.5
        %v1104 = vmul.f32 %v778, 0.5
        %v1105 = vmul.f32 %v969, 0.5
        %v1106 = vmul.f32 %v971, 0.5
        %v1107 = vmul.f32 %v782, 0.5
        %v1108 = vmul.f32 %v784, 0.5
        %v1109 = vmul.f32 %v975, 0.5
        %v1110 = vmul.f32 %v977, 0.5
        %v1111 = vmul.f32 %v786, 0.5
        %v1112 = vmul.f32 %v788, 0.5
        %v1113 = vmul.f32 %v979, 0.5
        %v1114 = vmul.f32 %v981, 0.5
        %v1115 = vmul.f32 %v792, 0.5
        %v1116 = vmul.f32 %v794, 0.5
        %v1117 = vmul.f32 %v985, 0.5
        %v1118 = vmul.f32 %v987, 0.5
        %v1119 = vmul.f32 %v796, 0.5
        %v1120 = vmul.f32 %v798, 0.5
        %v1121 = vmul.f32 %v989, 0.5
        %v1122 = vmul.f32 %v991, 0.5
        %v1123 = vmul.f32 %v802, 0.5
        %v1124 = vmul.f32 %v804, 0.5
        %v1125 = vmul.f32 %v995, 0.5
        %v1126 = vmul.f32 %v997, 0.5
        %v1127 = vmul.f32 %v806, 0.5
        %v1128 = vmul.f32 %v808, 0.5
        %v1129 = vmul.f32 %v999, 0.5
        %v1130 = vmul.f32 %v1001, 0.5
        %v1131 = vmul.f32 %v652, 0.7978846
        %v1132 = vmul.f32 %v654, 0.7978846
        %v1133 = vmul.f32 %v845, 0.7978846
        %v1134 = vmul.f32 %v847, 0.7978846
        %v1135 = vmul.f32 %v656, 0.7978846
        %v1136 = vmul.f32 %v658, 0.7978846
        %v1137 = vmul.f32 %v849, 0.7978846
        %v1138 = vmul.f32 %v851, 0.7978846
        %v1139 = vmul.f32 %v662, 0.7978846
        %v1140 = vmul.f32 %v664, 0.7978846
        %v1141 = vmul.f32 %v855, 0.7978846
        %v1142 = vmul.f32 %v857, 0.7978846
        %v1143 = vmul.f32 %v666, 0.7978846
        %v1144 = vmul.f32 %v668, 0.7978846
        %v1145 = vmul.f32 %v859, 0.7978846
        %v1146 = vmul.f32 %v861, 0.7978846
        %v1147 = vmul.f32 %v672, 0.7978846
        %v1148 = vmul.f32 %v674, 0.7978846
        %v1149 = vmul.f32 %v865, 0.7978846
        %v1150 = vmul.f32 %v867, 0.7978846
        %v1151 = vmul.f32 %v676, 0.7978846
        %v1152 = vmul.f32 %v678, 0.7978846
        %v1153 = vmul.f32 %v869, 0.7978846
        %v1154 = vmul.f32 %v871, 0.7978846
        %v1155 = vmul.f32 %v682, 0.7978846
        %v1156 = vmul.f32 %v684, 0.7978846
        %v1157 = vmul.f32 %v875, 0.7978846
        %v1158 = vmul.f32 %v877, 0.7978846
        %v1159 = vmul.f32 %v686, 0.7978846
        %v1160 = vmul.f32 %v688, 0.7978846
        %v1161 = vmul.f32 %v879, 0.7978846
        %v1162 = vmul.f32 %v881, 0.7978846
        %v1163 = vmul.f32 %v692, 0.7978846
        %v1164 = vmul.f32 %v694, 0.7978846
        %v1165 = vmul.f32 %v885, 0.7978846
        %v1166 = vmul.f32 %v887, 0.7978846
        %v1167 = vmul.f32 %v696, 0.7978846
        %v1168 = vmul.f32 %v698, 0.7978846
        %v1169 = vmul.f32 %v889, 0.7978846
        %v1170 = vmul.f32 %v891, 0.7978846
        %v1171 = vmul.f32 %v702, 0.7978846
        %v1172 = vmul.f32 %v704, 0.7978846
        %v1173 = vmul.f32 %v895, 0.7978846
        %v1174 = vmul.f32 %v897, 0.7978846
        %v1175 = vmul.f32 %v706, 0.7978846
        %v1176 = vmul.f32 %v708, 0.7978846
        %v1177 = vmul.f32 %v899, 0.7978846
        %v1178 = vmul.f32 %v901, 0.7978846
        %v1179 = vmul.f32 %v712, 0.7978846
        %v1180 = vmul.f32 %v714, 0.7978846
        %v1181 = vmul.f32 %v905, 0.7978846
        %v1182 = vmul.f32 %v907, 0.7978846
        %v1183 = vmul.f32 %v716, 0.7978846
        %v1184 = vmul.f32 %v718, 0.7978846
        %v1185 = vmul.f32 %v909, 0.7978846
        %v1186 = vmul.f32 %v911, 0.7978846
        %v1187 = vmul.f32 %v722, 0.7978846
        %v1188 = vmul.f32 %v724, 0.7978846
        %v1189 = vmul.f32 %v915, 0.7978846
        %v1190 = vmul.f32 %v917, 0.7978846
        %v1191 = vmul.f32 %v726, 0.7978846
        %v1192 = vmul.f32 %v728, 0.7978846
        %v1193 = vmul.f32 %v919, 0.7978846
        %v1194 = vmul.f32 %v921, 0.7978846
        %v1195 = vmul.f32 %v732, 0.7978846
        %v1196 = vmul.f32 %v734, 0.7978846
        %v1197 = vmul.f32 %v925, 0.7978846
        %v1198 = vmul.f32 %v927, 0.7978846
        %v1199 = vmul.f32 %v736, 0.7978846
        %v1200 = vmul.f32 %v738, 0.7978846
        %v1201 = vmul.f32 %v929, 0.7978846
        %v1202 = vmul.f32 %v931, 0.7978846
        %v1203 = vmul.f32 %v742, 0.7978846
        %v1204 = vmul.f32 %v744, 0.7978846
        %v1205 = vmul.f32 %v935, 0.7978846
        %v1206 = vmul.f32 %v937, 0.7978846
        %v1207 = vmul.f32 %v746, 0.7978846
        %v1208 = vmul.f32 %v748, 0.7978846
        %v1209 = vmul.f32 %v939, 0.7978846
        %v1210 = vmul.f32 %v941, 0.7978846
        %v1211 = vmul.f32 %v752, 0.7978846
        %v1212 = vmul.f32 %v754, 0.7978846
        %v1213 = vmul.f32 %v945, 0.7978846
        %v1214 = vmul.f32 %v947, 0.7978846
        %v1215 = vmul.f32 %v756, 0.7978846
        %v1216 = vmul.f32 %v758, 0.7978846
        %v1217 = vmul.f32 %v949, 0.7978846
        %v1218 = vmul.f32 %v951, 0.7978846
        %v1219 = vmul.f32 %v762, 0.7978846
        %v1220 = vmul.f32 %v764, 0.7978846
        %v1221 = vmul.f32 %v955, 0.7978846
        %v1222 = vmul.f32 %v957, 0.7978846
        %v1223 = vmul.f32 %v766, 0.7978846
        %v1224 = vmul.f32 %v768, 0.7978846
        %v1225 = vmul.f32 %v959, 0.7978846
        %v1226 = vmul.f32 %v961, 0.7978846
        %v1227 = vmul.f32 %v772, 0.7978846
        %v1228 = vmul.f32 %v774, 0.7978846
        %v1229 = vmul.f32 %v965, 0.7978846
        %v1230 = vmul.f32 %v967, 0.7978846
        %v1231 = vmul.f32 %v776, 0.7978846
        %v1232 = vmul.f32 %v778, 0.7978846
        %v1233 = vmul.f32 %v969, 0.7978846
        %v1234 = vmul.f32 %v971, 0.7978846
        %v1235 = vmul.f32 %v782, 0.7978846
        %v1236 = vmul.f32 %v784, 0.7978846
        %v1237 = vmul.f32 %v975, 0.7978846
        %v1238 = vmul.f32 %v977, 0.7978846
        %v1239 = vmul.f32 %v786, 0.7978846
        %v1240 = vmul.f32 %v788, 0.7978846
        %v1241 = vmul.f32 %v979, 0.7978846
        %v1242 = vmul.f32 %v981, 0.7978846
        %v1243 = vmul.f32 %v792, 0.7978846
        %v1244 = vmul.f32 %v794, 0.7978846
        %v1245 = vmul.f32 %v985, 0.7978846
        %v1246 = vmul.f32 %v987, 0.7978846
        %v1247 = vmul.f32 %v796, 0.7978846
        %v1248 = vmul.f32 %v798, 0.7978846
        %v1249 = vmul.f32 %v989, 0.7978846
        %v1250 = vmul.f32 %v991, 0.7978846
        %v1251 = vmul.f32 %v802, 0.7978846
        %v1252 = vmul.f32 %v804, 0.7978846
        %v1253 = vmul.f32 %v995, 0.7978846
        %v1254 = vmul.f32 %v997, 0.7978846
        %v1255 = vmul.f32 %v806, 0.7978846
        %v1256 = vmul.f32 %v808, 0.7978846
        %v1257 = vmul.f32 %v999, 0.7978846
        %v1258 = vmul.f32 %v1001, 0.7978846
        %v1259 = vmul.f32 %v652, 0.044715
        %v1260 = vmul.f32 %v654, 0.044715
        %v1261 = vmul.f32 %v845, 0.044715
        %v1262 = vmul.f32 %v847, 0.044715
        %v1263 = vmul.f32 %v656, 0.044715
        %v1264 = vmul.f32 %v658, 0.044715
        %v1265 = vmul.f32 %v849, 0.044715
        %v1266 = vmul.f32 %v851, 0.044715
        %v1267 = vmul.f32 %v662, 0.044715
        %v1268 = vmul.f32 %v664, 0.044715
        %v1269 = vmul.f32 %v855, 0.044715
        %v1270 = vmul.f32 %v857, 0.044715
        %v1271 = vmul.f32 %v666, 0.044715
        %v1272 = vmul.f32 %v668, 0.044715
        %v1273 = vmul.f32 %v859, 0.044715
        %v1274 = vmul.f32 %v861, 0.044715
        %v1275 = vmul.f32 %v672, 0.044715
        %v1276 = vmul.f32 %v674, 0.044715
        %v1277 = vmul.f32 %v865, 0.044715
        %v1278 = vmul.f32 %v867, 0.044715
        %v1279 = vmul.f32 %v676, 0.044715
        %v1280 = vmul.f32 %v678, 0.044715
        %v1281 = vmul.f32 %v869, 0.044715
        %v1282 = vmul.f32 %v871, 0.044715
        %v1283 = vmul.f32 %v682, 0.044715
        %v1284 = vmul.f32 %v684, 0.044715
        %v1285 = vmul.f32 %v875, 0.044715
        %v1286 = vmul.f32 %v877, 0.044715
        %v1287 = vmul.f32 %v686, 0.044715
        %v1288 = vmul.f32 %v688, 0.044715
        %v1289 = vmul.f32 %v879, 0.044715
        %v1290 = vmul.f32 %v881, 0.044715
        %v1291 = vmul.f32 %v692, 0.044715
        %v1292 = vmul.f32 %v694, 0.044715
        %v1293 = vmul.f32 %v885, 0.044715
        %v1294 = vmul.f32 %v887, 0.044715
        %v1295 = vmul.f32 %v696, 0.044715
        %v1296 = vmul.f32 %v698, 0.044715
        %v1297 = vmul.f32 %v889, 0.044715
        %v1298 = vmul.f32 %v891, 0.044715
        %v1299 = vmul.f32 %v702, 0.044715
        %v1300 = vmul.f32 %v704, 0.044715
        %v1301 = vmul.f32 %v895, 0.044715
        %v1302 = vmul.f32 %v897, 0.044715
        %v1303 = vmul.f32 %v706, 0.044715
        %v1304 = vmul.f32 %v708, 0.044715
        %v1305 = vmul.f32 %v899, 0.044715
        %v1306 = vmul.f32 %v901, 0.044715
        %v1307 = vmul.f32 %v712, 0.044715
        %v1308 = vmul.f32 %v714, 0.044715
        %v1309 = vmul.f32 %v905, 0.044715
        %v1310 = vmul.f32 %v907, 0.044715
        %v1311 = vmul.f32 %v716, 0.044715
        %v1312 = vmul.f32 %v718, 0.044715
        %v1313 = vmul.f32 %v909, 0.044715
        %v1314 = vmul.f32 %v911, 0.044715
        %v1315 = vmul.f32 %v722, 0.044715
        %v1316 = vmul.f32 %v724, 0.044715
        %v1317 = vmul.f32 %v915, 0.044715
        %v1318 = vmul.f32 %v917, 0.044715
        %v1319 = vmul.f32 %v726, 0.044715
        %v1320 = vmul.f32 %v728, 0.044715
        %v1321 = vmul.f32 %v919, 0.044715
        %v1322 = vmul.f32 %v921, 0.044715
        %v1323 = vmul.f32 %v732, 0.044715
        %v1324 = vmul.f32 %v734, 0.044715
        %v1325 = vmul.f32 %v925, 0.044715
        %v1326 = vmul.f32 %v927, 0.044715
        %v1327 = vmul.f32 %v736, 0.044715
        %v1328 = vmul.f32 %v738, 0.044715
        %v1329 = vmul.f32 %v929, 0.044715
        %v1330 = vmul.f32 %v931, 0.044715
        %v1331 = vmul.f32 %v742, 0.044715
        %v1332 = vmul.f32 %v744, 0.044715
        %v1333 = vmul.f32 %v935, 0.044715
        %v1334 = vmul.f32 %v937, 0.044715
        %v1335 = vmul.f32 %v746, 0.044715
        %v1336 = vmul.f32 %v748, 0.044715
        %v1337 = vmul.f32 %v939, 0.044715
        %v1338 = vmul.f32 %v941, 0.044715
        %v1339 = vmul.f32 %v752, 0.044715
        %v1340 = vmul.f32 %v754, 0.044715
        %v1341 = vmul.f32 %v945, 0.044715
        %v1342 = vmul.f32 %v947, 0.044715
        %v1343 = vmul.f32 %v756, 0.044715
        %v1344 = vmul.f32 %v758, 0.044715
        %v1345 = vmul.f32 %v949, 0.044715
        %v1346 = vmul.f32 %v951, 0.044715
        %v1347 = vmul.f32 %v762, 0.044715
        %v1348 = vmul.f32 %v764, 0.044715
        %v1349 = vmul.f32 %v955, 0.044715
        %v1350 = vmul.f32 %v957, 0.044715
        %v1351 = vmul.f32 %v766, 0.044715
        %v1352 = vmul.f32 %v768, 0.044715
        %v1353 = vmul.f32 %v959, 0.044715
        %v1354 = vmul.f32 %v961, 0.044715
        %v1355 = vmul.f32 %v772, 0.044715
        %v1356 = vmul.f32 %v774, 0.044715
        %v1357 = vmul.f32 %v965, 0.044715
        %v1358 = vmul.f32 %v967, 0.044715
        %v1359 = vmul.f32 %v776, 0.044715
        %v1360 = vmul.f32 %v778, 0.044715
        %v1361 = vmul.f32 %v969, 0.044715
        %v1362 = vmul.f32 %v971, 0.044715
        %v1363 = vmul.f32 %v782, 0.044715
        %v1364 = vmul.f32 %v784, 0.044715
        %v1365 = vmul.f32 %v975, 0.044715
        %v1366 = vmul.f32 %v977, 0.044715
        %v1367 = vmul.f32 %v786, 0.044715
        %v1368 = vmul.f32 %v788, 0.044715
        %v1369 = vmul.f32 %v979, 0.044715
        %v1370 = vmul.f32 %v981, 0.044715
        %v1371 = vmul.f32 %v792, 0.044715
        %v1372 = vmul.f32 %v794, 0.044715
        %v1373 = vmul.f32 %v985, 0.044715
        %v1374 = vmul.f32 %v987, 0.044715
        %v1375 = vmul.f32 %v796, 0.044715
        %v1376 = vmul.f32 %v798, 0.044715
        %v1377 = vmul.f32 %v989, 0.044715
        %v1378 = vmul.f32 %v991, 0.044715
        %v1379 = vmul.f32 %v802, 0.044715
        %v1380 = vmul.f32 %v804, 0.044715
        %v1381 = vmul.f32 %v995, 0.044715
        %v1382 = vmul.f32 %v997, 0.044715
        %v1383 = vmul.f32 %v806, 0.044715
        %v1384 = vmul.f32 %v808, 0.044715
        %v1385 = vmul.f32 %v999, 0.044715
        %v1386 = vmul.f32 %v1001, 0.044715
        %v1387 = vmul.f32 %v1259, %v652
        %v1388 = vmul.f32 %v1260, %v654
        %v1389 = vmul.f32 %v1261, %v845
        %v1390 = vmul.f32 %v1262, %v847
        %v1391 = vmul.f32 %v1263, %v656
        %v1392 = vmul.f32 %v1264, %v658
        %v1393 = vmul.f32 %v1265, %v849
        %v1394 = vmul.f32 %v1266, %v851
        %v1395 = vmul.f32 %v1267, %v662
        %v1396 = vmul.f32 %v1268, %v664
        %v1397 = vmul.f32 %v1269, %v855
        %v1398 = vmul.f32 %v1270, %v857
        %v1399 = vmul.f32 %v1271, %v666
        %v1400 = vmul.f32 %v1272, %v668
        %v1401 = vmul.f32 %v1273, %v859
        %v1402 = vmul.f32 %v1274, %v861
        %v1403 = vmul.f32 %v1275, %v672
        %v1404 = vmul.f32 %v1276, %v674
        %v1405 = vmul.f32 %v1277, %v865
        %v1406 = vmul.f32 %v1278, %v867
        %v1407 = vmul.f32 %v1279, %v676
        %v1408 = vmul.f32 %v1280, %v678
        %v1409 = vmul.f32 %v1281, %v869
        %v1410 = vmul.f32 %v1282, %v871
        %v1411 = vmul.f32 %v1283, %v682
        %v1412 = vmul.f32 %v1284, %v684
        %v1413 = vmul.f32 %v1285, %v875
        %v1414 = vmul.f32 %v1286, %v877
        %v1415 = vmul.f32 %v1287, %v686
        %v1416 = vmul.f32 %v1288, %v688
        %v1417 = vmul.f32 %v1289, %v879
        %v1418 = vmul.f32 %v1290, %v881
        %v1419 = vmul.f32 %v1291, %v692
        %v1420 = vmul.f32 %v1292, %v694
        %v1421 = vmul.f32 %v1293, %v885
        %v1422 = vmul.f32 %v1294, %v887
        %v1423 = vmul.f32 %v1295, %v696
        %v1424 = vmul.f32 %v1296, %v698
        %v1425 = vmul.f32 %v1297, %v889
        %v1426 = vmul.f32 %v1298, %v891
        %v1427 = vmul.f32 %v1299, %v702
        %v1428 = vmul.f32 %v1300, %v704
        %v1429 = vmul.f32 %v1301, %v895
        %v1430 = vmul.f32 %v1302, %v897
        %v1431 = vmul.f32 %v1303, %v706
        %v1432 = vmul.f32 %v1304, %v708
        %v1433 = vmul.f32 %v1305, %v899
        %v1434 = vmul.f32 %v1306, %v901
        %v1435 = vmul.f32 %v1307, %v712
        %v1436 = vmul.f32 %v1308, %v714
        %v1437 = vmul.f32 %v1309, %v905
        %v1438 = vmul.f32 %v1310, %v907
        %v1439 = vmul.f32 %v1311, %v716
        %v1440 = vmul.f32 %v1312, %v718
        %v1441 = vmul.f32 %v1313, %v909
        %v1442 = vmul.f32 %v1314, %v911
        %v1443 = vmul.f32 %v1315, %v722
        %v1444 = vmul.f32 %v1316, %v724
        %v1445 = vmul.f32 %v1317, %v915
        %v1446 = vmul.f32 %v1318, %v917
        %v1447 = vmul.f32 %v1319, %v726
        %v1448 = vmul.f32 %v1320, %v728
        %v1449 = vmul.f32 %v1321, %v919
        %v1450 = vmul.f32 %v1322, %v921
        %v1451 = vmul.f32 %v1323, %v732
        %v1452 = vmul.f32 %v1324, %v734
        %v1453 = vmul.f32 %v1325, %v925
        %v1454 = vmul.f32 %v1326, %v927
        %v1455 = vmul.f32 %v1327, %v736
        %v1456 = vmul.f32 %v1328, %v738
        %v1457 = vmul.f32 %v1329, %v929
        %v1458 = vmul.f32 %v1330, %v931
        %v1459 = vmul.f32 %v1331, %v742
        %v1460 = vmul.f32 %v1332, %v744
        %v1461 = vmul.f32 %v1333, %v935
        %v1462 = vmul.f32 %v1334, %v937
        %v1463 = vmul.f32 %v1335, %v746
        %v1464 = vmul.f32 %v1336, %v748
        %v1465 = vmul.f32 %v1337, %v939
        %v1466 = vmul.f32 %v1338, %v941
        %v1467 = vmul.f32 %v1339, %v752
        %v1468 = vmul.f32 %v1340, %v754
        %v1469 = vmul.f32 %v1341, %v945
        %v1470 = vmul.f32 %v1342, %v947
        %v1471 = vmul.f32 %v1343, %v756
        %v1472 = vmul.f32 %v1344, %v758
        %v1473 = vmul.f32 %v1345, %v949
        %v1474 = vmul.f32 %v1346, %v951
        %v1475 = vmul.f32 %v1347, %v762
        %v1476 = vmul.f32 %v1348, %v764
        %v1477 = vmul.f32 %v1349, %v955
        %v1478 = vmul.f32 %v1350, %v957
        %v1479 = vmul.f32 %v1351, %v766
        %v1480 = vmul.f32 %v1352, %v768
        %v1481 = vmul.f32 %v1353, %v959
        %v1482 = vmul.f32 %v1354, %v961
        %v1483 = vmul.f32 %v1355, %v772
        %v1484 = vmul.f32 %v1356, %v774
        %v1485 = vmul.f32 %v1357, %v965
        %v1486 = vmul.f32 %v1358, %v967
        %v1487 = vmul.f32 %v1359, %v776
        %v1488 = vmul.f32 %v1360, %v778
        %v1489 = vmul.f32 %v1361, %v969
        %v1490 = vmul.f32 %v1362, %v971
        %v1491 = vmul.f32 %v1363, %v782
        %v1492 = vmul.f32 %v1364, %v784
        %v1493 = vmul.f32 %v1365, %v975
        %v1494 = vmul.f32 %v1366, %v977
        %v1495 = vmul.f32 %v1367, %v786
        %v1496 = vmul.f32 %v1368, %v788
        %v1497 = vmul.f32 %v1369, %v979
        %v1498 = vmul.f32 %v1370, %v981
        %v1499 = vmul.f32 %v1371, %v792
        %v1500 = vmul.f32 %v1372, %v794
        %v1501 = vmul.f32 %v1373, %v985
        %v1502 = vmul.f32 %v1374, %v987
        %v1503 = vmul.f32 %v1375, %v796
        %v1504 = vmul.f32 %v1376, %v798
        %v1505 = vmul.f32 %v1377, %v989
        %v1506 = vmul.f32 %v1378, %v991
        %v1507 = vmul.f32 %v1379, %v802
        %v1508 = vmul.f32 %v1380, %v804
        %v1509 = vmul.f32 %v1381, %v995
        %v1510 = vmul.f32 %v1382, %v997
        %v1511 = vmul.f32 %v1383, %v806
        %v1512 = vmul.f32 %v1384, %v808
        %v1513 = vmul.f32 %v1385, %v999
        %v1514 = vmul.f32 %v1386, %v1001
        %v1515 = vadd.f32 %v1387, 1.0
        %v1516 = vadd.f32 %v1388, 1.0
        %v1517 = vadd.f32 %v1389, 1.0
        %v1518 = vadd.f32 %v1390, 1.0
        %v1519 = vadd.f32 %v1391, 1.0
        %v1520 = vadd.f32 %v1392, 1.0
        %v1521 = vadd.f32 %v1393, 1.0
        %v1522 = vadd.f32 %v1394, 1.0
        %v1523 = vadd.f32 %v1395, 1.0
        %v1524 = vadd.f32 %v1396, 1.0
        %v1525 = vadd.f32 %v1397, 1.0
        %v1526 = vadd.f32 %v1398, 1.0
        %v1527 = vadd.f32 %v1399, 1.0
        %v1528 = vadd.f32 %v1400, 1.0
        %v1529 = vadd.f32 %v1401, 1.0
        %v1530 = vadd.f32 %v1402, 1.0
        %v1531 = vadd.f32 %v1403, 1.0
        %v1532 = vadd.f32 %v1404, 1.0
        %v1533 = vadd.f32 %v1405, 1.0
        %v1534 = vadd.f32 %v1406, 1.0
        %v1535 = vadd.f32 %v1407, 1.0
        %v1536 = vadd.f32 %v1408, 1.0
        %v1537 = vadd.f32 %v1409, 1.0
        %v1538 = vadd.f32 %v1410, 1.0
        %v1539 = vadd.f32 %v1411, 1.0
        %v1540 = vadd.f32 %v1412, 1.0
        %v1541 = vadd.f32 %v1413, 1.0
        %v1542 = vadd.f32 %v1414, 1.0
        %v1543 = vadd.f32 %v1415, 1.0
        %v1544 = vadd.f32 %v1416, 1.0
        %v1545 = vadd.f32 %v1417, 1.0
        %v1546 = vadd.f32 %v1418, 1.0
        %v1547 = vadd.f32 %v1419, 1.0
        %v1548 = vadd.f32 %v1420, 1.0
        %v1549 = vadd.f32 %v1421, 1.0
        %v1550 = vadd.f32 %v1422, 1.0
        %v1551 = vadd.f32 %v1423, 1.0
        %v1552 = vadd.f32 %v1424, 1.0
        %v1553 = vadd.f32 %v1425, 1.0
        %v1554 = vadd.f32 %v1426, 1.0
        %v1555 = vadd.f32 %v1427, 1.0
        %v1556 = vadd.f32 %v1428, 1.0
        %v1557 = vadd.f32 %v1429, 1.0
        %v1558 = vadd.f32 %v1430, 1.0
        %v1559 = vadd.f32 %v1431, 1.0
        %v1560 = vadd.f32 %v1432, 1.0
        %v1561 = vadd.f32 %v1433, 1.0
        %v1562 = vadd.f32 %v1434, 1.0
        %v1563 = vadd.f32 %v1435, 1.0
        %v1564 = vadd.f32 %v1436, 1.0
        %v1565 = vadd.f32 %v1437, 1.0
        %v1566 = vadd.f32 %v1438, 1.0
        %v1567 = vadd.f32 %v1439, 1.0
        %v1568 = vadd.f32 %v1440, 1.0
        %v1569 = vadd.f32 %v1441, 1.0
        %v1570 = vadd.f32 %v1442, 1.0
        %v1571 = vadd.f32 %v1443, 1.0
        %v1572 = vadd.f32 %v1444, 1.0
        %v1573 = vadd.f32 %v1445, 1.0
        %v1574 = vadd.f32 %v1446, 1.0
        %v1575 = vadd.f32 %v1447, 1.0
        %v1576 = vadd.f32 %v1448, 1.0
        %v1577 = vadd.f32 %v1449, 1.0
        %v1578 = vadd.f32 %v1450, 1.0
        %v1579 = vadd.f32 %v1451, 1.0
        %v1580 = vadd.f32 %v1452, 1.0
        %v1581 = vadd.f32 %v1453, 1.0
        %v1582 = vadd.f32 %v1454, 1.0
        %v1583 = vadd.f32 %v1455, 1.0
        %v1584 = vadd.f32 %v1456, 1.0
        %v1585 = vadd.f32 %v1457, 1.0
        %v1586 = vadd.f32 %v1458, 1.0
        %v1587 = vadd.f32 %v1459, 1.0
        %v1588 = vadd.f32 %v1460, 1.0
        %v1589 = vadd.f32 %v1461, 1.0
        %v1590 = vadd.f32 %v1462, 1.0
        %v1591 = vadd.f32 %v1463, 1.0
        %v1592 = vadd.f32 %v1464, 1.0
        %v1593 = vadd.f32 %v1465, 1.0
        %v1594 = vadd.f32 %v1466, 1.0
        %v1595 = vadd.f32 %v1467, 1.0
        %v1596 = vadd.f32 %v1468, 1.0
        %v1597 = vadd.f32 %v1469, 1.0
        %v1598 = vadd.f32 %v1470, 1.0
        %v1599 = vadd.f32 %v1471, 1.0
        %v1600 = vadd.f32 %v1472, 1.0
        %v1601 = vadd.f32 %v1473, 1.0
        %v1602 = vadd.f32 %v1474, 1.0
        %v1603 = vadd.f32 %v1475, 1.0
        %v1604 = vadd.f32 %v1476, 1.0
        %v1605 = vadd.f32 %v1477, 1.0
        %v1606 = vadd.f32 %v1478, 1.0
        %v1607 = vadd.f32 %v1479, 1.0
        %v1608 = vadd.f32 %v1480, 1.0
        %v1609 = vadd.f32 %v1481, 1.0
        %v1610 = vadd.f32 %v1482, 1.0
        %v1611 = vadd.f32 %v1483, 1.0
        %v1612 = vadd.f32 %v1484, 1.0
        %v1613 = vadd.f32 %v1485, 1.0
        %v1614 = vadd.f32 %v1486, 1.0
        %v1615 = vadd.f32 %v1487, 1.0
        %v1616 = vadd.f32 %v1488, 1.0
        %v1617 = vadd.f32 %v1489, 1.0
        %v1618 = vadd.f32 %v1490, 1.0
        %v1619 = vadd.f32 %v1491, 1.0
        %v1620 = vadd.f32 %v1492, 1.0
        %v1621 = vadd.f32 %v1493, 1.0
        %v1622 = vadd.f32 %v1494, 1.0
        %v1623 = vadd.f32 %v1495, 1.0
        %v1624 = vadd.f32 %v1496, 1.0
        %v1625 = vadd.f32 %v1497, 1.0
        %v1626 = vadd.f32 %v1498, 1.0
        %v1627 = vadd.f32 %v1499, 1.0
        %v1628 = vadd.f32 %v1500, 1.0
        %v1629 = vadd.f32 %v1501, 1.0
        %v1630 = vadd.f32 %v1502, 1.0
        %v1631 = vadd.f32 %v1503, 1.0
        %v1632 = vadd.f32 %v1504, 1.0
        %v1633 = vadd.f32 %v1505, 1.0
        %v1634 = vadd.f32 %v1506, 1.0
        %v1635 = vadd.f32 %v1507, 1.0
        %v1636 = vadd.f32 %v1508, 1.0
        %v1637 = vadd.f32 %v1509, 1.0
        %v1638 = vadd.f32 %v1510, 1.0
        %v1639 = vadd.f32 %v1511, 1.0
        %v1640 = vadd.f32 %v1512, 1.0
        %v1641 = vadd.f32 %v1513, 1.0
        %v1642 = vadd.f32 %v1514, 1.0
        %v1643 = vmul.f32 %v1131, %v1515
        %v1644 = vmul.f32 %v1132, %v1516
        %v1645 = vmul.f32 %v1133, %v1517
        %v1646 = vmul.f32 %v1134, %v1518
        %v1647 = vmul.f32 %v1135, %v1519
        %v1648 = vmul.f32 %v1136, %v1520
        %v1649 = vmul.f32 %v1137, %v1521
        %v1650 = vmul.f32 %v1138, %v1522
        %v1651 = vmul.f32 %v1139, %v1523
        %v1652 = vmul.f32 %v1140, %v1524
        %v1653 = vmul.f32 %v1141, %v1525
        %v1654 = vmul.f32 %v1142, %v1526
        %v1655 = vmul.f32 %v1143, %v1527
        %v1656 = vmul.f32 %v1144, %v1528
        %v1657 = vmul.f32 %v1145, %v1529
        %v1658 = vmul.f32 %v1146, %v1530
        %v1659 = vmul.f32 %v1147, %v1531
        %v1660 = vmul.f32 %v1148, %v1532
        %v1661 = vmul.f32 %v1149, %v1533
        %v1662 = vmul.f32 %v1150, %v1534
        %v1663 = vmul.f32 %v1151, %v1535
        %v1664 = vmul.f32 %v1152, %v1536
        %v1665 = vmul.f32 %v1153, %v1537
        %v1666 = vmul.f32 %v1154, %v1538
        %v1667 = vmul.f32 %v1155, %v1539
        %v1668 = vmul.f32 %v1156, %v1540
        %v1669 = vmul.f32 %v1157, %v1541
        %v1670 = vmul.f32 %v1158, %v1542
        %v1671 = vmul.f32 %v1159, %v1543
        %v1672 = vmul.f32 %v1160, %v1544
        %v1673 = vmul.f32 %v1161, %v1545
        %v1674 = vmul.f32 %v1162, %v1546
        %v1675 = vmul.f32 %v1163, %v1547
        %v1676 = vmul.f32 %v1164, %v1548
        %v1677 = vmul.f32 %v1165, %v1549
        %v1678 = vmul.f32 %v1166, %v1550
        %v1679 = vmul.f32 %v1167, %v1551
        %v1680 = vmul.f32 %v1168, %v1552
        %v1681 = vmul.f32 %v1169, %v1553
        %v1682 = vmul.f32 %v1170, %v1554
        %v1683 = vmul.f32 %v1171, %v1555
        %v1684 = vmul.f32 %v1172, %v1556
        %v1685 = vmul.f32 %v1173, %v1557
        %v1686 = vmul.f32 %v1174, %v1558
        %v1687 = vmul.f32 %v1175, %v1559
        %v1688 = vmul.f32 %v1176, %v1560
        %v1689 = vmul.f32 %v1177, %v1561
        %v1690 = vmul.f32 %v1178, %v1562
        %v1691 = vmul.f32 %v1179, %v1563
        %v1692 = vmul.f32 %v1180, %v1564
        %v1693 = vmul.f32 %v1181, %v1565
        %v1694 = vmul.f32 %v1182, %v1566
        %v1695 = vmul.f32 %v1183, %v1567
        %v1696 = vmul.f32 %v1184, %v1568
        %v1697 = vmul.f32 %v1185, %v1569
        %v1698 = vmul.f32 %v1186, %v1570
        %v1699 = vmul.f32 %v1187, %v1571
        %v1700 = vmul.f32 %v1188, %v1572
        %v1701 = vmul.f32 %v1189, %v1573
        %v1702 = vmul.f32 %v1190, %v1574
        %v1703 = vmul.f32 %v1191, %v1575
        %v1704 = vmul.f32 %v1192, %v1576
        %v1705 = vmul.f32 %v1193, %v1577
        %v1706 = vmul.f32 %v1194, %v1578
        %v1707 = vmul.f32 %v1195, %v1579
        %v1708 = vmul.f32 %v1196, %v1580
        %v1709 = vmul.f32 %v1197, %v1581
        %v1710 = vmul.f32 %v1198, %v1582
        %v1711 = vmul.f32 %v1199, %v1583
        %v1712 = vmul.f32 %v1200, %v1584
        %v1713 = vmul.f32 %v1201, %v1585
        %v1714 = vmul.f32 %v1202, %v1586
        %v1715 = vmul.f32 %v1203, %v1587
        %v1716 = vmul.f32 %v1204, %v1588
        %v1717 = vmul.f32 %v1205, %v1589
        %v1718 = vmul.f32 %v1206, %v1590
        %v1719 = vmul.f32 %v1207, %v1591
        %v1720 = vmul.f32 %v1208, %v1592
        %v1721 = vmul.f32 %v1209, %v1593
        %v1722 = vmul.f32 %v1210, %v1594
        %v1723 = vmul.f32 %v1211, %v1595
        %v1724 = vmul.f32 %v1212, %v1596
        %v1725 = vmul.f32 %v1213, %v1597
        %v1726 = vmul.f32 %v1214, %v1598
        %v1727 = vmul.f32 %v1215, %v1599
        %v1728 = vmul.f32 %v1216, %v1600
        %v1729 = vmul.f32 %v1217, %v1601
        %v1730 = vmul.f32 %v1218, %v1602
        %v1731 = vmul.f32 %v1219, %v1603
        %v1732 = vmul.f32 %v1220, %v1604
        %v1733 = vmul.f32 %v1221, %v1605
        %v1734 = vmul.f32 %v1222, %v1606
        %v1735 = vmul.f32 %v1223, %v1607
        %v1736 = vmul.f32 %v1224, %v1608
        %v1737 = vmul.f32 %v1225, %v1609
        %v1738 = vmul.f32 %v1226, %v1610
        %v1739 = vmul.f32 %v1227, %v1611
        %v1740 = vmul.f32 %v1228, %v1612
        %v1741 = vmul.f32 %v1229, %v1613
        %v1742 = vmul.f32 %v1230, %v1614
        %v1743 = vmul.f32 %v1231, %v1615
        %v1744 = vmul.f32 %v1232, %v1616
        %v1745 = vmul.f32 %v1233, %v1617
        %v1746 = vmul.f32 %v1234, %v1618
        %v1747 = vmul.f32 %v1235, %v1619
        %v1748 = vmul.f32 %v1236, %v1620
        %v1749 = vmul.f32 %v1237, %v1621
        %v1750 = vmul.f32 %v1238, %v1622
        %v1751 = vmul.f32 %v1239, %v1623
        %v1752 = vmul.f32 %v1240, %v1624
        %v1753 = vmul.f32 %v1241, %v1625
        %v1754 = vmul.f32 %v1242, %v1626
        %v1755 = vmul.f32 %v1243, %v1627
        %v1756 = vmul.f32 %v1244, %v1628
        %v1757 = vmul.f32 %v1245, %v1629
        %v1758 = vmul.f32 %v1246, %v1630
        %v1759 = vmul.f32 %v1247, %v1631
        %v1760 = vmul.f32 %v1248, %v1632
        %v1761 = vmul.f32 %v1249, %v1633
        %v1762 = vmul.f32 %v1250, %v1634
        %v1763 = vmul.f32 %v1251, %v1635
        %v1764 = vmul.f32 %v1252, %v1636
        %v1765 = vmul.f32 %v1253, %v1637
        %v1766 = vmul.f32 %v1254, %v1638
        %v1767 = vmul.f32 %v1255, %v1639
        %v1768 = vmul.f32 %v1256, %v1640
        %v1769 = vmul.f32 %v1257, %v1641
        %v1770 = vmul.f32 %v1258, %v1642
        %v1771 = vtanh.pop %v1643
        %v1772 = vtanh.pop %v1644
        %v1773 = vtanh.pop %v1645
        %v1774 = vtanh.pop %v1646
        %v1775 = vtanh.pop %v1647
        %v1776 = vtanh.pop %v1648
        %v1777 = vtanh.pop %v1649
        %v1778 = vtanh.pop %v1650
        %v1779 = vtanh.pop %v1651
        %v1780 = vtanh.pop %v1652
        %v1781 = vtanh.pop %v1653
        %v1782 = vtanh.pop %v1654
        %v1783 = vtanh.pop %v1655
        %v1784 = vtanh.pop %v1656
        %v1785 = vtanh.pop %v1657
        %v1786 = vtanh.pop %v1658
        %v1787 = vtanh.pop %v1659
        %v1788 = vtanh.pop %v1660
        %v1789 = vtanh.pop %v1661
        %v1790 = vtanh.pop %v1662
        %v1791 = vtanh.pop %v1663
        %v1792 = vtanh.pop %v1664
        %v1793 = vtanh.pop %v1665
        %v1794 = vtanh.pop %v1666
        %v1795 = vtanh.pop %v1667
        %v1796 = vtanh.pop %v1668
        %v1797 = vtanh.pop %v1669
        %v1798 = vtanh.pop %v1670
        %v1799 = vtanh.pop %v1671
        %v1800 = vtanh.pop %v1672
        %v1801 = vtanh.pop %v1673
        %v1802 = vtanh.pop %v1674
        %v1803 = vtanh.pop %v1675
        %v1804 = vtanh.pop %v1676
        %v1805 = vtanh.pop %v1677
        %v1806 = vtanh.pop %v1678
        %v1807 = vtanh.pop %v1679
        %v1808 = vtanh.pop %v1680
        %v1809 = vtanh.pop %v1681
        %v1810 = vtanh.pop %v1682
        %v1811 = vtanh.pop %v1683
        %v1812 = vtanh.pop %v1684
        %v1813 = vtanh.pop %v1685
        %v1814 = vtanh.pop %v1686
        %v1815 = vtanh.pop %v1687
        %v1816 = vtanh.pop %v1688
        %v1817 = vtanh.pop %v1689
        %v1818 = vtanh.pop %v1690
        %v1819 = vtanh.pop %v1691
        %v1820 = vtanh.pop %v1692
        %v1821 = vtanh.pop %v1693
        %v1822 = vtanh.pop %v1694
        %v1823 = vtanh.pop %v1695
        %v1824 = vtanh.pop %v1696
        %v1825 = vtanh.pop %v1697
        %v1826 = vtanh.pop %v1698
        %v1827 = vtanh.pop %v1699
        %v1828 = vtanh.pop %v1700
        %v1829 = vtanh.pop %v1701
        %v1830 = vtanh.pop %v1702
        %v1831 = vtanh.pop %v1703
        %v1832 = vtanh.pop %v1704
        %v1833 = vtanh.pop %v1705
        %v1834 = vtanh.pop %v1706
        %v1835 = vtanh.pop %v1707
        %v1836 = vtanh.pop %v1708
        %v1837 = vtanh.pop %v1709
        %v1838 = vtanh.pop %v1710
        %v1839 = vtanh.pop %v1711
        %v1840 = vtanh.pop %v1712
        %v1841 = vtanh.pop %v1713
        %v1842 = vtanh.pop %v1714
        %v1843 = vtanh.pop %v1715
        %v1844 = vtanh.pop %v1716
        %v1845 = vtanh.pop %v1717
        %v1846 = vtanh.pop %v1718
        %v1847 = vtanh.pop %v1719
        %v1848 = vtanh.pop %v1720
        %v1849 = vtanh.pop %v1721
        %v1850 = vtanh.pop %v1722
        %v1851 = vtanh.pop %v1723
        %v1852 = vtanh.pop %v1724
        %v1853 = vtanh.pop %v1725
        %v1854 = vtanh.pop %v1726
        %v1855 = vtanh.pop %v1727
        %v1856 = vtanh.pop %v1728
        %v1857 = vtanh.pop %v1729
        %v1858 = vtanh.pop %v1730
        %v1859 = vtanh.pop %v1731
        %v1860 = vtanh.pop %v1732
        %v1861 = vtanh.pop %v1733
        %v1862 = vtanh.pop %v1734
        %v1863 = vtanh.pop %v1735
        %v1864 = vtanh.pop %v1736
        %v1865 = vtanh.pop %v1737
        %v1866 = vtanh.pop %v1738
        %v1867 = vtanh.pop %v1739
        %v1868 = vtanh.pop %v1740
        %v1869 = vtanh.pop %v1741
        %v1870 = vtanh.pop %v1742
        %v1871 = vtanh.pop %v1743
        %v1872 = vtanh.pop %v1744
        %v1873 = vtanh.pop %v1745
        %v1874 = vtanh.pop %v1746
        %v1875 = vtanh.pop %v1747
        %v1876 = vtanh.pop %v1748
        %v1877 = vtanh.pop %v1749
        %v1878 = vtanh.pop %v1750
        %v1879 = vtanh.pop %v1751
        %v1880 = vtanh.pop %v1752
        %v1881 = vtanh.pop %v1753
        %v1882 = vtanh.pop %v1754
        %v1883 = vtanh.pop %v1755
        %v1884 = vtanh.pop %v1756
        %v1885 = vtanh.pop %v1757
        %v1886 = vtanh.pop %v1758
        %v1887 = vtanh.pop %v1759
        %v1888 = vtanh.pop %v1760
        %v1889 = vtanh.pop %v1761
        %v1890 = vtanh.pop %v1762
        %v1891 = vtanh.pop %v1763
        %v1892 = vtanh.pop %v1764
        %v1893 = vtanh.pop %v1765
        %v1894 = vtanh.pop %v1766
        %v1895 = vtanh.pop %v1767
        %v1896 = vtanh.pop %v1768
        %v1897 = vtanh.pop %v1769
        %v1898 = vtanh.pop %v1770
        %v1899 = vadd.f32 %v1771, 1.0
        %v1900 = vadd.f32 %v1772, 1.0
        %v1901 = vadd.f32 %v1773, 1.0
        %v1902 = vadd.f32 %v1774, 1.0
        %v1903 = vadd.f32 %v1775, 1.0
        %v1904 = vadd.f32 %v1776, 1.0
        %v1905 = vadd.f32 %v1777, 1.0
        %v1906 = vadd.f32 %v1778, 1.0
        %v1907 = vadd.f32 %v1779, 1.0
        %v1908 = vadd.f32 %v1780, 1.0
        %v1909 = vadd.f32 %v1781, 1.0
        %v1910 = vadd.f32 %v1782, 1.0
        %v1911 = vadd.f32 %v1783, 1.0
        %v1912 = vadd.f32 %v1784, 1.0
        %v1913 = vadd.f32 %v1785, 1.0
        %v1914 = vadd.f32 %v1786, 1.0
        %v1915 = vadd.f32 %v1787, 1.0
        %v1916 = vadd.f32 %v1788, 1.0
        %v1917 = vadd.f32 %v1789, 1.0
        %v1918 = vadd.f32 %v1790, 1.0
        %v1919 = vadd.f32 %v1791, 1.0
        %v1920 = vadd.f32 %v1792, 1.0
        %v1921 = vadd.f32 %v1793, 1.0
        %v1922 = vadd.f32 %v1794, 1.0
        %v1923 = vadd.f32 %v1795, 1.0
        %v1924 = vadd.f32 %v1796, 1.0
        %v1925 = vadd.f32 %v1797, 1.0
        %v1926 = vadd.f32 %v1798, 1.0
        %v1927 = vadd.f32 %v1799, 1.0
        %v1928 = vadd.f32 %v1800, 1.0
        %v1929 = vadd.f32 %v1801, 1.0
        %v1930 = vadd.f32 %v1802, 1.0
        %v1931 = vadd.f32 %v1803, 1.0
        %v1932 = vadd.f32 %v1804, 1.0
        %v1933 = vadd.f32 %v1805, 1.0
        %v1934 = vadd.f32 %v1806, 1.0
        %v1935 = vadd.f32 %v1807, 1.0
        %v1936 = vadd.f32 %v1808, 1.0
        %v1937 = vadd.f32 %v1809, 1.0
        %v1938 = vadd.f32 %v1810, 1.0
        %v1939 = vadd.f32 %v1811, 1.0
        %v1940 = vadd.f32 %v1812, 1.0
        %v1941 = vadd.f32 %v1813, 1.0
        %v1942 = vadd.f32 %v1814, 1.0
        %v1943 = vadd.f32 %v1815, 1.0
        %v1944 = vadd.f32 %v1816, 1.0
        %v1945 = vadd.f32 %v1817, 1.0
        %v1946 = vadd.f32 %v1818, 1.0
        %v1947 = vadd.f32 %v1819, 1.0
        %v1948 = vadd.f32 %v1820, 1.0
        %v1949 = vadd.f32 %v1821, 1.0
        %v1950 = vadd.f32 %v1822, 1.0
        %v1951 = vadd.f32 %v1823, 1.0
        %v1952 = vadd.f32 %v1824, 1.0
        %v1953 = vadd.f32 %v1825, 1.0
        %v1954 = vadd.f32 %v1826, 1.0
        %v1955 = vadd.f32 %v1827, 1.0
        %v1956 = vadd.f32 %v1828, 1.0
        %v1957 = vadd.f32 %v1829, 1.0
        %v1958 = vadd.f32 %v1830, 1.0
        %v1959 = vadd.f32 %v1831, 1.0
        %v1960 = vadd.f32 %v1832, 1.0
        %v1961 = vadd.f32 %v1833, 1.0
        %v1962 = vadd.f32 %v1834, 1.0
        %v1963 = vadd.f32 %v1835, 1.0
        %v1964 = vadd.f32 %v1836, 1.0
        %v1965 = vadd.f32 %v1837, 1.0
        %v1966 = vadd.f32 %v1838, 1.0
        %v1967 = vadd.f32 %v1839, 1.0
        %v1968 = vadd.f32 %v1840, 1.0
        %v1969 = vadd.f32 %v1841, 1.0
        %v1970 = vadd.f32 %v1842, 1.0
        %v1971 = vadd.f32 %v1843, 1.0
        %v1972 = vadd.f32 %v1844, 1.0
        %v1973 = vadd.f32 %v1845, 1.0
        %v1974 = vadd.f32 %v1846, 1.0
        %v1975 = vadd.f32 %v1847, 1.0
        %v1976 = vadd.f32 %v1848, 1.0
        %v1977 = vadd.f32 %v1849, 1.0
        %v1978 = vadd.f32 %v1850, 1.0
        %v1979 = vadd.f32 %v1851, 1.0
        %v1980 = vadd.f32 %v1852, 1.0
        %v1981 = vadd.f32 %v1853, 1.0
        %v1982 = vadd.f32 %v1854, 1.0
        %v1983 = vadd.f32 %v1855, 1.0
        %v1984 = vadd.f32 %v1856, 1.0
        %v1985 = vadd.f32 %v1857, 1.0
        %v1986 = vadd.f32 %v1858, 1.0
        %v1987 = vadd.f32 %v1859, 1.0
        %v1988 = vadd.f32 %v1860, 1.0
        %v1989 = vadd.f32 %v1861, 1.0
        %v1990 = vadd.f32 %v1862, 1.0
        %v1991 = vadd.f32 %v1863, 1.0
        %v1992 = vadd.f32 %v1864, 1.0
        %v1993 = vadd.f32 %v1865, 1.0
        %v1994 = vadd.f32 %v1866, 1.0
        %v1995 = vadd.f32 %v1867, 1.0
        %v1996 = vadd.f32 %v1868, 1.0
        %v1997 = vadd.f32 %v1869, 1.0
        %v1998 = vadd.f32 %v1870, 1.0
        %v1999 = vadd.f32 %v1871, 1.0
        %v2000 = vadd.f32 %v1872, 1.0
        %v2001 = vadd.f32 %v1873, 1.0
        %v2002 = vadd.f32 %v1874, 1.0
        %v2003 = vadd.f32 %v1875, 1.0
        %v2004 = vadd.f32 %v1876, 1.0
        %v2005 = vadd.f32 %v1877, 1.0
        %v2006 = vadd.f32 %v1878, 1.0
        %v2007 = vadd.f32 %v1879, 1.0
        %v2008 = vadd.f32 %v1880, 1.0
        %v2009 = vadd.f32 %v1881, 1.0
        %v2010 = vadd.f32 %v1882, 1.0
        %v2011 = vadd.f32 %v1883, 1.0
        %v2012 = vadd.f32 %v1884, 1.0
        %v2013 = vadd.f32 %v1885, 1.0
        %v2014 = vadd.f32 %v1886, 1.0
        %v2015 = vadd.f32 %v1887, 1.0
        %v2016 = vadd.f32 %v1888, 1.0
        %v2017 = vadd.f32 %v1889, 1.0
        %v2018 = vadd.f32 %v1890, 1.0
        %v2019 = vadd.f32 %v1891, 1.0
        %v2020 = vadd.f32 %v1892, 1.0
        %v2021 = vadd.f32 %v1893, 1.0
        %v2022 = vadd.f32 %v1894, 1.0
        %v2023 = vadd.f32 %v1895, 1.0
        %v2024 = vadd.f32 %v1896, 1.0
        %v2025 = vadd.f32 %v1897, 1.0
        %v2026 = vadd.f32 %v1898, 1.0
        %v2027 = vmul.f32 %v1003, %v1899
        %v2028 = vmul.f32 %v1004, %v1900
        %v2029 = vmul.f32 %v1005, %v1901
        %v2030 = vmul.f32 %v1006, %v1902
        %v2031 = vmul.f32 %v1007, %v1903
        %v2032 = vmul.f32 %v1008, %v1904
        %v2033 = vmul.f32 %v1009, %v1905
        %v2034 = vmul.f32 %v1010, %v1906
        %v2035 = vmul.f32 %v1011, %v1907
        %v2036 = vmul.f32 %v1012, %v1908
        %v2037 = vmul.f32 %v1013, %v1909
        %v2038 = vmul.f32 %v1014, %v1910
        %v2039 = vmul.f32 %v1015, %v1911
        %v2040 = vmul.f32 %v1016, %v1912
        %v2041 = vmul.f32 %v1017, %v1913
        %v2042 = vmul.f32 %v1018, %v1914
        %v2043 = vmul.f32 %v1019, %v1915
        %v2044 = vmul.f32 %v1020, %v1916
        %v2045 = vmul.f32 %v1021, %v1917
        %v2046 = vmul.f32 %v1022, %v1918
        %v2047 = vmul.f32 %v1023, %v1919
        %v2048 = vmul.f32 %v1024, %v1920
        %v2049 = vmul.f32 %v1025, %v1921
        %v2050 = vmul.f32 %v1026, %v1922
        %v2051 = vmul.f32 %v1027, %v1923
        %v2052 = vmul.f32 %v1028, %v1924
        %v2053 = vmul.f32 %v1029, %v1925
        %v2054 = vmul.f32 %v1030, %v1926
        %v2055 = vmul.f32 %v1031, %v1927
        %v2056 = vmul.f32 %v1032, %v1928
        %v2057 = vmul.f32 %v1033, %v1929
        %v2058 = vmul.f32 %v1034, %v1930
        %v2059 = vmul.f32 %v1035, %v1931
        %v2060 = vmul.f32 %v1036, %v1932
        %v2061 = vmul.f32 %v1037, %v1933
        %v2062 = vmul.f32 %v1038, %v1934
        %v2063 = vmul.f32 %v1039, %v1935
        %v2064 = vmul.f32 %v1040, %v1936
        %v2065 = vmul.f32 %v1041, %v1937
        %v2066 = vmul.f32 %v1042, %v1938
        %v2067 = vmul.f32 %v1043, %v1939
        %v2068 = vmul.f32 %v1044, %v1940
        %v2069 = vmul.f32 %v1045, %v1941
        %v2070 = vmul.f32 %v1046, %v1942
        %v2071 = vmul.f32 %v1047, %v1943
        %v2072 = vmul.f32 %v1048, %v1944
        %v2073 = vmul.f32 %v1049, %v1945
        %v2074 = vmul.f32 %v1050, %v1946
        %v2075 = vmul.f32 %v1051, %v1947
        %v2076 = vmul.f32 %v1052, %v1948
        %v2077 = vmul.f32 %v1053, %v1949
        %v2078 = vmul.f32 %v1054, %v1950
        %v2079 = vmul.f32 %v1055, %v1951
        %v2080 = vmul.f32 %v1056, %v1952
        %v2081 = vmul.f32 %v1057, %v1953
        %v2082 = vmul.f32 %v1058, %v1954
        %v2083 = vmul.f32 %v1059, %v1955
        %v2084 = vmul.f32 %v1060, %v1956
        %v2085 = vmul.f32 %v1061, %v1957
        %v2086 = vmul.f32 %v1062, %v1958
        %v2087 = vmul.f32 %v1063, %v1959
        %v2088 = vmul.f32 %v1064, %v1960
        %v2089 = vmul.f32 %v1065, %v1961
        %v2090 = vmul.f32 %v1066, %v1962
        %v2091 = vmul.f32 %v1067, %v1963
        %v2092 = vmul.f32 %v1068, %v1964
        %v2093 = vmul.f32 %v1069, %v1965
        %v2094 = vmul.f32 %v1070, %v1966
        %v2095 = vmul.f32 %v1071, %v1967
        %v2096 = vmul.f32 %v1072, %v1968
        %v2097 = vmul.f32 %v1073, %v1969
        %v2098 = vmul.f32 %v1074, %v1970
        %v2099 = vmul.f32 %v1075, %v1971
        %v2100 = vmul.f32 %v1076, %v1972
        %v2101 = vmul.f32 %v1077, %v1973
        %v2102 = vmul.f32 %v1078, %v1974
        %v2103 = vmul.f32 %v1079, %v1975
        %v2104 = vmul.f32 %v1080, %v1976
        %v2105 = vmul.f32 %v1081, %v1977
        %v2106 = vmul.f32 %v1082, %v1978
        %v2107 = vmul.f32 %v1083, %v1979
        %v2108 = vmul.f32 %v1084, %v1980
        %v2109 = vmul.f32 %v1085, %v1981
        %v2110 = vmul.f32 %v1086, %v1982
        %v2111 = vmul.f32 %v1087, %v1983
        %v2112 = vmul.f32 %v1088, %v1984
        %v2113 = vmul.f32 %v1089, %v1985
        %v2114 = vmul.f32 %v1090, %v1986
        %v2115 = vmul.f32 %v1091, %v1987
        %v2116 = vmul.f32 %v1092, %v1988
        %v2117 = vmul.f32 %v1093, %v1989
        %v2118 = vmul.f32 %v1094, %v1990
        %v2119 = vmul.f32 %v1095, %v1991
        %v2120 = vmul.f32 %v1096, %v1992
        %v2121 = vmul.f32 %v1097, %v1993
        %v2122 = vmul.f32 %v1098, %v1994
        %v2123 = vmul.f32 %v1099, %v1995
        %v2124 = vmul.f32 %v1100, %v1996
        %v2125 = vmul.f32 %v1101, %v1997
        %v2126 = vmul.f32 %v1102, %v1998
        %v2127 = vmul.f32 %v1103, %v1999
        %v2128 = vmul.f32 %v1104, %v2000
        %v2129 = vmul.f32 %v1105, %v2001
        %v2130 = vmul.f32 %v1106, %v2002
        %v2131 = vmul.f32 %v1107, %v2003
        %v2132 = vmul.f32 %v1108, %v2004
        %v2133 = vmul.f32 %v1109, %v2005
        %v2134 = vmul.f32 %v1110, %v2006
        %v2135 = vmul.f32 %v1111, %v2007
        %v2136 = vmul.f32 %v1112, %v2008
        %v2137 = vmul.f32 %v1113, %v2009
        %v2138 = vmul.f32 %v1114, %v2010
        %v2139 = vmul.f32 %v1115, %v2011
        %v2140 = vmul.f32 %v1116, %v2012
        %v2141 = vmul.f32 %v1117, %v2013
        %v2142 = vmul.f32 %v1118, %v2014
        %v2143 = vmul.f32 %v1119, %v2015
        %v2144 = vmul.f32 %v1120, %v2016
        %v2145 = vmul.f32 %v1121, %v2017
        %v2146 = vmul.f32 %v1122, %v2018
        %v2147 = vmul.f32 %v1123, %v2019
        %v2148 = vmul.f32 %v1124, %v2020
        %v2149 = vmul.f32 %v1125, %v2021
        %v2150 = vmul.f32 %v1126, %v2022
        %v2151 = vmul.f32 %v1127, %v2023
        %v2152 = vmul.f32 %v1128, %v2024
        %v2153 = vmul.f32 %v1129, %v2025
        %v2154 = vmul.f32 %v1130, %v2026
        %v2155 = vpack.c.bf16 %v2031, %v2027
        %v2156 = vpack.c.bf16 %v2032, %v2028
        %v2157 = vpack.c.bf16 %v2033, %v2029
        %v2158 = vpack.c.bf16 %v2034, %v2030
        %v2159 = vpack.c.bf16 %v2039, %v2035
        %v2160 = vpack.c.bf16 %v2040, %v2036
        %v2161 = vpack.c.bf16 %v2041, %v2037
        %v2162 = vpack.c.bf16 %v2042, %v2038
        %v2163 = vpack.c.bf16 %v2047, %v2043
        %v2164 = vpack.c.bf16 %v2048, %v2044
        %v2165 = vpack.c.bf16 %v2049, %v2045
        %v2166 = vpack.c.bf16 %v2050, %v2046
        %v2167 = vpack.c.bf16 %v2055, %v2051
        %v2168 = vpack.c.bf16 %v2056, %v2052
        %v2169 = vpack.c.bf16 %v2057, %v2053
        %v2170 = vpack.c.bf16 %v2058, %v2054
        %v2171 = vpack.c.bf16 %v2063, %v2059
        %v2172 = vpack.c.bf16 %v2064, %v2060
        %v2173 = vpack.c.bf16 %v2065, %v2061
        %v2174 = vpack.c.bf16 %v2066, %v2062
        %v2175 = vpack.c.bf16 %v2071, %v2067
        %v2176 = vpack.c.bf16 %v2072, %v2068
        %v2177 = vpack.c.bf16 %v2073, %v2069
        %v2178 = vpack.c.bf16 %v2074, %v2070
        %v2179 = vpack.c.bf16 %v2079, %v2075
        %v2180 = vpack.c.bf16 %v2080, %v2076
        %v2181 = vpack.c.bf16 %v2081, %v2077
        %v2182 = vpack.c.bf16 %v2082, %v2078
        %v2183 = vpack.c.bf16 %v2087, %v2083
        %v2184 = vpack.c.bf16 %v2088, %v2084
        %v2185 = vpack.c.bf16 %v2089, %v2085
        %v2186 = vpack.c.bf16 %v2090, %v2086
        %v2187 = vpack.c.bf16 %v2095, %v2091
        %v2188 = vpack.c.bf16 %v2096, %v2092
        %v2189 = vpack.c.bf16 %v2097, %v2093
        %v2190 = vpack.c.bf16 %v2098, %v2094
        %v2191 = vpack.c.bf16 %v2103, %v2099
        %v2192 = vpack.c.bf16 %v2104, %v2100
        %v2193 = vpack.c.bf16 %v2105, %v2101
        %v2194 = vpack.c.bf16 %v2106, %v2102
        %v2195 = vpack.c.bf16 %v2111, %v2107
        %v2196 = vpack.c.bf16 %v2112, %v2108
        %v2197 = vpack.c.bf16 %v2113, %v2109
        %v2198 = vpack.c.bf16 %v2114, %v2110
        %v2199 = vpack.c.bf16 %v2119, %v2115
        %v2200 = vpack.c.bf16 %v2120, %v2116
        %v2201 = vpack.c.bf16 %v2121, %v2117
        %v2202 = vpack.c.bf16 %v2122, %v2118
        %v2203 = vpack.c.bf16 %v2127, %v2123
        %v2204 = vpack.c.bf16 %v2128, %v2124
        %v2205 = vpack.c.bf16 %v2129, %v2125
        %v2206 = vpack.c.bf16 %v2130, %v2126
        %v2207 = vpack.c.bf16 %v2135, %v2131
        %v2208 = vpack.c.bf16 %v2136, %v2132
        %v2209 = vpack.c.bf16 %v2137, %v2133
        %v2210 = vpack.c.bf16 %v2138, %v2134
        %v2211 = vpack.c.bf16 %v2143, %v2139
        %v2212 = vpack.c.bf16 %v2144, %v2140
        %v2213 = vpack.c.bf16 %v2145, %v2141
        %v2214 = vpack.c.bf16 %v2146, %v2142
        %v2215 = vpack.c.bf16 %v2151, %v2147
        %v2216 = vpack.c.bf16 %v2152, %v2148
        %v2217 = vpack.c.bf16 %v2153, %v2149
        %v2218 = vpack.c.bf16 %v2154, %v2150
        %v2219 = vld [vmem:[#allocation7] sm:$0xf]
        %v2220 = vld [vmem:[#allocation7 + $0x4] sm:$0xf]
        %v2221 = vld [vmem:[#allocation7 + $0x8] sm:$0xf]
        %v2222 = vld [vmem:[#allocation7 + $0xc] sm:$0xf]
        %v2223 = vld [vmem:[#allocation7 + $0x10] sm:$0xf]
        %v2224 = vld [vmem:[#allocation7 + $0x14] sm:$0xf]
        %v2225 = vld [vmem:[#allocation7 + $0x18] sm:$0xf]
        %v2226 = vld [vmem:[#allocation7 + $0x1c] sm:$0xf]
        %v2227 = vld [vmem:[#allocation7 + $0x20] sm:$0xf]
        %v2228 = vld [vmem:[#allocation7 + $0x24] sm:$0xf]
        %v2229 = vld [vmem:[#allocation7 + $0x28] sm:$0xf]
        %v2230 = vld [vmem:[#allocation7 + $0x2c] sm:$0xf]
        %v2231 = vld [vmem:[#allocation7 + $0x30] sm:$0xf]
        %v2232 = vld [vmem:[#allocation7 + $0x34] sm:$0xf]
        %v2233 = vld [vmem:[#allocation7 + $0x38] sm:$0xf]
        %v2234 = vld [vmem:[#allocation7 + $0x3c] sm:$0xf]
        %v2235 = vld [vmem:[#allocation7 + $0x40] sm:$0xf]
        %v2236 = vld [vmem:[#allocation7 + $0x44] sm:$0xf]
        %v2237 = vld [vmem:[#allocation7 + $0x48] sm:$0xf]
        %v2238 = vld [vmem:[#allocation7 + $0x4c] sm:$0xf]
        %v2239 = vld [vmem:[#allocation7 + $0x50] sm:$0xf]
        %v2240 = vld [vmem:[#allocation7 + $0x54] sm:$0xf]
        %v2241 = vld [vmem:[#allocation7 + $0x58] sm:$0xf]
        %v2242 = vld [vmem:[#allocation7 + $0x5c] sm:$0xf]
        %v2243 = vld [vmem:[#allocation7 + $0x60] sm:$0xf]
        %v2244 = vld [vmem:[#allocation7 + $0x64] sm:$0xf]
        %v2245 = vld [vmem:[#allocation7 + $0x68] sm:$0xf]
        %v2246 = vld [vmem:[#allocation7 + $0x6c] sm:$0xf]
        %v2247 = vld [vmem:[#allocation7 + $0x70] sm:$0xf]
        %v2248 = vld [vmem:[#allocation7 + $0x74] sm:$0xf]
        %v2249 = vld [vmem:[#allocation7 + $0x78] sm:$0xf]
        %v2250 = vld [vmem:[#allocation7 + $0x7c] sm:$0xf]
        %v2251 = vld [vmem:[#allocation7 + $0x80] sm:$0xf]
        %v2252 = vld [vmem:[#allocation7 + $0x84] sm:$0xf]
        %v2253 = vld [vmem:[#allocation7 + $0x88] sm:$0xf]
        %v2254 = vld [vmem:[#allocation7 + $0x8c] sm:$0xf]
        %v2255 = vld [vmem:[#allocation7 + $0x90] sm:$0xf]
        %v2256 = vld [vmem:[#allocation7 + $0x94] sm:$0xf]
        %v2257 = vld [vmem:[#allocation7 + $0x98] sm:$0xf]
        %v2258 = vld [vmem:[#allocation7 + $0x9c] sm:$0xf]
        %v2259 = vld [vmem:[#allocation7 + $0xa0] sm:$0xf]
        %v2260 = vld [vmem:[#allocation7 + $0xa4] sm:$0xf]
        %v2261 = vld [vmem:[#allocation7 + $0xa8] sm:$0xf]
        %v2262 = vld [vmem:[#allocation7 + $0xac] sm:$0xf]
        %v2263 = vld [vmem:[#allocation7 + $0xb0] sm:$0xf]
        %v2264 = vld [vmem:[#allocation7 + $0xb4] sm:$0xf]
        %v2265 = vld [vmem:[#allocation7 + $0xb8] sm:$0xf]
        %v2266 = vld [vmem:[#allocation7 + $0xbc] sm:$0xf]
        %v2267 = vld [vmem:[#allocation7 + $0xc0] sm:$0xf]
        %v2268 = vld [vmem:[#allocation7 + $0xc4] sm:$0xf]
        %v2269 = vld [vmem:[#allocation7 + $0xc8] sm:$0xf]
        %v2270 = vld [vmem:[#allocation7 + $0xcc] sm:$0xf]
        %v2271 = vld [vmem:[#allocation7 + $0xd0] sm:$0xf]
        %v2272 = vld [vmem:[#allocation7 + $0xd4] sm:$0xf]
        %v2273 = vld [vmem:[#allocation7 + $0xd8] sm:$0xf]
        %v2274 = vld [vmem:[#allocation7 + $0xdc] sm:$0xf]
        %v2275 = vld [vmem:[#allocation7 + $0xe0] sm:$0xf]
        %v2276 = vld [vmem:[#allocation7 + $0xe4] sm:$0xf]
        %v2277 = vld [vmem:[#allocation7 + $0xe8] sm:$0xf]
        %v2278 = vld [vmem:[#allocation7 + $0xec] sm:$0xf]
        %v2279 = vld [vmem:[#allocation7 + $0xf0] sm:$0xf]
        %v2280 = vld [vmem:[#allocation7 + $0xf4] sm:$0xf]
        %v2281 = vld [vmem:[#allocation7 + $0xf8] sm:$0xf]
        %v2282 = vld [vmem:[#allocation7 + $0xfc] sm:$0xf]
        %v2283 = vld [vmem:[%s4] sm:$0x1]
        %v2285 = vlaneseq
        %v2286 = vshrl.u32 %v2285, 7
        %v2287 = vsub.s32 0, %v2286
        %v2288 = vrot.slane %v2283, %v2287
        %v2354 = vunpack.c.l.b16 %v2219
        %v2355 = vunpack.c.l.b16 %v2220
        %v2356 = vunpack.c.l.b16 %v2221
        %v2357 = vunpack.c.l.b16 %v2222
        %v2358 = vunpack.c.l.b16 %v2223
        %v2359 = vunpack.c.l.b16 %v2224
        %v2360 = vunpack.c.l.b16 %v2225
        %v2361 = vunpack.c.l.b16 %v2226
        %v2362 = vunpack.c.l.b16 %v2227
        %v2363 = vunpack.c.l.b16 %v2228
        %v2364 = vunpack.c.l.b16 %v2229
        %v2365 = vunpack.c.l.b16 %v2230
        %v2366 = vunpack.c.l.b16 %v2231
        %v2367 = vunpack.c.l.b16 %v2232
        %v2368 = vunpack.c.l.b16 %v2233
        %v2369 = vunpack.c.l.b16 %v2234
        %v2370 = vunpack.c.l.b16 %v2235
        %v2371 = vunpack.c.l.b16 %v2236
        %v2372 = vunpack.c.l.b16 %v2237
        %v2373 = vunpack.c.l.b16 %v2238
        %v2374 = vunpack.c.l.b16 %v2239
        %v2375 = vunpack.c.l.b16 %v2240
        %v2376 = vunpack.c.l.b16 %v2241
        %v2377 = vunpack.c.l.b16 %v2242
        %v2378 = vunpack.c.l.b16 %v2243
        %v2379 = vunpack.c.l.b16 %v2244
        %v2380 = vunpack.c.l.b16 %v2245
        %v2381 = vunpack.c.l.b16 %v2246
        %v2382 = vunpack.c.l.b16 %v2247
        %v2383 = vunpack.c.l.b16 %v2248
        %v2384 = vunpack.c.l.b16 %v2249
        %v2385 = vunpack.c.l.b16 %v2250
        %v2386 = vunpack.c.l.b16 %v2251
        %v2387 = vunpack.c.l.b16 %v2252
        %v2388 = vunpack.c.l.b16 %v2253
        %v2389 = vunpack.c.l.b16 %v2254
        %v2390 = vunpack.c.l.b16 %v2255
        %v2391 = vunpack.c.l.b16 %v2256
        %v2392 = vunpack.c.l.b16 %v2257
        %v2393 = vunpack.c.l.b16 %v2258
        %v2394 = vunpack.c.l.b16 %v2259
        %v2395 = vunpack.c.l.b16 %v2260
        %v2396 = vunpack.c.l.b16 %v2261
        %v2397 = vunpack.c.l.b16 %v2262
        %v2398 = vunpack.c.l.b16 %v2263
        %v2399 = vunpack.c.l.b16 %v2264
        %v2400 = vunpack.c.l.b16 %v2265
        %v2401 = vunpack.c.l.b16 %v2266
        %v2402 = vunpack.c.l.b16 %v2267
        %v2403 = vunpack.c.l.b16 %v2268
        %v2404 = vunpack.c.l.b16 %v2269
        %v2405 = vunpack.c.l.b16 %v2270
        %v2406 = vunpack.c.l.b16 %v2271
        %v2407 = vunpack.c.l.b16 %v2272
        %v2408 = vunpack.c.l.b16 %v2273
        %v2409 = vunpack.c.l.b16 %v2274
        %v2410 = vunpack.c.l.b16 %v2275
        %v2411 = vunpack.c.l.b16 %v2276
        %v2412 = vunpack.c.l.b16 %v2277
        %v2413 = vunpack.c.l.b16 %v2278
        %v2414 = vunpack.c.l.b16 %v2279
        %v2415 = vunpack.c.l.b16 %v2280
        %v2416 = vunpack.c.l.b16 %v2281
        %v2417 = vunpack.c.l.b16 %v2282
        %v2418 = vpack.c.b16 %v2355, %v2354
        %v2419 = vpack.c.b16 %v2357, %v2356
        %v2420 = vpack.c.b16 %v2359, %v2358
        %v2421 = vpack.c.b16 %v2361, %v2360
        %v2422 = vpack.c.b16 %v2363, %v2362
        %v2423 = vpack.c.b16 %v2365, %v2364
        %v2424 = vpack.c.b16 %v2367, %v2366
        %v2425 = vpack.c.b16 %v2369, %v2368
        %v2426 = vpack.c.b16 %v2371, %v2370
        %v2427 = vpack.c.b16 %v2373, %v2372
        %v2428 = vpack.c.b16 %v2375, %v2374
        %v2429 = vpack.c.b16 %v2377, %v2376
        %v2430 = vpack.c.b16 %v2379, %v2378
        %v2431 = vpack.c.b16 %v2381, %v2380
        %v2432 = vpack.c.b16 %v2383, %v2382
        %v2433 = vpack.c.b16 %v2385, %v2384
        %v2434 = vpack.c.b16 %v2387, %v2386
        %v2435 = vpack.c.b16 %v2389, %v2388
        %v2436 = vpack.c.b16 %v2391, %v2390
        %v2437 = vpack.c.b16 %v2393, %v2392
        %v2438 = vpack.c.b16 %v2395, %v2394
        %v2439 = vpack.c.b16 %v2397, %v2396
        %v2440 = vpack.c.b16 %v2399, %v2398
        %v2441 = vpack.c.b16 %v2401, %v2400
        %v2442 = vpack.c.b16 %v2403, %v2402
        %v2443 = vpack.c.b16 %v2405, %v2404
        %v2444 = vpack.c.b16 %v2407, %v2406
        %v2445 = vpack.c.b16 %v2409, %v2408
        %v2446 = vpack.c.b16 %v2411, %v2410
        %v2447 = vpack.c.b16 %v2413, %v2412
        %v2448 = vpack.c.b16 %v2415, %v2414
        %v2449 = vpack.c.b16 %v2417, %v2416
        %2482 = vmatprep.subr.bf16.mxu0 0
        %2483 = vmatpush1.bf16.msra.mxu0 %v2418
        %2484 = vmatprep.subr.bf16.mxu0 0
        %2485 = vmatpush1.bf16.msra.mxu0 %v2419
        %2486 = vmatprep.subr.bf16.mxu0 0
        %2487 = vmatpush1.bf16.msra.mxu0 %v2420
        %2488 = vmatprep.subr.bf16.mxu0 0
        %2489 = vmatpush1.bf16.msra.mxu0 %v2421
        %2490 = vmatprep.subr.bf16.mxu0 0
        %2491 = vmatpush1.bf16.msra.mxu0 %v2422
        %2492 = vmatprep.subr.bf16.mxu0 0
        %2493 = vmatpush1.bf16.msra.mxu0 %v2423
        %2494 = vmatprep.subr.bf16.mxu0 0
        %2495 = vmatpush1.bf16.msra.mxu0 %v2424
        %2496 = vmatprep.subr.bf16.mxu0 0
        %2497 = vmatpush1.bf16.msra.mxu0 %v2425
        %2498 = vmatprep.subr.bf16.mxu0 0
        %2499 = vmatpush1.bf16.msra.mxu0 %v2426
        %2500 = vmatprep.subr.bf16.mxu0 0
        %2501 = vmatpush1.bf16.msra.mxu0 %v2427
        %2502 = vmatprep.subr.bf16.mxu0 0
        %2503 = vmatpush1.bf16.msra.mxu0 %v2428
        %2504 = vmatprep.subr.bf16.mxu0 0
        %2505 = vmatpush1.bf16.msra.mxu0 %v2429
        %2506 = vmatprep.subr.bf16.mxu0 0
        %2507 = vmatpush1.bf16.msra.mxu0 %v2430
        %2508 = vmatprep.subr.bf16.mxu0 0
        %2509 = vmatpush1.bf16.msra.mxu0 %v2431
        %2510 = vmatprep.subr.bf16.mxu0 0
        %2511 = vmatpush1.bf16.msra.mxu0 %v2432
        %2512 = vmatprep.subr.bf16.mxu0 0
        %2513 = vmatpush1.bf16.msra.mxu0 %v2433
        %2514 = vmatprep.mubr.bf16.mxu0 %v2156
        %2515 = vmatmul.mubr.bf16.gmra.mrb[0].mxu0 %v2155
        %v2516 = vpop.f32.mrb[0].mxu0
        %v2517 = vadd.f32 %v2288, %v2516
        %v2518 = vpop.f32.mrb[0].mxu0
        %v2519 = vpop.f32.mrb[0].mxu0
        %v2520 = vadd.f32 %v2288, %v2519
        %v2521 = vpop.f32.mrb[0].mxu0
        %2522 = vmatprep.mubr.bf16.mxu0 %v2160
        %2523 = vmatmul.mubr.bf16.gmra.mrb[0].mxu0 %v2159
        %v2524 = vpop.f32.mrb[0].mxu0
        %v2525 = vadd.f32 %v2288, %v2524
        %v2526 = vpop.f32.mrb[0].mxu0
        %v2527 = vpop.f32.mrb[0].mxu0
        %v2528 = vadd.f32 %v2288, %v2527
        %v2529 = vpop.f32.mrb[0].mxu0
        %2530 = vmatprep.mubr.bf16.mxu0 %v2164
        %2531 = vmatmul.mubr.bf16.gmra.mrb[0].mxu0 %v2163
        %v2532 = vpop.f32.mrb[0].mxu0
        %v2533 = vadd.f32 %v2288, %v2532
        %v2534 = vpop.f32.mrb[0].mxu0
        %v2535 = vpop.f32.mrb[0].mxu0
        %v2536 = vadd.f32 %v2288, %v2535
        %v2537 = vpop.f32.mrb[0].mxu0
        %2538 = vmatprep.mubr.bf16.mxu0 %v2168
        %2539 = vmatmul.mubr.bf16.gmra.mrb[0].mxu0 %v2167
        %v2540 = vpop.f32.mrb[0].mxu0
        %v2541 = vadd.f32 %v2288, %v2540
        %v2542 = vpop.f32.mrb[0].mxu0
        %v2543 = vpop.f32.mrb[0].mxu0
        %v2544 = vadd.f32 %v2288, %v2543
        %v2545 = vpop.f32.mrb[0].mxu0
        %2546 = vmatprep.mubr.bf16.mxu0 %v2172
        %2547 = vmatmul.mubr.bf16.gmra.mrb[0].mxu0 %v2171
        %v2548 = vpop.f32.mrb[0].mxu0
        %v2549 = vadd.f32 %v2288, %v2548
        %v2550 = vpop.f32.mrb[0].mxu0
        %v2551 = vpop.f32.mrb[0].mxu0
        %v2552 = vadd.f32 %v2288, %v2551
        %v2553 = vpop.f32.mrb[0].mxu0
        %2554 = vmatprep.mubr.bf16.mxu0 %v2176
        %2555 = vmatmul.mubr.bf16.gmra.mrb[0].mxu0 %v2175
        %v2556 = vpop.f32.mrb[0].mxu0
        %v2557 = vadd.f32 %v2288, %v2556
        %v2558 = vpop.f32.mrb[0].mxu0
        %v2559 = vpop.f32.mrb[0].mxu0
        %v2560 = vadd.f32 %v2288, %v2559
        %v2561 = vpop.f32.mrb[0].mxu0
        %2562 = vmatprep.mubr.bf16.mxu0 %v2180
        %2563 = vmatmul.mubr.bf16.gmra.mrb[0].mxu0 %v2179
        %v2564 = vpop.f32.mrb[0].mxu0
        %v2565 = vadd.f32 %v2288, %v2564
        %v2566 = vpop.f32.mrb[0].mxu0
        %v2567 = vpop.f32.mrb[0].mxu0
        %v2568 = vadd.f32 %v2288, %v2567
        %v2569 = vpop.f32.mrb[0].mxu0
        %2570 = vmatprep.mubr.bf16.mxu0 %v2184
        %2571 = vmatmul.mubr.bf16.gmra.mrb[0].mxu0 %v2183
        %v2572 = vpop.f32.mrb[0].mxu0
        %v2573 = vadd.f32 %v2288, %v2572
        %v2574 = vpop.f32.mrb[0].mxu0
        %v2575 = vpop.f32.mrb[0].mxu0
        %v2576 = vadd.f32 %v2288, %v2575
        %v2577 = vpop.f32.mrb[0].mxu0
        %2578 = vmatprep.mubr.bf16.mxu0 %v2188
        %2579 = vmatmul.mubr.bf16.gmra.mrb[0].mxu0 %v2187
        %v2580 = vpop.f32.mrb[0].mxu0
        %v2581 = vadd.f32 %v2288, %v2580
        %v2582 = vpop.f32.mrb[0].mxu0
        %v2583 = vpop.f32.mrb[0].mxu0
        %v2584 = vadd.f32 %v2288, %v2583
        %v2585 = vpop.f32.mrb[0].mxu0
        %2586 = vmatprep.mubr.bf16.mxu0 %v2192
        %2587 = vmatmul.mubr.bf16.gmra.mrb[0].mxu0 %v2191
        %v2588 = vpop.f32.mrb[0].mxu0
        %v2589 = vadd.f32 %v2288, %v2588
        %v2590 = vpop.f32.mrb[0].mxu0
        %v2591 = vpop.f32.mrb[0].mxu0
        %v2592 = vadd.f32 %v2288, %v2591
        %v2593 = vpop.f32.mrb[0].mxu0
        %2594 = vmatprep.mubr.bf16.mxu0 %v2196
        %2595 = vmatmul.mubr.bf16.gmra.mrb[0].mxu0 %v2195
        %v2596 = vpop.f32.mrb[0].mxu0
        %v2597 = vadd.f32 %v2288, %v2596
        %v2598 = vpop.f32.mrb[0].mxu0
        %v2599 = vpop.f32.mrb[0].mxu0
        %v2600 = vadd.f32 %v2288, %v2599
        %v2601 = vpop.f32.mrb[0].mxu0
        %2602 = vmatprep.mubr.bf16.mxu0 %v2200
        %2603 = vmatmul.mubr.bf16.gmra.mrb[0].mxu0 %v2199
        %v2604 = vpop.f32.mrb[0].mxu0
        %v2605 = vadd.f32 %v2288, %v2604
        %v2606 = vpop.f32.mrb[0].mxu0
        %v2607 = vpop.f32.mrb[0].mxu0
        %v2608 = vadd.f32 %v2288, %v2607
        %v2609 = vpop.f32.mrb[0].mxu0
        %2610 = vmatprep.mubr.bf16.mxu0 %v2204
        %2611 = vmatmul.mubr.bf16.gmra.mrb[0].mxu0 %v2203
        %v2612 = vpop.f32.mrb[0].mxu0
        %v2613 = vadd.f32 %v2288, %v2612
        %v2614 = vpop.f32.mrb[0].mxu0
        %v2615 = vpop.f32.mrb[0].mxu0
        %v2616 = vadd.f32 %v2288, %v2615
        %v2617 = vpop.f32.mrb[0].mxu0
        %2618 = vmatprep.mubr.bf16.mxu0 %v2208
        %2619 = vmatmul.mubr.bf16.gmra.mrb[0].mxu0 %v2207
        %v2620 = vpop.f32.mrb[0].mxu0
        %v2621 = vadd.f32 %v2288, %v2620
        %v2622 = vpop.f32.mrb[0].mxu0
        %v2623 = vpop.f32.mrb[0].mxu0
        %v2624 = vadd.f32 %v2288, %v2623
        %v2625 = vpop.f32.mrb[0].mxu0
        %2626 = vmatprep.mubr.bf16.mxu0 %v2212
        %2627 = vmatmul.mubr.bf16.gmra.mrb[0].mxu0 %v2211
        %v2628 = vpop.f32.mrb[0].mxu0
        %v2629 = vadd.f32 %v2288, %v2628
        %v2630 = vpop.f32.mrb[0].mxu0
        %v2631 = vpop.f32.mrb[0].mxu0
        %v2632 = vadd.f32 %v2288, %v2631
        %v2633 = vpop.f32.mrb[0].mxu0
        %2634 = vmatprep.mubr.bf16.mxu0 %v2216
        %2635 = vmatmul.mubr.bf16.gmra.mrb[0].mxu0 %v2215
        %v2636 = vpop.f32.mrb[0].mxu0
        %v2637 = vadd.f32 %v2288, %v2636
        %v2638 = vpop.f32.mrb[0].mxu0
        %v2639 = vpop.f32.mrb[0].mxu0
        %v2640 = vadd.f32 %v2288, %v2639
        %v2641 = vpop.f32.mrb[0].mxu0
        %2642 = vdwg.mxu0
        %2643 = vmatprep.subr.bf16.mxu0 0
        %2644 = vmatpush1.bf16.msra.mxu0 %v2434
        %2645 = vmatprep.subr.bf16.mxu0 0
        %2646 = vmatpush1.bf16.msra.mxu0 %v2435
        %2647 = vmatprep.subr.bf16.mxu0 0
        %2648 = vmatpush1.bf16.msra.mxu0 %v2436
        %2649 = vmatprep.subr.bf16.mxu0 0
        %2650 = vmatpush1.bf16.msra.mxu0 %v2437
        %2651 = vmatprep.subr.bf16.mxu0 0
        %2652 = vmatpush1.bf16.msra.mxu0 %v2438
        %2653 = vmatprep.subr.bf16.mxu0 0
        %2654 = vmatpush1.bf16.msra.mxu0 %v2439
        %2655 = vmatprep.subr.bf16.mxu0 0
        %2656 = vmatpush1.bf16.msra.mxu0 %v2440
        %2657 = vmatprep.subr.bf16.mxu0 0
        %2658 = vmatpush1.bf16.msra.mxu0 %v2441
        %2659 = vmatprep.subr.bf16.mxu0 0
        %2660 = vmatpush1.bf16.msra.mxu0 %v2442
        %2661 = vmatprep.subr.bf16.mxu0 0
        %2662 = vmatpush1.bf16.msra.mxu0 %v2443
        %2663 = vmatprep.subr.bf16.mxu0 0
        %2664 = vmatpush1.bf16.msra.mxu0 %v2444
        %2665 = vmatprep.subr.bf16.mxu0 0
        %2666 = vmatpush1.bf16.msra.mxu0 %v2445
        %2667 = vmatprep.subr.bf16.mxu0 0
        %2668 = vmatpush1.bf16.msra.mxu0 %v2446
        %2669 = vmatprep.subr.bf16.mxu0 0
        %2670 = vmatpush1.bf16.msra.mxu0 %v2447
        %2671 = vmatprep.subr.bf16.mxu0 0
        %2672 = vmatpush1.bf16.msra.mxu0 %v2448
        %2673 = vmatprep.subr.bf16.mxu0 0
        %2674 = vmatpush1.bf16.msra.mxu0 %v2449
        %2675 = vmatprep.mubr.bf16.mxu0 %v2158
        %2676 = vmatmul.mubr.bf16.gmra.mrb[0].mxu0 %v2157
        %v2677 = vpop.f32.mrb[0].mxu0
        %v2678 = vadd.f32 %v2517, %v2677
        %v2679 = vpop.f32.mrb[0].mxu0
        %v2680 = vpop.f32.mrb[0].mxu0
        %v2681 = vadd.f32 %v2520, %v2680
        %v2682 = vpop.f32.mrb[0].mxu0
        %2683 = vmatprep.mubr.bf16.mxu0 %v2162
        %2684 = vmatmul.mubr.bf16.gmra.mrb[0].mxu0 %v2161
        %v2685 = vpop.f32.mrb[0].mxu0
        %v2686 = vadd.f32 %v2525, %v2685
        %v2687 = vpop.f32.mrb[0].mxu0
        %v2688 = vpop.f32.mrb[0].mxu0
        %v2689 = vadd.f32 %v2528, %v2688
        %v2690 = vpop.f32.mrb[0].mxu0
        %2691 = vmatprep.mubr.bf16.mxu0 %v2166
        %2692 = vmatmul.mubr.bf16.gmra.mrb[0].mxu0 %v2165
        %v2693 = vpop.f32.mrb[0].mxu0
        %v2694 = vadd.f32 %v2533, %v2693
        %v2695 = vpop.f32.mrb[0].mxu0
        %v2696 = vpop.f32.mrb[0].mxu0
        %v2697 = vadd.f32 %v2536, %v2696
        %v2698 = vpop.f32.mrb[0].mxu0
        %2699 = vmatprep.mubr.bf16.mxu0 %v2170
        %2700 = vmatmul.mubr.bf16.gmra.mrb[0].mxu0 %v2169
        %v2701 = vpop.f32.mrb[0].mxu0
        %v2702 = vadd.f32 %v2541, %v2701
        %v2703 = vpop.f32.mrb[0].mxu0
        %v2704 = vpop.f32.mrb[0].mxu0
        %v2705 = vadd.f32 %v2544, %v2704
        %v2706 = vpop.f32.mrb[0].mxu0
        %2707 = vmatprep.mubr.bf16.mxu0 %v2174
        %2708 = vmatmul.mubr.bf16.gmra.mrb[0].mxu0 %v2173
        %v2709 = vpop.f32.mrb[0].mxu0
        %v2710 = vadd.f32 %v2549, %v2709
        %v2711 = vpop.f32.mrb[0].mxu0
        %v2712 = vpop.f32.mrb[0].mxu0
        %v2713 = vadd.f32 %v2552, %v2712
        %v2714 = vpop.f32.mrb[0].mxu0
        %2715 = vmatprep.mubr.bf16.mxu0 %v2178
        %2716 = vmatmul.mubr.bf16.gmra.mrb[0].mxu0 %v2177
        %v2717 = vpop.f32.mrb[0].mxu0
        %v2718 = vadd.f32 %v2557, %v2717
        %v2719 = vpop.f32.mrb[0].mxu0
        %v2720 = vpop.f32.mrb[0].mxu0
        %v2721 = vadd.f32 %v2560, %v2720
        %v2722 = vpop.f32.mrb[0].mxu0
        %2723 = vmatprep.mubr.bf16.mxu0 %v2182
        %2724 = vmatmul.mubr.bf16.gmra.mrb[0].mxu0 %v2181
        %v2725 = vpop.f32.mrb[0].mxu0
        %v2726 = vadd.f32 %v2565, %v2725
        %v2727 = vpop.f32.mrb[0].mxu0
        %v2728 = vpop.f32.mrb[0].mxu0
        %v2729 = vadd.f32 %v2568, %v2728
        %v2730 = vpop.f32.mrb[0].mxu0
        %2731 = vmatprep.mubr.bf16.mxu0 %v2186
        %2732 = vmatmul.mubr.bf16.gmra.mrb[0].mxu0 %v2185
        %v2733 = vpop.f32.mrb[0].mxu0
        %v2734 = vadd.f32 %v2573, %v2733
        %v2735 = vpop.f32.mrb[0].mxu0
        %v2736 = vpop.f32.mrb[0].mxu0
        %v2737 = vadd.f32 %v2576, %v2736
        %v2738 = vpop.f32.mrb[0].mxu0
        %2739 = vmatprep.mubr.bf16.mxu0 %v2190
        %2740 = vmatmul.mubr.bf16.gmra.mrb[0].mxu0 %v2189
        %v2741 = vpop.f32.mrb[0].mxu0
        %v2742 = vadd.f32 %v2581, %v2741
        %v2743 = vpop.f32.mrb[0].mxu0
        %v2744 = vpop.f32.mrb[0].mxu0
        %v2745 = vadd.f32 %v2584, %v2744
        %v2746 = vpop.f32.mrb[0].mxu0
        %2747 = vmatprep.mubr.bf16.mxu0 %v2194
        %2748 = vmatmul.mubr.bf16.gmra.mrb[0].mxu0 %v2193
        %v2749 = vpop.f32.mrb[0].mxu0
        %v2750 = vadd.f32 %v2589, %v2749
        %v2751 = vpop.f32.mrb[0].mxu0
        %v2752 = vpop.f32.mrb[0].mxu0
        %v2753 = vadd.f32 %v2592, %v2752
        %v2754 = vpop.f32.mrb[0].mxu0
        %2755 = vmatprep.mubr.bf16.mxu0 %v2198
        %2756 = vmatmul.mubr.bf16.gmra.mrb[0].mxu0 %v2197
        %v2757 = vpop.f32.mrb[0].mxu0
        %v2758 = vadd.f32 %v2597, %v2757
        %v2759 = vpop.f32.mrb[0].mxu0
        %v2760 = vpop.f32.mrb[0].mxu0
        %v2761 = vadd.f32 %v2600, %v2760
        %v2762 = vpop.f32.mrb[0].mxu0
        %2763 = vmatprep.mubr.bf16.mxu0 %v2202
        %2764 = vmatmul.mubr.bf16.gmra.mrb[0].mxu0 %v2201
        %v2765 = vpop.f32.mrb[0].mxu0
        %v2766 = vadd.f32 %v2605, %v2765
        %v2767 = vpop.f32.mrb[0].mxu0
        %v2768 = vpop.f32.mrb[0].mxu0
        %v2769 = vadd.f32 %v2608, %v2768
        %v2770 = vpop.f32.mrb[0].mxu0
        %2771 = vmatprep.mubr.bf16.mxu0 %v2206
        %2772 = vmatmul.mubr.bf16.gmra.mrb[0].mxu0 %v2205
        %v2773 = vpop.f32.mrb[0].mxu0
        %v2774 = vadd.f32 %v2613, %v2773
        %v2775 = vpop.f32.mrb[0].mxu0
        %v2776 = vpop.f32.mrb[0].mxu0
        %v2777 = vadd.f32 %v2616, %v2776
        %v2778 = vpop.f32.mrb[0].mxu0
        %2779 = vmatprep.mubr.bf16.mxu0 %v2210
        %2780 = vmatmul.mubr.bf16.gmra.mrb[0].mxu0 %v2209
        %v2781 = vpop.f32.mrb[0].mxu0
        %v2782 = vadd.f32 %v2621, %v2781
        %v2783 = vpop.f32.mrb[0].mxu0
        %v2784 = vpop.f32.mrb[0].mxu0
        %v2785 = vadd.f32 %v2624, %v2784
        %v2786 = vpop.f32.mrb[0].mxu0
        %2787 = vmatprep.mubr.bf16.mxu0 %v2214
        %2788 = vmatmul.mubr.bf16.gmra.mrb[0].mxu0 %v2213
        %v2789 = vpop.f32.mrb[0].mxu0
        %v2790 = vadd.f32 %v2629, %v2789
        %v2791 = vpop.f32.mrb[0].mxu0
        %v2792 = vpop.f32.mrb[0].mxu0
        %v2793 = vadd.f32 %v2632, %v2792
        %v2794 = vpop.f32.mrb[0].mxu0
        %2795 = vmatprep.mubr.bf16.mxu0 %v2218
        %2796 = vmatmul.mubr.bf16.gmra.mrb[0].mxu0 %v2217
        %v2797 = vpop.f32.mrb[0].mxu0
        %v2798 = vadd.f32 %v2637, %v2797
        %v2799 = vpop.f32.mrb[0].mxu0
        %v2800 = vpop.f32.mrb[0].mxu0
        %v2801 = vadd.f32 %v2640, %v2800
        %v2802 = vpop.f32.mrb[0].mxu0
        %2803 = vdwg.mxu0
        %2804 = vst [vmem:[%s271] sm:$0xff] %v2678
        %2805 = vst [vmem:[%s271 + $0x8] sm:$0xff] %v2681
        %2806 = vst [vmem:[%s271 + $0x10] sm:$0xff] %v2686
        %2807 = vst [vmem:[%s271 + $0x18] sm:$0xff] %v2689
        %2808 = vst [vmem:[%s271 + $0x20] sm:$0xff] %v2694
        %2809 = vst [vmem:[%s271 + $0x28] sm:$0xff] %v2697
        %2810 = vst [vmem:[%s271 + $0x30] sm:$0xff] %v2702
        %2811 = vst [vmem:[%s271 + $0x38] sm:$0xff] %v2705
        %2812 = vst [vmem:[%s271 + $0x40] sm:$0xff] %v2710
        %2813 = vst [vmem:[%s271 + $0x48] sm:$0xff] %v2713
        %2814 = vst [vmem:[%s271 + $0x50] sm:$0xff] %v2718
        %2815 = vst [vmem:[%s271 + $0x58] sm:$0xff] %v2721
        %2816 = vst [vmem:[%s271 + $0x60] sm:$0xff] %v2726
        %2817 = vst [vmem:[%s271 + $0x68] sm:$0xff] %v2729
        %2818 = vst [vmem:[%s271 + $0x70] sm:$0xff] %v2734
        %2819 = vst [vmem:[%s271 + $0x78] sm:$0xff] %v2737
        %2820 = vst [vmem:[%s271 + $0x80] sm:$0xff] %v2742
        %2821 = vst [vmem:[%s271 + $0x88] sm:$0xff] %v2745
        %2822 = vst [vmem:[%s271 + $0x90] sm:$0xff] %v2750
        %2823 = vst [vmem:[%s271 + $0x98] sm:$0xff] %v2753
        %2824 = vst [vmem:[%s271 + $0xa0] sm:$0xff] %v2758
        %2825 = vst [vmem:[%s271 + $0xa8] sm:$0xff] %v2761
        %2826 = vst [vmem:[%s271 + $0xb0] sm:$0xff] %v2766
        %2827 = vst [vmem:[%s271 + $0xb8] sm:$0xff] %v2769
        %2828 = vst [vmem:[%s271 + $0xc0] sm:$0xff] %v2774
        %2829 = vst [vmem:[%s271 + $0xc8] sm:$0xff] %v2777
        %2830 = vst [vmem:[%s271 + $0xd0] sm:$0xff] %v2782
        %2831 = vst [vmem:[%s271 + $0xd8] sm:$0xff] %v2785
        %2832 = vst [vmem:[%s271 + $0xe0] sm:$0xff] %v2790
        %2833 = vst [vmem:[%s271 + $0xe8] sm:$0xff] %v2793
        %2834 = vst [vmem:[%s271 + $0xf0] sm:$0xff] %v2798
        %2835 = vst [vmem:[%s271 + $0xf8] sm:$0xff] %v2801
        %s2836 = sand.u32 %s141, 1
        %s2837 = scalar_lea.sflag [#allocation4], %s2836
        %s2838 = sand.u32 %s141, 1
        %s2839 = smul.addr %s2838, 256
        %s2840 = scalar_lea.vmem [#allocation8], %s2839
        // Predicated region
        $region53: #{tpu_custom_call.1} parent=39 // pred_check
          %p2841 = pneg %p151
        $region54: #{tpu_custom_call.1} parent=39 // pred_check_branch
          %2843 = sbr.rel (%p2841) target = $region56
        $region55: #{tpu_custom_call.1} parent=39 // pred_region
          %s2844 = smul.u32 32, %s23
          %s2846 = ssub.s32 4096, 4096
          %2847 = vsyncadd %s2837, %s2846
          %s2848 = smul.addr %s2844, 128
          %s2849 = scalar_lea.hbm %s5, %s2848
          %s2850 = sshll.u32 %s2840, 4
          %s2851 = int_to_ptr.vmem [resolvable:$true] %s2850
          %2856 = dma.vmem_to_hbm [thread:$0]  %s2851, 4096, %s2849, %s2837, 128, 128, 8
        $region56: #{tpu_custom_call.1} parent=39 // pred_fallthru
          _
      $region40: #{tpu_custom_call.1} parent=5 // pred_fallthru
        _
      %p2857 = scmp.le.s32.totalorder 2, %s18
      // Predicated region
      $region57: #{tpu_custom_call.1} parent=5 // pred_check
        %p2858 = pneg %p2857
      $region58: #{tpu_custom_call.1} parent=5 // pred_check_branch
        %2860 = sbr.rel (%p2858) target = $region60
      $region59: #{tpu_custom_call.1} parent=5 // pred_region
        %s2861 = ssub.s32 %s18, 2
        // Predicated region
        $region61: #{tpu_custom_call.1} parent=59 // pred_check
          %p2862 = pneg %p157
        $region62: #{tpu_custom_call.1} parent=59 // pred_check_branch
          %2864 = sbr.rel (%p2862) target = $region64
        $region63: #{tpu_custom_call.1} parent=59 // pred_region
          %s2865 = sand.u32 %s142, 1
          %s2866 = scalar_lea.sflag [#allocation4], %s2865
          %s2867 = sand.u32 %s142, 1
          %s2868 = smul.addr %s2867, 256
          %s2869 = scalar_lea.vmem [#allocation8], %s2868
          %2870 = dma.done %s2866, 4096
        $region64: #{tpu_custom_call.1} parent=59 // pred_fallthru
          _
      $region60: #{tpu_custom_call.1} parent=5 // pred_fallthru
        _
    $region6: #{tpu_custom_call.1} parent=1 // loop_footer
      %s22 = sadd.s32 1, %s18
    $region7: #{tpu_custom_call.1} parent=1 // loop_footer_branch
      %17 = sbr.rel target = $region3
    $region8: #{tpu_custom_call.1} parent=1 // loop_exit
      _
    %2871 = vsyncpa [#allocation3], 1
    %s2872 = scalar_lea.sflag [#allocation3], 1
    %2873 = vsyncpa %s2872, 1
    %2874 = vsyncpa [#allocation6], 1
    %2875 = vsyncpa [#allocation4], 1
    %s2876 = scalar_lea.sflag [#allocation4], 1
    %2877 = vsyncpa %s2876, 1

// kernel: tpu_custom_call.1
$region0: #{tpu_custom_call.1}
  #allocation0 [shape = 'u32[]', space=smem, size = 0x4, offset = 0x4, fixed_abs, tag = 'smem constant byte address 0x4 - core index']
  #allocation1 [shape = 'u32[144,128]{1,0:T(1,128)}', space=vmem, size = 0x12000, scoped, tag = 'internal scratch']
  %s0 = inlined_call_operand.hbm [shape: bf16[512,128], index: 0, kind: input, shape index: {}]
  %s1 = inlined_call_operand.hbm [shape: bf16[128,512], index: 1, kind: input, shape index: {}]
  %s2 = inlined_call_operand.vmem [shape: f32[1,512], index: 2, kind: input, shape index: {}]
  %s3 = inlined_call_operand.hbm [shape: bf16[512,128], index: 3, kind: input, shape index: {}]
  %s4 = inlined_call_operand.vmem [shape: f32[1,128], index: 4, kind: input, shape index: {}]
  %s5 = inlined_call_operand.hbm [shape: f32[512,128], index: 5, kind: output, shape index: {}]
  %s6 = sld [smem:[#allocation0]]
  $region65: #{tpu_custom_call.1} parent=0
    _
  %s8 = ssub.s32 1, %s6
  %s9 = scalar_select 0, %s8, %s6
  $region1: #{tpu_custom_call.1} parent=0
    #allocation2 [shape = 'u8[131072]{0}', space=vmem, size = 0x20000, scoped, tag = 'input window, operand 0']
    #allocation3 [shape = 's32[2]{0}', space=sflag, size = 0x8, scoped, tag = 'scoped memory for tpu_custom_call.1']
    #allocation4 [shape = 's32[2]{0}', space=sflag, size = 0x8, scoped, tag = 'scoped memory for tpu_custom_call.1']
    #allocation5 [shape = 'u8[131072]{0}', space=vmem, size = 0x20000, scoped, tag = 'input window, operand 1, single buffered']
    #allocation6 [shape = 's32[1]{0}', space=sflag, size = 0x4, scoped, tag = 'scoped memory for tpu_custom_call.1']
    #allocation7 [shape = 'u8[131072]{0}', space=vmem, size = 0x20000, scoped, tag = 'input window, operand 3, single buffered']
    #allocation8 [shape = 'u8[262144]{0}', space=vmem, size = 0x40000, scoped, tag = 'output window, operand 0']
    %10 = vsyncpa [#allocation3], 0
    %s11 = scalar_lea.sflag [#allocation3], 1
    %12 = vsyncpa %s11, 0
    %13 = vsyncpa [#allocation6], 0
    %14 = vsyncpa [#allocation4], 0
    %s15 = scalar_lea.sflag [#allocation4], 1
    %16 = vsyncpa %s15, 0
    loop: start=0, step=1, limit=4
    $region2: #{tpu_custom_call.1} parent=1 // loop_pre_header
      _
    $region3: #{tpu_custom_call.1} parent=1 // loop_header
      %s18 = sphi 0, %s22
      %p19 = scmp.ge.s32.totalorder %s18, 4
      %s28 = sphi 0, %s30
      %s31 = sphi 0, %s28
      %s32 = sphi 0, %s31
      %s48 = sphi 0, %s32
      %s52 = sphi 0, %s52
      %s54 = sphi 0, %s52
      %s55 = sphi 0, %s54
      %s69 = sphi 0, %s55
      %s73 = sphi 0, %s73
      %s75 = sphi 0, %s73
      %s76 = sphi 0, %s75
      %s90 = sphi 0, %s76
      %s94 = sphi 0, %s94
      %s96 = sphi 0, %s94
      %s97 = sphi 0, %s96
      %s111 = sphi 0, %s97
      %s115 = sphi 0, %s115
      %s117 = sphi 0, %s115
      %s118 = sphi 0, %s117
      %s132 = sphi 0, %s118
      %s138 = sphi 0, %s140
      %s141 = sphi 0, %s138
      %s142 = sphi 0, %s141
      %s158 = sphi 0, %s142
    $region4: #{tpu_custom_call.1} parent=1 // loop_header_branch
      %21 = sbr.rel (%p19) target = $region8
    $region5: #{tpu_custom_call.1} parent=1 // loop_body
      %s23 = ssub.s32 %s18, 1
      %s24 = ssub.s32 %s18, 2
      %s25 = sadd.s32 %s18, 1
      %s26 = ssub.s32 %s18, %s25
      %p27 = scmp.eq.s32.totalorder %s26, 0
      %s29 = sadd.s32 %s28, 1
      %s30 = scalar_select %p27, %s28, %s29
      %p33 = pneg %p27
      %p34 = scmp.eq.s32.totalorder %s18, 1
      %p35 = por %p33, %p34
      %p36 = scmp.ne.s32.totalorder %s28, %s31
      %p37 = scmp.eq.s32.totalorder %s18, 0
      %p38 = por %p36, %p37
      %p39 = scmp.ne.s32.totalorder %s28, %s31
      %p40 = scmp.eq.s32.totalorder %s23, 1
      %p41 = por %p39, %p40
      %p42 = scmp.ne.s32.totalorder %s31, %s32
      %p43 = scmp.eq.s32.totalorder %s23, 0
      %p44 = por %p42, %p43
      %p45 = scmp.ne.s32.totalorder %s31, %s32
      %p46 = scmp.eq.s32.totalorder %s24, 1
      %p47 = por %p45, %p46
      %p49 = scmp.ne.s32.totalorder %s32, %s48
      %p50 = scmp.eq.s32.totalorder %s24, 0
      %p51 = por %p49, %p50
      %s53 = sadd.s32 %s52, 1
      %p56 = scmp.eq.s32.totalorder %s18, 1
      %p57 = scmp.ne.s32.totalorder %s52, %s54
      %p58 = scmp.eq.s32.totalorder %s18, 0
      %p59 = por %p57, %p58
      %p60 = scmp.ne.s32.totalorder %s52, %s54
      %p61 = scmp.eq.s32.totalorder %s23, 1
      %p62 = por %p60, %p61
      %p63 = scmp.ne.s32.totalorder %s54, %s55
      %p64 = scmp.eq.s32.totalorder %s23, 0
      %p65 = por %p63, %p64
      %p66 = scmp.ne.s32.totalorder %s54, %s55
      %p67 = scmp.eq.s32.totalorder %s24, 1
      %p68 = por %p66, %p67
      %p70 = scmp.ne.s32.totalorder %s55, %s69
      %p71 = scmp.eq.s32.totalorder %s24, 0
      %p72 = por %p70, %p71
      %s74 = sadd.s32 %s73, 1
      %p77 = scmp.eq.s32.totalorder %s18, 1
      %p78 = scmp.ne.s32.totalorder %s73, %s75
      %p79 = scmp.eq.s32.totalorder %s18, 0
      %p80 = por %p78, %p79
      %p81 = scmp.ne.s32.totalorder %s73, %s75
      %p82 = scmp.eq.s32.totalorder %s23, 1
      %p83 = por %p81, %p82
      %p84 = scmp.ne.s32.totalorder %s75, %s76
      %p85 = scmp.eq.s32.totalorder %s23, 0
      %p86 = por %p84, %p85
      %p87 = scmp.ne.s32.totalorder %s75, %s76
      %p88 = scmp.eq.s32.totalorder %s24, 1
      %p89 = por %p87, %p88
      %p91 = scmp.ne.s32.totalorder %s76, %s90
      %p92 = scmp.eq.s32.totalorder %s24, 0
      %p93 = por %p91, %p92
      %s95 = sadd.s32 %s94, 1
      %p98 = scmp.eq.s32.totalorder %s18, 1
      %p99 = scmp.ne.s32.totalorder %s94, %s96
      %p100 = scmp.eq.s32.totalorder %s18, 0
      %p101 = por %p99, %p100
      %p102 = scmp.ne.s32.totalorder %s94, %s96
      %p103 = scmp.eq.s32.totalorder %s23, 1
      %p104 = por %p102, %p103
      %p105 = scmp.ne.s32.totalorder %s96, %s97
      %p106 = scmp.eq.s32.totalorder %s23, 0
      %p107 = por %p105, %p106
      %p108 = scmp.ne.s32.totalorder %s96, %s97
      %p109 = scmp.eq.s32.totalorder %s24, 1
      %p110 = por %p108, %p109
      %p112 = scmp.ne.s32.totalorder %s97, %s111
      %p113 = scmp.eq.s32.totalorder %s24, 0
      %p114 = por %p112, %p113
      %s116 = sadd.s32 %s115, 1
      %p119 = scmp.eq.s32.totalorder %s18, 1
      %p120 = scmp.ne.s32.totalorder %s115, %s117
      %p121 = scmp.eq.s32.totalorder %s18, 0
      %p122 = por %p120, %p121
      %p123 = scmp.ne.s32.totalorder %s115, %s117
      %p124 = scmp.eq.s32.totalorder %s23, 1
      %p125 = por %p123, %p124
      %p126 = scmp.ne.s32.totalorder %s117, %s118
      %p127 = scmp.eq.s32.totalorder %s23, 0
      %p128 = por %p126, %p127
      %p129 = scmp.ne.s32.totalorder %s117, %s118
      %p130 = scmp.eq.s32.totalorder %s24, 1
      %p131 = por %p129, %p130
      %p133 = scmp.ne.s32.totalorder %s118, %s132
      %p134 = scmp.eq.s32.totalorder %s24, 0
      %p135 = por %p133, %p134
      %s136 = ssub.s32 %s18, %s25
      %p137 = scmp.eq.s32.totalorder %s136, 0
      %s139 = sadd.s32 %s138, 1
      %s140 = scalar_select %p137, %s138, %s139
      %p143 = pneg %p137
      %p144 = scmp.eq.s32.totalorder %s18, 1
      %p145 = por %p143, %p144
      %p146 = scmp.ne.s32.totalorder %s138, %s141
      %p147 = scmp.eq.s32.totalorder %s18, 0
      %p148 = por %p146, %p147
      %p149 = scmp.ne.s32.totalorder %s138, %s141
      %p150 = scmp.eq.s32.totalorder %s23, 1
      %p151 = por %p149, %p150
      %p152 = scmp.ne.s32.totalorder %s141, %s142
      %p153 = scmp.eq.s32.totalorder %s23, 0
      %p154 = por %p152, %p153
      %p155 = scmp.ne.s32.totalorder %s141, %s142
      %p156 = scmp.eq.s32.totalorder %s24, 1
      %p157 = por %p155, %p156
      %p159 = scmp.ne.s32.totalorder %s142, %s158
      %p160 = scmp.eq.s32.totalorder %s24, 0
      %p161 = por %p159, %p160
      %p162 = scmp.le.s32.totalorder 1, %s18
      %p163 = scmp.lt.s32.totalorder %s18, 3
      %p164 = pnand %p162, %p163
      %p165 = pneg %p164
      // Predicated region
      $region9: #{tpu_custom_call.1} parent=5 // pred_check
        _
      $region10: #{tpu_custom_call.1} parent=5 // pred_check_branch
        %167 = sbr.rel (%p164) target = $region12
      $region11: #{tpu_custom_call.1} parent=5 // pred_region
        %s168 = ssub.s32 %s18, 1
        // Predicated region
        $region13: #{tpu_custom_call.1} parent=11 // pred_check
          %p169 = pneg %p65
        $region14: #{tpu_custom_call.1} parent=11 // pred_check_branch
          %171 = sbr.rel (%p169) target = $region16
        $region15: #{tpu_custom_call.1} parent=11 // pred_region
          %s173 = ssub.s32 4096, 4096
          %174 = vsyncadd [#allocation6], %s173
          %s175 = sshll.u32 [#allocation5], 4
          %s176 = int_to_ptr.vmem [resolvable:$true] %s175
          %181 = dma.hbm_to_vmem [thread:$0]  %s1, 4096, %s176, [#allocation6], 256, 256, 16
        $region16: #{tpu_custom_call.1} parent=11 // pred_fallthru
          _
        // Predicated region
        $region17: #{tpu_custom_call.1} parent=11 // pred_check
          %p182 = pneg %p86
        $region18: #{tpu_custom_call.1} parent=11 // pred_check_branch
          %184 = sbr.rel (%p182) target = $region20
        $region19: #{tpu_custom_call.1} parent=11 // pred_region
          _
        $region20: #{tpu_custom_call.1} parent=11 // pred_fallthru
          _
        // Predicated region
        $region21: #{tpu_custom_call.1} parent=11 // pred_check
          %p185 = pneg %p107
        $region22: #{tpu_custom_call.1} parent=11 // pred_check_branch
          %187 = sbr.rel (%p185) target = $region24
        $region23: #{tpu_custom_call.1} parent=11 // pred_region
          %s189 = ssub.s32 4096, 4096
          %190 = vsyncadd [#allocation6], %s189
          %s191 = sshll.u32 [#allocation7], 4
          %s192 = int_to_ptr.vmem [resolvable:$true] %s191
          %197 = dma.hbm_to_vmem [thread:$0]  %s3, 4096, %s192, [#allocation6], 64, 64, 4
        $region24: #{tpu_custom_call.1} parent=11 // pred_fallthru
          _
        // Predicated region
        $region25: #{tpu_custom_call.1} parent=11 // pred_check
          %p198 = pneg %p128
        $region26: #{tpu_custom_call.1} parent=11 // pred_check_branch
          %200 = sbr.rel (%p198) target = $region28
        $region27: #{tpu_custom_call.1} parent=11 // pred_region
          _
        $region28: #{tpu_custom_call.1} parent=11 // pred_fallthru
          _
      $region12: #{tpu_custom_call.1} parent=5 // pred_fallthru
        _
      %p201 = scmp.lt.s32.totalorder %s18, 2
      // Predicated region
      $region29: #{tpu_custom_call.1} parent=5 // pred_check
        %p202 = pneg %p201
      $region30: #{tpu_custom_call.1} parent=5 // pred_check_branch
        %204 = sbr.rel (%p202) target = $region32
      $region31: #{tpu_custom_call.1} parent=5 // pred_region
        // Predicated region
        $region33: #{tpu_custom_call.1} parent=31 // pred_check
          %p205 = pneg %p38
        $region34: #{tpu_custom_call.1} parent=31 // pred_check_branch
          %207 = sbr.rel (%p205) target = $region36
        $region35: #{tpu_custom_call.1} parent=31 // pred_region
          %s208 = sand.u32 %s28, 1
          %s209 = scalar_lea.sflag [#allocation3], %s208
          %s210 = sand.u32 %s28, 1
          %s211 = smul.addr %s210, 128
          %s212 = scalar_lea.vmem [#allocation2], %s211
          %s213 = smul.u32 32, %s18
          %s215 = ssub.s32 2048, 2048
          %216 = vsyncadd %s209, %s215
          %s217 = smul.addr %s213, 64
          %s218 = scalar_lea.hbm %s0, %s217
          %s219 = sshll.u32 %s212, 4
          %s220 = int_to_ptr.vmem [resolvable:$true] %s219
          %225 = dma.hbm_to_vmem [thread:$0]  %s218, 2048, %s220, %s209, 64, 64, 4
        $region36: #{tpu_custom_call.1} parent=31 // pred_fallthru
          _
      $region32: #{tpu_custom_call.1} parent=5 // pred_fallthru
        _
      %p226 = scmp.le.s32.totalorder 1, %s18
      %p227 = scmp.lt.s32.totalorder %s18, 3
      %p228 = pnand %p226, %p227
      %p229 = pneg %p228
      // Predicated region
      $region37: #{tpu_custom_call.1} parent=5 // pred_check
        _
      $region38: #{tpu_custom_call.1} parent=5 // pred_check_branch
        %231 = sbr.rel (%p228) target = $region40
      $region39: #{tpu_custom_call.1} parent=5 // pred_region
        %s232 = ssub.s32 %s18, 1
        %s233 = sand.u32 %s31, 1
        %s234 = scalar_lea.sflag [#allocation3], %s233
        %s235 = sand.u32 %s31, 1
        %s236 = smul.addr %s235, 128
        %s237 = scalar_lea.vmem [#allocation2], %s236
        // Predicated region
        $region41: #{tpu_custom_call.1} parent=39 // pred_check
          %p238 = pneg %p44
        $region42: #{tpu_custom_call.1} parent=39 // pred_check_branch
          %240 = sbr.rel (%p238) target = $region44
        $region43: #{tpu_custom_call.1} parent=39 // pred_region
          %241 = dma.done %s234, 2048
        $region44: #{tpu_custom_call.1} parent=39 // pred_fallthru
          _
        // Predicated region
        $region45: #{tpu_custom_call.1} parent=39 // pred_check
          %p242 = pneg %p65
        $region46: #{tpu_custom_call.1} parent=39 // pred_check_branch
          %244 = sbr.rel (%p242) target = $region48
        $region47: #{tpu_custom_call.1} parent=39 // pred_region
          %245 = dma.done [#allocation6], 4096
        $region48: #{tpu_custom_call.1} parent=39 // pred_fallthru
          _
        // Predicated region
        $region49: #{tpu_custom_call.1} parent=39 // pred_check
          %p246 = pneg %p107
        $region50: #{tpu_custom_call.1} parent=39 // pred_check_branch
          %248 = sbr.rel (%p246) target = $region52
        $region51: #{tpu_custom_call.1} parent=39 // pred_region
          %249 = dma.done [#allocation6], 4096
        $region52: #{tpu_custom_call.1} parent=39 // pred_fallthru
          _
        %s250 = sand.u32 %s31, 1
        %s251 = scalar_lea.sflag [#allocation3], %s250
        %s252 = sand.u32 %s31, 1
        %s253 = smul.addr %s252, 128
        %s254 = scalar_lea.vmem [#allocation2], %s253
        %p255 = pneg %p44
        %p256 = pneg %p41
        %p257 = pneg %p65
        %p258 = pneg %p62
        %p259 = pneg %p86
        %p260 = pneg %p83
        %p261 = pneg %p107
        %p262 = pneg %p104
        %p263 = pneg %p128
        %p264 = pneg %p125
        %p265 = pneg %p154
        %p266 = pneg %p151
        %s267 = sand.u32 %s141, 1
        %s268 = scalar_lea.sflag [#allocation4], %s267
        %s269 = sand.u32 %s141, 1
        %s270 = smul.addr %s269, 256
        %s271 = scalar_lea.vmem [#allocation8], %s270
        %s272 = smul.u32 32, %s23
        %s273 = smul.u32 32, %s23
        %v275 = vld [vmem:[%s237] sm:$0xf]
        %v276 = vld [vmem:[%s237 + $0x4] sm:$0xf]
        %v277 = vld [vmem:[%s237 + $0x8] sm:$0xf]
        %v278 = vld [vmem:[%s237 + $0xc] sm:$0xf]
        %v279 = vld [vmem:[%s237 + $0x10] sm:$0xf]
        %v280 = vld [vmem:[%s237 + $0x14] sm:$0xf]
        %v281 = vld [vmem:[%s237 + $0x18] sm:$0xf]
        %v282 = vld [vmem:[%s237 + $0x1c] sm:$0xf]
        %v283 = vld [vmem:[%s237 + $0x20] sm:$0xf]
        %v284 = vld [vmem:[%s237 + $0x24] sm:$0xf]
        %v285 = vld [vmem:[%s237 + $0x28] sm:$0xf]
        %v286 = vld [vmem:[%s237 + $0x2c] sm:$0xf]
        %v287 = vld [vmem:[%s237 + $0x30] sm:$0xf]
        %v288 = vld [vmem:[%s237 + $0x34] sm:$0xf]
        %v289 = vld [vmem:[%s237 + $0x38] sm:$0xf]
        %v290 = vld [vmem:[%s237 + $0x3c] sm:$0xf]
        %v291 = vld [vmem:[%s237 + $0x40] sm:$0xf]
        %v292 = vld [vmem:[%s237 + $0x44] sm:$0xf]
        %v293 = vld [vmem:[%s237 + $0x48] sm:$0xf]
        %v294 = vld [vmem:[%s237 + $0x4c] sm:$0xf]
        %v295 = vld [vmem:[%s237 + $0x50] sm:$0xf]
        %v296 = vld [vmem:[%s237 + $0x54] sm:$0xf]
        %v297 = vld [vmem:[%s237 + $0x58] sm:$0xf]
        %v298 = vld [vmem:[%s237 + $0x5c] sm:$0xf]
        %v299 = vld [vmem:[%s237 + $0x60] sm:$0xf]
        %v300 = vld [vmem:[%s237 + $0x64] sm:$0xf]
        %v301 = vld [vmem:[%s237 + $0x68] sm:$0xf]
        %v302 = vld [vmem:[%s237 + $0x6c] sm:$0xf]
        %v303 = vld [vmem:[%s237 + $0x70] sm:$0xf]
        %v304 = vld [vmem:[%s237 + $0x74] sm:$0xf]
        %v305 = vld [vmem:[%s237 + $0x78] sm:$0xf]
        %v306 = vld [vmem:[%s237 + $0x7c] sm:$0xf]
        %v307 = vld [vmem:[#allocation5] sm:$0xff]
        %v308 = vld [vmem:[#allocation5 + $0x8] sm:$0xff]
        %v309 = vld [vmem:[#allocation5 + $0x10] sm:$0xff]
        %v310 = vld [vmem:[#allocation5 + $0x18] sm:$0xff]
        %v311 = vld [vmem:[#allocation5 + $0x20] sm:$0xff]
        %v312 = vld [vmem:[#allocation5 + $0x28] sm:$0xff]
        %v313 = vld [vmem:[#allocation5 + $0x30] sm:$0xff]
        %v314 = vld [vmem:[#allocation5 + $0x38] sm:$0xff]
        %v315 = vld [vmem:[#allocation5 + $0x40] sm:$0xff]
        %v316 = vld [vmem:[#allocation5 + $0x48] sm:$0xff]
        %v317 = vld [vmem:[#allocation5 + $0x50] sm:$0xff]
        %v318 = vld [vmem:[#allocation5 + $0x58] sm:$0xff]
        %v319 = vld [vmem:[#allocation5 + $0x60] sm:$0xff]
        %v320 = vld [vmem:[#allocation5 + $0x68] sm:$0xff]
        %v321 = vld [vmem:[#allocation5 + $0x70] sm:$0xff]
        %v322 = vld [vmem:[#allocation5 + $0x78] sm:$0xff]
        %v323 = vld [vmem:[#allocation5 + $0x80] sm:$0xff]
        %v324 = vld [vmem:[#allocation5 + $0x88] sm:$0xff]
        %v325 = vld [vmem:[#allocation5 + $0x90] sm:$0xff]
        %v326 = vld [vmem:[#allocation5 + $0x98] sm:$0xff]
        %v327 = vld [vmem:[#allocation5 + $0xa0] sm:$0xff]
        %v328 = vld [vmem:[#allocation5 + $0xa8] sm:$0xff]
        %v329 = vld [vmem:[#allocation5 + $0xb0] sm:$0xff]
        %v330 = vld [vmem:[#allocation5 + $0xb8] sm:$0xff]
        %v331 = vld [vmem:[#allocation5 + $0xc0] sm:$0xff]
        %v332 = vld [vmem:[#allocation5 + $0xc8] sm:$0xff]
        %v333 = vld [vmem:[#allocation5 + $0xd0] sm:$0xff]
        %v334 = vld [vmem:[#allocation5 + $0xd8] sm:$0xff]
        %v335 = vld [vmem:[#allocation5 + $0xe0] sm:$0xff]
        %v336 = vld [vmem:[#allocation5 + $0xe8] sm:$0xff]
        %v337 = vld [vmem:[#allocation5 + $0xf0] sm:$0xff]
        %v338 = vld [vmem:[#allocation5 + $0xf8] sm:$0xff]
        %v339 = vld [vmem:[%s2] sm:$0xf]
        %v341 = vlaneseq
        %v342 = vshrl.u32 %v341, 7
        %v343 = vsub.s32 0, %v342
        %v344 = vrot.slane %v339, %v343
        %v345 = vlaneseq
        %v346 = vshrl.u32 %v345, 7
        %v347 = vsub.s32 1, %v346
        %v348 = vrot.slane %v339, %v347
        %v349 = vlaneseq
        %v350 = vshrl.u32 %v349, 7
        %v351 = vsub.s32 2, %v350
        %v352 = vrot.slane %v339, %v351
        %v353 = vlaneseq
        %v354 = vshrl.u32 %v353, 7
        %v355 = vsub.s32 3, %v354
        %v356 = vrot.slane %v339, %v355
        %v393 = vunpack.c.l.b16 %v275
        %v394 = vunpack.c.l.b16 %v276
        %v395 = vunpack.c.l.b16 %v277
        %v396 = vunpack.c.l.b16 %v278
        %v397 = vunpack.c.l.b16 %v279
        %v398 = vunpack.c.l.b16 %v280
        %v399 = vunpack.c.l.b16 %v281
        %v400 = vunpack.c.l.b16 %v282
        %v401 = vunpack.c.l.b16 %v283
        %v402 = vunpack.c.l.b16 %v284
        %v403 = vunpack.c.l.b16 %v285
        %v404 = vunpack.c.l.b16 %v286
        %v405 = vunpack.c.l.b16 %v287
        %v406 = vunpack.c.l.b16 %v288
        %v407 = vunpack.c.l.b16 %v289
        %v408 = vunpack.c.l.b16 %v290
        %v409 = vunpack.c.l.b16 %v291
        %v410 = vunpack.c.l.b16 %v292
        %v411 = vunpack.c.l.b16 %v293
        %v412 = vunpack.c.l.b16 %v294
        %v413 = vunpack.c.l.b16 %v295
        %v414 = vunpack.c.l.b16 %v296
        %v415 = vunpack.c.l.b16 %v297
        %v416 = vunpack.c.l.b16 %v298
        %v417 = vunpack.c.l.b16 %v299
        %v418 = vunpack.c.l.b16 %v300
        %v419 = vunpack.c.l.b16 %v301
        %v420 = vunpack.c.l.b16 %v302
        %v421 = vunpack.c.l.b16 %v303
        %v422 = vunpack.c.l.b16 %v304
        %v423 = vunpack.c.l.b16 %v305
        %v424 = vunpack.c.l.b16 %v306
        %v425 = vpack.c.b16 %v394, %v393
        %v426 = vpack.c.b16 %v396, %v395
        %v427 = vpack.c.b16 %v398, %v397
        %v428 = vpack.c.b16 %v400, %v399
        %v429 = vpack.c.b16 %v402, %v401
        %v430 = vpack.c.b16 %v404, %v403
        %v431 = vpack.c.b16 %v406, %v405
        %v432 = vpack.c.b16 %v408, %v407
        %v433 = vpack.c.b16 %v410, %v409
        %v434 = vpack.c.b16 %v412, %v411
        %v435 = vpack.c.b16 %v414, %v413
        %v436 = vpack.c.b16 %v416, %v415
        %v437 = vpack.c.b16 %v418, %v417
        %v438 = vpack.c.b16 %v420, %v419
        %v439 = vpack.c.b16 %v422, %v421
        %v440 = vpack.c.b16 %v424, %v423
        %v489 = vunpack.c.l.b16 %v307
        %v490 = vunpack.c.h.b16 %v307
        %v491 = vunpack.c.l.b16 %v308
        %v492 = vunpack.c.h.b16 %v308
        %v493 = vunpack.c.l.b16 %v309
        %v494 = vunpack.c.h.b16 %v309
        %v495 = vunpack.c.l.b16 %v310
        %v496 = vunpack.c.h.b16 %v310
        %v497 = vunpack.c.l.b16 %v311
        %v498 = vunpack.c.h.b16 %v311
        %v499 = vunpack.c.l.b16 %v312
        %v500 = vunpack.c.h.b16 %v312
        %v501 = vunpack.c.l.b16 %v313
        %v502 = vunpack.c.h.b16 %v313
        %v503 = vunpack.c.l.b16 %v314
        %v504 = vunpack.c.h.b16 %v314
        %v505 = vunpack.c.l.b16 %v315
        %v506 = vunpack.c.h.b16 %v315
        %v507 = vunpack.c.l.b16 %v316
        %v508 = vunpack.c.h.b16 %v316
        %v509 = vunpack.c.l.b16 %v317
        %v510 = vunpack.c.h.b16 %v317
        %v511 = vunpack.c.l.b16 %v318
        %v512 = vunpack.c.h.b16 %v318
        %v513 = vunpack.c.l.b16 %v319
        %v514 = vunpack.c.h.b16 %v319
        %v515 = vunpack.c.l.b16 %v320
        %v516 = vunpack.c.h.b16 %v320
        %v517 = vunpack.c.l.b16 %v321
        %v518 = vunpack.c.h.b16 %v321
        %v519 = vunpack.c.l.b16 %v322
        %v520 = vunpack.c.h.b16 %v322
        %v521 = vunpack.c.l.b16 %v323
        %v522 = vunpack.c.h.b16 %v323
        %v523 = vunpack.c.l.b16 %v324
        %v524 = vunpack.c.h.b16 %v324
        %v525 = vunpack.c.l.b16 %v325
        %v526 = vunpack.c.h.b16 %v325
        %v527 = vunpack.c.l.b16 %v326
        %v528 = vunpack.c.h.b16 %v326
        %v529 = vunpack.c.l.b16 %v327
        %v530 = vunpack.c.h.b16 %v327
        %v531 = vunpack.c.l.b16 %v328
        %v532 = vunpack.c.h.b16 %v328
        %v533 = vunpack.c.l.b16 %v329
        %v534 = vunpack.c.h.b16 %v329
        %v535 = vunpack.c.l.b16 %v330
        %v536 = vunpack.c.h.b16 %v330
        %v537 = vunpack.c.l.b16 %v331
        %v538 = vunpack.c.h.b16 %v331
        %v539 = vunpack.c.l.b16 %v332
        %v540 = vunpack.c.h.b16 %v332
        %v541 = vunpack.c.l.b16 %v333
        %v542 = vunpack.c.h.b16 %v333
        %v543 = vunpack.c.l.b16 %v334
        %v544 = vunpack.c.h.b16 %v334
        %v545 = vunpack.c.l.b16 %v335
        %v546 = vunpack.c.h.b16 %v335
        %v547 = vunpack.c.l.b16 %v336
        %v548 = vunpack.c.h.b16 %v336
        %v549 = vunpack.c.l.b16 %v337
        %v550 = vunpack.c.h.b16 %v337
        %v551 = vunpack.c.l.b16 %v338
        %v552 = vunpack.c.h.b16 %v338
        %v553 = vpack.c.b16 %v493, %v489
        %v554 = vpack.c.b16 %v494, %v490
        %v555 = vpack.c.b16 %v495, %v491
        %v556 = vpack.c.b16 %v496, %v492
        %v557 = vpack.c.b16 %v501, %v497
        %v558 = vpack.c.b16 %v502, %v498
        %v559 = vpack.c.b16 %v503, %v499
        %v560 = vpack.c.b16 %v504, %v500
        %v561 = vpack.c.b16 %v509, %v505
        %v562 = vpack.c.b16 %v510, %v506
        %v563 = vpack.c.b16 %v511, %v507
        %v564 = vpack.c.b16 %v512, %v508
        %v565 = vpack.c.b16 %v517, %v513
        %v566 = vpack.c.b16 %v518, %v514
        %v567 = vpack.c.b16 %v519, %v515
        %v568 = vpack.c.b16 %v520, %v516
        %v569 = vpack.c.b16 %v525, %v521
        %v570 = vpack.c.b16 %v526, %v522
        %v571 = vpack.c.b16 %v527, %v523
        %v572 = vpack.c.b16 %v528, %v524
        %v573 = vpack.c.b16 %v533, %v529
        %v574 = vpack.c.b16 %v534, %v530
        %v575 = vpack.c.b16 %v535, %v531
        %v576 = vpack.c.b16 %v536, %v532
        %v577 = vpack.c.b16 %v541, %v537
        %v578 = vpack.c.b16 %v542, %v538
        %v579 = vpack.c.b16 %v543, %v539
        %v580 = vpack.c.b16 %v544, %v540
        %v581 = vpack.c.b16 %v549, %v545
        %v582 = vpack.c.b16 %v550, %v546
        %v583 = vpack.c.b16 %v551, %v547
        %v584 = vpack.c.b16 %v552, %v548
        %617 = vmatprep.subr.bf16.mxu0 %v554
        %618 = vmatpush1.bf16.msra.mxu0 %v553
        %619 = vmatprep.subr.bf16.mxu0 %v558
        %620 = vmatpush1.bf16.msra.mxu0 %v557
        %621 = vmatprep.subr.bf16.mxu0 %v562
        %622 = vmatpush1.bf16.msra.mxu0 %v561
        %623 = vmatprep.subr.bf16.mxu0 %v566
        %624 = vmatpush1.bf16.msra.mxu0 %v565
        %625 = vmatprep.subr.bf16.mxu0 %v570
        %626 = vmatpush1.bf16.msra.mxu0 %v569
        %627 = vmatprep.subr.bf16.mxu0 %v574
        %628 = vmatpush1.bf16.msra.mxu0 %v573
        %629 = vmatprep.subr.bf16.mxu0 %v578
        %630 = vmatpush1.bf16.msra.mxu0 %v577
        %631 = vmatprep.subr.bf16.mxu0 %v582
        %632 = vmatpush1.bf16.msra.mxu0 %v581
        %633 = vmatprep.subr.bf16.mxu0 0
        %634 = vmatpush1.bf16.msra.mxu0 0
        %635 = vmatprep.subr.bf16.mxu0 0
        %636 = vmatpush1.bf16.msra.mxu0 0
        %637 = vmatprep.subr.bf16.mxu0 0
        %638 = vmatpush1.bf16.msra.mxu0 0
        %639 = vmatprep.subr.bf16.mxu0 0
        %640 = vmatpush1.bf16.msra.mxu0 0
        %641 = vmatprep.subr.bf16.mxu0 0
        %642 = vmatpush1.bf16.msra.mxu0 0
        %643 = vmatprep.subr.bf16.mxu0 0
        %644 = vmatpush1.bf16.msra.mxu0 0
        %645 = vmatprep.subr.bf16.mxu0 0
        %646 = vmatpush1.bf16.msra.mxu0 0
        %647 = vmatprep.subr.bf16.mxu0 0
        %648 = vmatpush1.bf16.msra.mxu0 0
        %649 = vmatprep.mubr.bf16.mxu0 0
        %650 = vmatmul.mubr.bf16.gmra.mrb[0].mxu0 %v425
        %v651 = vpop.f32.mrb[0].mxu0
        %v652 = vadd.f32 %v344, %v651
        %v653 = vpop.f32.mrb[0].mxu0
        %v654 = vadd.f32 %v348, %v653
        %v655 = vpop.f32.mrb[0].mxu0
        %v656 = vadd.f32 %v344, %v655
        %v657 = vpop.f32.mrb[0].mxu0
        %v658 = vadd.f32 %v348, %v657
        %659 = vmatprep.mubr.bf16.mxu0 0
        %660 = vmatmul.mubr.bf16.gmra.mrb[0].mxu0 %v426
        %v661 = vpop.f32.mrb[0].mxu0
        %v662 = vadd.f32 %v344, %v661
        %v663 = vpop.f32.mrb[0].mxu0
        %v664 = vadd.f32 %v348, %v663
        %v665 = vpop.f32.mrb[0].mxu0
        %v666 = vadd.f32 %v344, %v665
        %v667 = vpop.f32.mrb[0].mxu0
        %v668 = vadd.f32 %v348, %v667
        %669 = vmatprep.mubr.bf16.mxu0 0
        %670 = vmatmul.mubr.bf16.gmra.mrb[0].mxu0 %v427
        %v671 = vpop.f32.mrb[0].mxu0
        %v672 = vadd.f32 %v344, %v671
        %v673 = vpop.f32.mrb[0].mxu0
        %v674 = vadd.f32 %v348, %v673
        %v675 = vpop.f32.mrb[0].mxu0
        %v676 = vadd.f32 %v344, %v675
        %v677 = vpop.f32.mrb[0].mxu0
        %v678 = vadd.f32 %v348, %v677
        %679 = vmatprep.mubr.bf16.mxu0 0
        %680 = vmatmul.mubr.bf16.gmra.mrb[0].mxu0 %v428
        %v681 = vpop.f32.mrb[0].mxu0
        %v682 = vadd.f32 %v344, %v681
        %v683 = vpop.f32.mrb[0].mxu0
        %v684 = vadd.f32 %v348, %v683
        %v685 = vpop.f32.mrb[0].mxu0
        %v686 = vadd.f32 %v344, %v685
        %v687 = vpop.f32.mrb[0].mxu0
        %v688 = vadd.f32 %v348, %v687
        %689 = vmatprep.mubr.bf16.mxu0 0
        %690 = vmatmul.mubr.bf16.gmra.mrb[0].mxu0 %v429
        %v691 = vpop.f32.mrb[0].mxu0
        %v692 = vadd.f32 %v344, %v691
        %v693 = vpop.f32.mrb[0].mxu0
        %v694 = vadd.f32 %v348, %v693
        %v695 = vpop.f32.mrb[0].mxu0
        %v696 = vadd.f32 %v344, %v695
        %v697 = vpop.f32.mrb[0].mxu0
        %v698 = vadd.f32 %v348, %v697
        %699 = vmatprep.mubr.bf16.mxu0 0
        %700 = vmatmul.mubr.bf16.gmra.mrb[0].mxu0 %v430
        %v701 = vpop.f32.mrb[0].mxu0
        %v702 = vadd.f32 %v344, %v701
        %v703 = vpop.f32.mrb[0].mxu0
        %v704 = vadd.f32 %v348, %v703
        %v705 = vpop.f32.mrb[0].mxu0
        %v706 = vadd.f32 %v344, %v705
        %v707 = vpop.f32.mrb[0].mxu0
        %v708 = vadd.f32 %v348, %v707
        %709 = vmatprep.mubr.bf16.mxu0 0
        %710 = vmatmul.mubr.bf16.gmra.mrb[0].mxu0 %v431
        %v711 = vpop.f32.mrb[0].mxu0
        %v712 = vadd.f32 %v344, %v711
        %v713 = vpop.f32.mrb[0].mxu0
        %v714 = vadd.f32 %v348, %v713
        %v715 = vpop.f32.mrb[0].mxu0
        %v716 = vadd.f32 %v344, %v715
        %v717 = vpop.f32.mrb[0].mxu0
        %v718 = vadd.f32 %v348, %v717
        %719 = vmatprep.mubr.bf16.mxu0 0
        %720 = vmatmul.mubr.bf16.gmra.mrb[0].mxu0 %v432
        %v721 = vpop.f32.mrb[0].mxu0
        %v722 = vadd.f32 %v344, %v721
        %v723 = vpop.f32.mrb[0].mxu0
        %v724 = vadd.f32 %v348, %v723
        %v725 = vpop.f32.mrb[0].mxu0
        %v726 = vadd.f32 %v344, %v725
        %v727 = vpop.f32.mrb[0].mxu0
        %v728 = vadd.f32 %v348, %v727
        %729 = vmatprep.mubr.bf16.mxu0 0
        %730 = vmatmul.mubr.bf16.gmra.mrb[0].mxu0 %v433
        %v731 = vpop.f32.mrb[0].mxu0
        %v732 = vadd.f32 %v344, %v731
        %v733 = vpop.f32.mrb[0].mxu0
        %v734 = vadd.f32 %v348, %v733
        %v735 = vpop.f32.mrb[0].mxu0
        %v736 = vadd.f32 %v344, %v735
        %v737 = vpop.f32.mrb[0].mxu0
        %v738 = vadd.f32 %v348, %v737
        %739 = vmatprep.mubr.bf16.mxu0 0
        %740 = vmatmul.mubr.bf16.gmra.mrb[0].mxu0 %v434
        %v741 = vpop.f32.mrb[0].mxu0
        %v742 = vadd.f32 %v344, %v741
        %v743 = vpop.f32.mrb[0].mxu0
        %v744 = vadd.f32 %v348, %v743
        %v745 = vpop.f32.mrb[0].mxu0
        %v746 = vadd.f32 %v344, %v745
        %v747 = vpop.f32.mrb[0].mxu0
        %v748 = vadd.f32 %v348, %v747
        %749 = vmatprep.mubr.bf16.mxu0 0
        %750 = vmatmul.mubr.bf16.gmra.mrb[0].mxu0 %v435
        %v751 = vpop.f32.mrb[0].mxu0
        %v752 = vadd.f32 %v344, %v751
        %v753 = vpop.f32.mrb[0].mxu0
        %v754 = vadd.f32 %v348, %v753
        %v755 = vpop.f32.mrb[0].mxu0
        %v756 = vadd.f32 %v344, %v755
        %v757 = vpop.f32.mrb[0].mxu0
        %v758 = vadd.f32 %v348, %v757
        %759 = vmatprep.mubr.bf16.mxu0 0
        %760 = vmatmul.mubr.bf16.gmra.mrb[0].mxu0 %v436
        %v761 = vpop.f32.mrb[0].mxu0
        %v762 = vadd.f32 %v344, %v761
        %v763 = vpop.f32.mrb[0].mxu0
        %v764 = vadd.f32 %v348, %v763
        %v765 = vpop.f32.mrb[0].mxu0
        %v766 = vadd.f32 %v344, %v765
        %v767 = vpop.f32.mrb[0].mxu0
        %v768 = vadd.f32 %v348, %v767
        %769 = vmatprep.mubr.bf16.mxu0 0
        %770 = vmatmul.mubr.bf16.gmra.mrb[0].mxu0 %v437
        %v771 = vpop.f32.mrb[0].mxu0
        %v772 = vadd.f32 %v344, %v771
        %v773 = vpop.f32.mrb[0].mxu0
        %v774 = vadd.f32 %v348, %v773
        %v775 = vpop.f32.mrb[0].mxu0
        %v776 = vadd.f32 %v344, %v775
        %v777 = vpop.f32.mrb[0].mxu0
        %v778 = vadd.f32 %v348, %v777
        %779 = vmatprep.mubr.bf16.mxu0 0
        %780 = vmatmul.mubr.bf16.gmra.mrb[0].mxu0 %v438
        %v781 = vpop.f32.mrb[0].mxu0
        %v782 = vadd.f32 %v344, %v781
        %v783 = vpop.f32.mrb[0].mxu0
        %v784 = vadd.f32 %v348, %v783
        %v785 = vpop.f32.mrb[0].mxu0
        %v786 = vadd.f32 %v344, %v785
        %v787 = vpop.f32.mrb[0].mxu0
        %v788 = vadd.f32 %v348, %v787
        %789 = vmatprep.mubr.bf16.mxu0 0
        %790 = vmatmul.mubr.bf16.gmra.mrb[0].mxu0 %v439
        %v791 = vpop.f32.mrb[0].mxu0
        %v792 = vadd.f32 %v344, %v791
        %v793 = vpop.f32.mrb[0].mxu0
        %v794 = vadd.f32 %v348, %v793
        %v795 = vpop.f32.mrb[0].mxu0
        %v796 = vadd.f32 %v344, %v795
        %v797 = vpop.f32.mrb[0].mxu0
        %v798 = vadd.f32 %v348, %v797
        %799 = vmatprep.mubr.bf16.mxu0 0
        %800 = vmatmul.mubr.bf16.gmra.mrb[0].mxu0 %v440
        %v801 = vpop.f32.mrb[0].mxu0
        %v802 = vadd.f32 %v344, %v801
        %v803 = vpop.f32.mrb[0].mxu0
        %v804 = vadd.f32 %v348, %v803
        %v805 = vpop.f32.mrb[0].mxu0
        %v806 = vadd.f32 %v344, %v805
        %v807 = vpop.f32.mrb[0].mxu0
        %v808 = vadd.f32 %v348, %v807
        %809 = vdwg.mxu0
        %810 = vmatprep.subr.bf16.mxu0 %v556
        %811 = vmatpush1.bf16.msra.mxu0 %v555
        %812 = vmatprep.subr.bf16.mxu0 %v560
        %813 = vmatpush1.bf16.msra.mxu0 %v559
        %814 = vmatprep.subr.bf16.mxu0 %v564
        %815 = vmatpush1.bf16.msra.mxu0 %v563
        %816 = vmatprep.subr.bf16.mxu0 %v568
        %817 = vmatpush1.bf16.msra.mxu0 %v567
        %818 = vmatprep.subr.bf16.mxu0 %v572
        %819 = vmatpush1.bf16.msra.mxu0 %v571
        %820 = vmatprep.subr.bf16.mxu0 %v576
        %821 = vmatpush1.bf16.msra.mxu0 %v575
        %822 = vmatprep.subr.bf16.mxu0 %v580
        %823 = vmatpush1.bf16.msra.mxu0 %v579
        %824 = vmatprep.subr.bf16.mxu0 %v584
        %825 = vmatpush1.bf16.msra.mxu0 %v583
        %826 = vmatprep.subr.bf16.mxu0 0
        %827 = vmatpush1.bf16.msra.mxu0 0
        %828 = vmatprep.subr.bf16.mxu0 0
        %829 = vmatpush1.bf16.msra.mxu0 0
        %830 = vmatprep.subr.bf16.mxu0 0
        %831 = vmatpush1.bf16.msra.mxu0 0
        %832 = vmatprep.subr.bf16.mxu0 0
        %833 = vmatpush1.bf16.msra.mxu0 0
        %834 = vmatprep.subr.bf16.mxu0 0
        %835 = vmatpush1.bf16.msra.mxu0 0
        %836 = vmatprep.subr.bf16.mxu0 0
        %837 = vmatpush1.bf16.msra.mxu0 0
        %838 = vmatprep.subr.bf16.mxu0 0
        %839 = vmatpush1.bf16.msra.mxu0 0
        %840 = vmatprep.subr.bf16.mxu0 0
        %841 = vmatpush1.bf16.msra.mxu0 0
        %842 = vmatprep.mubr.bf16.mxu0 0
        %843 = vmatmul.mubr.bf16.gmra.mrb[0].mxu0 %v425
        %v844 = vpop.f32.mrb[0].mxu0
        %v845 = vadd.f32 %v352, %v844
        %v846 = vpop.f32.mrb[0].mxu0
        %v847 = vadd.f32 %v356, %v846
        %v848 = vpop.f32.mrb[0].mxu0
        %v849 = vadd.f32 %v352, %v848
        %v850 = vpop.f32.mrb[0].mxu0
        %v851 = vadd.f32 %v356, %v850
        %852 = vmatprep.mubr.bf16.mxu0 0
        %853 = vmatmul.mubr.bf16.gmra.mrb[0].mxu0 %v426
        %v854 = vpop.f32.mrb[0].mxu0
        %v855 = vadd.f32 %v352, %v854
        %v856 = vpop.f32.mrb[0].mxu0
        %v857 = vadd.f32 %v356, %v856
        %v858 = vpop.f32.mrb[0].mxu0
        %v859 = vadd.f32 %v352, %v858
        %v860 = vpop.f32.mrb[0].mxu0
        %v861 = vadd.f32 %v356, %v860
        %862 = vmatprep.mubr.bf16.mxu0 0
        %863 = vmatmul.mubr.bf16.gmra.mrb[0].mxu0 %v427
        %v864 = vpop.f32.mrb[0].mxu0
        %v865 = vadd.f32 %v352, %v864
        %v866 = vpop.f32.mrb[0].mxu0
        %v867 = vadd.f32 %v356, %v866
        %v868 = vpop.f32.mrb[0].mxu0
        %v869 = vadd.f32 %v352, %v868
        %v870 = vpop.f32.mrb[0].mxu0
        %v871 = vadd.f32 %v356, %v870
        %872 = vmatprep.mubr.bf16.mxu0 0
        %873 = vmatmul.mubr.bf16.gmra.mrb[0].mxu0 %v428
        %v874 = vpop.f32.mrb[0].mxu0
        %v875 = vadd.f32 %v352, %v874
        %v876 = vpop.f32.mrb[0].mxu0
        %v877 = vadd.f32 %v356, %v876
        %v878 = vpop.f32.mrb[0].mxu0
        %v879 = vadd.f32 %v352, %v878
        %v880 = vpop.f32.mrb[0].mxu0
        %v881 = vadd.f32 %v356, %v880
        %882 = vmatprep.mubr.bf16.mxu0 0
        %883 = vmatmul.mubr.bf16.gmra.mrb[0].mxu0 %v429
        %v884 = vpop.f32.mrb[0].mxu0
        %v885 = vadd.f32 %v352, %v884
        %v886 = vpop.f32.mrb[0].mxu0
        %v887 = vadd.f32 %v356, %v886
        %v888 = vpop.f32.mrb[0].mxu0
        %v889 = vadd.f32 %v352, %v888
        %v890 = vpop.f32.mrb[0].mxu0
        %v891 = vadd.f32 %v356, %v890
        %892 = vmatprep.mubr.bf16.mxu0 0
        %893 = vmatmul.mubr.bf16.gmra.mrb[0].mxu0 %v430
        %v894 = vpop.f32.mrb[0].mxu0
        %v895 = vadd.f32 %v352, %v894
        %v896 = vpop.f32.mrb[0].mxu0
        %v897 = vadd.f32 %v356, %v896
        %v898 = vpop.f32.mrb[0].mxu0
        %v899 = vadd.f32 %v352, %v898
        %v900 = vpop.f32.mrb[0].mxu0
        %v901 = vadd.f32 %v356, %v900
        %902 = vmatprep.mubr.bf16.mxu0 0
        %903 = vmatmul.mubr.bf16.gmra.mrb[0].mxu0 %v431
        %v904 = vpop.f32.mrb[0].mxu0
        %v905 = vadd.f32 %v352, %v904
        %v906 = vpop.f32.mrb[0].mxu0
        %v907 = vadd.f32 %v356, %v906
        %v908 = vpop.f32.mrb[0].mxu0
        %v909 = vadd.f32 %v352, %v908
        %v910 = vpop.f32.mrb[0].mxu0
        %v911 = vadd.f32 %v356, %v910
        %912 = vmatprep.mubr.bf16.mxu0 0
        %913 = vmatmul.mubr.bf16.gmra.mrb[0].mxu0 %v432
        %v914 = vpop.f32.mrb[0].mxu0
        %v915 = vadd.f32 %v352, %v914
        %v916 = vpop.f32.mrb[0].mxu0
        %v917 = vadd.f32 %v356, %v916
        %v918 = vpop.f32.mrb[0].mxu0
        %v919 = vadd.f32 %v352, %v918
        %v920 = vpop.f32.mrb[0].mxu0
        %v921 = vadd.f32 %v356, %v920
        %922 = vmatprep.mubr.bf16.mxu0 0
        %923 = vmatmul.mubr.bf16.gmra.mrb[0].mxu0 %v433
        %v924 = vpop.f32.mrb[0].mxu0
        %v925 = vadd.f32 %v352, %v924
        %v926 = vpop.f32.mrb[0].mxu0
        %v927 = vadd.f32 %v356, %v926
        %v928 = vpop.f32.mrb[0].mxu0
        %v929 = vadd.f32 %v352, %v928
        %v930 = vpop.f32.mrb[0].mxu0
        %v931 = vadd.f32 %v356, %v930
        %932 = vmatprep.mubr.bf16.mxu0 0
        %933 = vmatmul.mubr.bf16.gmra.mrb[0].mxu0 %v434
        %v934 = vpop.f32.mrb[0].mxu0
        %v935 = vadd.f32 %v352, %v934
        %v936 = vpop.f32.mrb[0].mxu0
        %v937 = vadd.f32 %v356, %v936
        %v938 = vpop.f32.mrb[0].mxu0
        %v939 = vadd.f32 %v352, %v938
        %v940 = vpop.f32.mrb[0].mxu0
        %v941 = vadd.f32 %v356, %v940
        %942 = vmatprep.mubr.bf16.mxu0 0
        %943 = vmatmul.mubr.bf16.gmra.mrb[0].mxu0 %v435
        %v944 = vpop.f32.mrb[0].mxu0
        %v945 = vadd.f32 %v352, %v944
        %v946 = vpop.f32.mrb[0].mxu0
        %v947 = vadd.f32 %v356, %v946
        %v948 = vpop.f32.mrb[0].mxu0
        %v949 = vadd.f32 %v352, %v948
        %v950 = vpop.f32.mrb[0].mxu0
        %v951 = vadd.f32 %v356, %v950
        %952 = vmatprep.mubr.bf16.mxu0 0
        %953 = vmatmul.mubr.bf16.gmra.mrb[0].mxu0 %v436
        %v954 = vpop.f32.mrb[0].mxu0
        %v955 = vadd.f32 %v352, %v954
        %v956 = vpop.f32.mrb[0].mxu0
        %v957 = vadd.f32 %v356, %v956
        %v958 = vpop.f32.mrb[0].mxu0
        %v959 = vadd.f32 %v352, %v958
        %v960 = vpop.f32.mrb[0].mxu0
        %v961 = vadd.f32 %v356, %v960
        %962 = vmatprep.mubr.bf16.mxu0 0
        %963 = vmatmul.mubr.bf16.gmra.mrb[0].mxu0 %v437
        %v964 = vpop.f32.mrb[0].mxu0
        %v965 = vadd.f32 %v352, %v964
        %v966 = vpop.f32.mrb[0].mxu0
        %v967 = vadd.f32 %v356, %v966
        %v968 = vpop.f32.mrb[0].mxu0
        %v969 = vadd.f32 %v352, %v968
        %v970 = vpop.f32.mrb[0].mxu0
        %v971 = vadd.f32 %v356, %v970
        %972 = vmatprep.mubr.bf16.mxu0 0
        %973 = vmatmul.mubr.bf16.gmra.mrb[0].mxu0 %v438
        %v974 = vpop.f32.mrb[0].mxu0
        %v975 = vadd.f32 %v352, %v974
        %v976 = vpop.f32.mrb[0].mxu0
        %v977 = vadd.f32 %v356, %v976
        %v978 = vpop.f32.mrb[0].mxu0
        %v979 = vadd.f32 %v352, %v978
        %v980 = vpop.f32.mrb[0].mxu0
        %v981 = vadd.f32 %v356, %v980
        %982 = vmatprep.mubr.bf16.mxu0 0
        %983 = vmatmul.mubr.bf16.gmra.mrb[0].mxu0 %v439
        %v984 = vpop.f32.mrb[0].mxu0
        %v985 = vadd.f32 %v352, %v984
        %v986 = vpop.f32.mrb[0].mxu0
        %v987 = vadd.f32 %v356, %v986
        %v988 = vpop.f32.mrb[0].mxu0
        %v989 = vadd.f32 %v352, %v988
        %v990 = vpop.f32.mrb[0].mxu0
        %v991 = vadd.f32 %v356, %v990
        %992 = vmatprep.mubr.bf16.mxu0 0
        %993 = vmatmul.mubr.bf16.gmra.mrb[0].mxu0 %v440
        %v994 = vpop.f32.mrb[0].mxu0
        %v995 = vadd.f32 %v352, %v994
        %v996 = vpop.f32.mrb[0].mxu0
        %v997 = vadd.f32 %v356, %v996
        %v998 = vpop.f32.mrb[0].mxu0
        %v999 = vadd.f32 %v352, %v998
        %v1000 = vpop.f32.mrb[0].mxu0
        %v1001 = vadd.f32 %v356, %v1000
        %1002 = vdwg.mxu0
        %v1003 = vmul.f32 %v652, 0.5
        %v1004 = vmul.f32 %v654, 0.5
        %v1005 = vmul.f32 %v845, 0.5
        %v1006 = vmul.f32 %v847, 0.5
        %v1007 = vmul.f32 %v656, 0.5
        %v1008 = vmul.f32 %v658, 0.5
        %v1009 = vmul.f32 %v849, 0.5
        %v1010 = vmul.f32 %v851, 0.5
        %v1011 = vmul.f32 %v662, 0.5
        %v1012 = vmul.f32 %v664, 0.5
        %v1013 = vmul.f32 %v855, 0.5
        %v1014 = vmul.f32 %v857, 0.5
        %v1015 = vmul.f32 %v666, 0.5
        %v1016 = vmul.f32 %v668, 0.5
        %v1017 = vmul.f32 %v859, 0.5
        %v1018 = vmul.f32 %v861, 0.5
        %v1019 = vmul.f32 %v672, 0.5
        %v1020 = vmul.f32 %v674, 0.5
        %v1021 = vmul.f32 %v865, 0.5
        %v1022 = vmul.f32 %v867, 0.5
        %v1023 = vmul.f32 %v676, 0.5
        %v1024 = vmul.f32 %v678, 0.5
        %v1025 = vmul.f32 %v869, 0.5
        %v1026 = vmul.f32 %v871, 0.5
        %v1027 = vmul.f32 %v682, 0.5
        %v1028 = vmul.f32 %v684, 0.5
        %v1029 = vmul.f32 %v875, 0.5
        %v1030 = vmul.f32 %v877, 0.5
        %v1031 = vmul.f32 %v686, 0.5
        %v1032 = vmul.f32 %v688, 0.5
        %v1033 = vmul.f32 %v879, 0.5
        %v1034 = vmul.f32 %v881, 0.5
        %v1035 = vmul.f32 %v692, 0.5
        %v1036 = vmul.f32 %v694, 0.5
        %v1037 = vmul.f32 %v885, 0.5
        %v1038 = vmul.f32 %v887, 0.5
        %v1039 = vmul.f32 %v696, 0.5
        %v1040 = vmul.f32 %v698, 0.5
        %v1041 = vmul.f32 %v889, 0.5
        %v1042 = vmul.f32 %v891, 0.5
        %v1043 = vmul.f32 %v702, 0.5
        %v1044 = vmul.f32 %v704, 0.5
        %v1045 = vmul.f32 %v895, 0.5
        %v1046 = vmul.f32 %v897, 0.5
        %v1047 = vmul.f32 %v706, 0.5
        %v1048 = vmul.f32 %v708, 0.5
        %v1049 = vmul.f32 %v899, 0.5
        %v1050 = vmul.f32 %v901, 0.5
        %v1051 = vmul.f32 %v712, 0.5
        %v1052 = vmul.f32 %v714, 0.5
        %v1053 = vmul.f32 %v905, 0.5
        %v1054 = vmul.f32 %v907, 0.5
        %v1055 = vmul.f32 %v716, 0.5
        %v1056 = vmul.f32 %v718, 0.5
        %v1057 = vmul.f32 %v909, 0.5
        %v1058 = vmul.f32 %v911, 0.5
        %v1059 = vmul.f32 %v722, 0.5
        %v1060 = vmul.f32 %v724, 0.5
        %v1061 = vmul.f32 %v915, 0.5
        %v1062 = vmul.f32 %v917, 0.5
        %v1063 = vmul.f32 %v726, 0.5
        %v1064 = vmul.f32 %v728, 0.5
        %v1065 = vmul.f32 %v919, 0.5
        %v1066 = vmul.f32 %v921, 0.5
        %v1067 = vmul.f32 %v732, 0.5
        %v1068 = vmul.f32 %v734, 0.5
        %v1069 = vmul.f32 %v925, 0.5
        %v1070 = vmul.f32 %v927, 0.5
        %v1071 = vmul.f32 %v736, 0.5
        %v1072 = vmul.f32 %v738, 0.5
        %v1073 = vmul.f32 %v929, 0.5
        %v1074 = vmul.f32 %v931, 0.5
        %v1075 = vmul.f32 %v742, 0.5
        %v1076 = vmul.f32 %v744, 0.5
        %v1077 = vmul.f32 %v935, 0.5
        %v1078 = vmul.f32 %v937, 0.5
        %v1079 = vmul.f32 %v746, 0.5
        %v1080 = vmul.f32 %v748, 0.5
        %v1081 = vmul.f32 %v939, 0.5
        %v1082 = vmul.f32 %v941, 0.5
        %v1083 = vmul.f32 %v752, 0.5
        %v1084 = vmul.f32 %v754, 0.5
        %v1085 = vmul.f32 %v945, 0.5
        %v1086 = vmul.f32 %v947, 0.5
        %v1087 = vmul.f32 %v756, 0.5
        %v1088 = vmul.f32 %v758, 0.5
        %v1089 = vmul.f32 %v949, 0.5
        %v1090 = vmul.f32 %v951, 0.5
        %v1091 = vmul.f32 %v762, 0.5
        %v1092 = vmul.f32 %v764, 0.5
        %v1093 = vmul.f32 %v955, 0.5
        %v1094 = vmul.f32 %v957, 0.5
        %v1095 = vmul.f32 %v766, 0.5
        %v1096 = vmul.f32 %v768, 0.5
        %v1097 = vmul.f32 %v959, 0.5
        %v1098 = vmul.f32 %v961, 0.5
        %v1099 = vmul.f32 %v772, 0.5
        %v1100 = vmul.f32 %v774, 0.5
        %v1101 = vmul.f32 %v965, 0.5
        %v1102 = vmul.f32 %v967, 0.5
        %v1103 = vmul.f32 %v776, 0.5
        %v1104 = vmul.f32 %v778, 0.5
        %v1105 = vmul.f32 %v969, 0.5
        %v1106 = vmul.f32 %v971, 0.5
        %v1107 = vmul.f32 %v782, 0.5
        %v1108 = vmul.f32 %v784, 0.5
        %v1109 = vmul.f32 %v975, 0.5
        %v1110 = vmul.f32 %v977, 0.5
        %v1111 = vmul.f32 %v786, 0.5
        %v1112 = vmul.f32 %v788, 0.5
        %v1113 = vmul.f32 %v979, 0.5
        %v1114 = vmul.f32 %v981, 0.5
        %v1115 = vmul.f32 %v792, 0.5
        %v1116 = vmul.f32 %v794, 0.5
        %v1117 = vmul.f32 %v985, 0.5
        %v1118 = vmul.f32 %v987, 0.5
        %v1119 = vmul.f32 %v796, 0.5
        %v1120 = vmul.f32 %v798, 0.5
        %v1121 = vmul.f32 %v989, 0.5
        %v1122 = vmul.f32 %v991, 0.5
        %v1123 = vmul.f32 %v802, 0.5
        %v1124 = vmul.f32 %v804, 0.5
        %v1125 = vmul.f32 %v995, 0.5
        %v1126 = vmul.f32 %v997, 0.5
        %v1127 = vmul.f32 %v806, 0.5
        %v1128 = vmul.f32 %v808, 0.5
        %v1129 = vmul.f32 %v999, 0.5
        %v1130 = vmul.f32 %v1001, 0.5
        %v1131 = vmul.f32 %v652, 0.7978846
        %v1132 = vmul.f32 %v654, 0.7978846
        %v1133 = vmul.f32 %v845, 0.7978846
        %v1134 = vmul.f32 %v847, 0.7978846
        %v1135 = vmul.f32 %v656, 0.7978846
        %v1136 = vmul.f32 %v658, 0.7978846
        %v1137 = vmul.f32 %v849, 0.7978846
        %v1138 = vmul.f32 %v851, 0.7978846
        %v1139 = vmul.f32 %v662, 0.7978846
        %v1140 = vmul.f32 %v664, 0.7978846
        %v1141 = vmul.f32 %v855, 0.7978846
        %v1142 = vmul.f32 %v857, 0.7978846
        %v1143 = vmul.f32 %v666, 0.7978846
        %v1144 = vmul.f32 %v668, 0.7978846
        %v1145 = vmul.f32 %v859, 0.7978846
        %v1146 = vmul.f32 %v861, 0.7978846
        %v1147 = vmul.f32 %v672, 0.7978846
        %v1148 = vmul.f32 %v674, 0.7978846
        %v1149 = vmul.f32 %v865, 0.7978846
        %v1150 = vmul.f32 %v867, 0.7978846
        %v1151 = vmul.f32 %v676, 0.7978846
        %v1152 = vmul.f32 %v678, 0.7978846
        %v1153 = vmul.f32 %v869, 0.7978846
        %v1154 = vmul.f32 %v871, 0.7978846
        %v1155 = vmul.f32 %v682, 0.7978846
        %v1156 = vmul.f32 %v684, 0.7978846
        %v1157 = vmul.f32 %v875, 0.7978846
        %v1158 = vmul.f32 %v877, 0.7978846
        %v1159 = vmul.f32 %v686, 0.7978846
        %v1160 = vmul.f32 %v688, 0.7978846
        %v1161 = vmul.f32 %v879, 0.7978846
        %v1162 = vmul.f32 %v881, 0.7978846
        %v1163 = vmul.f32 %v692, 0.7978846
        %v1164 = vmul.f32 %v694, 0.7978846
        %v1165 = vmul.f32 %v885, 0.7978846
        %v1166 = vmul.f32 %v887, 0.7978846
        %v1167 = vmul.f32 %v696, 0.7978846
        %v1168 = vmul.f32 %v698, 0.7978846
        %v1169 = vmul.f32 %v889, 0.7978846
        %v1170 = vmul.f32 %v891, 0.7978846
        %v1171 = vmul.f32 %v702, 0.7978846
        %v1172 = vmul.f32 %v704, 0.7978846
        %v1173 = vmul.f32 %v895, 0.7978846
        %v1174 = vmul.f32 %v897, 0.7978846
        %v1175 = vmul.f32 %v706, 0.7978846
        %v1176 = vmul.f32 %v708, 0.7978846
        %v1177 = vmul.f32 %v899, 0.7978846
        %v1178 = vmul.f32 %v901, 0.7978846
        %v1179 = vmul.f32 %v712, 0.7978846
        %v1180 = vmul.f32 %v714, 0.7978846
        %v1181 = vmul.f32 %v905, 0.7978846
        %v1182 = vmul.f32 %v907, 0.7978846
        %v1183 = vmul.f32 %v716, 0.7978846
        %v1184 = vmul.f32 %v718, 0.7978846
        %v1185 = vmul.f32 %v909, 0.7978846
        %v1186 = vmul.f32 %v911, 0.7978846
        %v1187 = vmul.f32 %v722, 0.7978846
        %v1188 = vmul.f32 %v724, 0.7978846
        %v1189 = vmul.f32 %v915, 0.7978846
        %v1190 = vmul.f32 %v917, 0.7978846
        %v1191 = vmul.f32 %v726, 0.7978846
        %v1192 = vmul.f32 %v728, 0.7978846
        %v1193 = vmul.f32 %v919, 0.7978846
        %v1194 = vmul.f32 %v921, 0.7978846
        %v1195 = vmul.f32 %v732, 0.7978846
        %v1196 = vmul.f32 %v734, 0.7978846
        %v1197 = vmul.f32 %v925, 0.7978846
        %v1198 = vmul.f32 %v927, 0.7978846
        %v1199 = vmul.f32 %v736, 0.7978846
        %v1200 = vmul.f32 %v738, 0.7978846
        %v1201 = vmul.f32 %v929, 0.7978846
        %v1202 = vmul.f32 %v931, 0.7978846
        %v1203 = vmul.f32 %v742, 0.7978846
        %v1204 = vmul.f32 %v744, 0.7978846
        %v1205 = vmul.f32 %v935, 0.7978846
        %v1206 = vmul.f32 %v937, 0.7978846
        %v1207 = vmul.f32 %v746, 0.7978846
        %v1208 = vmul.f32 %v748, 0.7978846
        %v1209 = vmul.f32 %v939, 0.7978846
        %v1210 = vmul.f32 %v941, 0.7978846
        %v1211 = vmul.f32 %v752, 0.7978846
        %v1212 = vmul.f32 %v754, 0.7978846
        %v1213 = vmul.f32 %v945, 0.7978846
        %v1214 = vmul.f32 %v947, 0.7978846
        %v1215 = vmul.f32 %v756, 0.7978846
        %v1216 = vmul.f32 %v758, 0.7978846
        %v1217 = vmul.f32 %v949, 0.7978846
        %v1218 = vmul.f32 %v951, 0.7978846
        %v1219 = vmul.f32 %v762, 0.7978846
        %v1220 = vmul.f32 %v764, 0.7978846
        %v1221 = vmul.f32 %v955, 0.7978846
        %v1222 = vmul.f32 %v957, 0.7978846
        %v1223 = vmul.f32 %v766, 0.7978846
        %v1224 = vmul.f32 %v768, 0.7978846
        %v1225 = vmul.f32 %v959, 0.7978846
        %v1226 = vmul.f32 %v961, 0.7978846
        %v1227 = vmul.f32 %v772, 0.7978846
        %v1228 = vmul.f32 %v774, 0.7978846
        %v1229 = vmul.f32 %v965, 0.7978846
        %v1230 = vmul.f32 %v967, 0.7978846
        %v1231 = vmul.f32 %v776, 0.7978846
        %v1232 = vmul.f32 %v778, 0.7978846
        %v1233 = vmul.f32 %v969, 0.7978846
        %v1234 = vmul.f32 %v971, 0.7978846
        %v1235 = vmul.f32 %v782, 0.7978846
        %v1236 = vmul.f32 %v784, 0.7978846
        %v1237 = vmul.f32 %v975, 0.7978846
        %v1238 = vmul.f32 %v977, 0.7978846
        %v1239 = vmul.f32 %v786, 0.7978846
        %v1240 = vmul.f32 %v788, 0.7978846
        %v1241 = vmul.f32 %v979, 0.7978846
        %v1242 = vmul.f32 %v981, 0.7978846
        %v1243 = vmul.f32 %v792, 0.7978846
        %v1244 = vmul.f32 %v794, 0.7978846
        %v1245 = vmul.f32 %v985, 0.7978846
        %v1246 = vmul.f32 %v987, 0.7978846
        %v1247 = vmul.f32 %v796, 0.7978846
        %v1248 = vmul.f32 %v798, 0.7978846
        %v1249 = vmul.f32 %v989, 0.7978846
        %v1250 = vmul.f32 %v991, 0.7978846
        %v1251 = vmul.f32 %v802, 0.7978846
        %v1252 = vmul.f32 %v804, 0.7978846
        %v1253 = vmul.f32 %v995, 0.7978846
        %v1254 = vmul.f32 %v997, 0.7978846
        %v1255 = vmul.f32 %v806, 0.7978846
        %v1256 = vmul.f32 %v808, 0.7978846
        %v1257 = vmul.f32 %v999, 0.7978846
        %v1258 = vmul.f32 %v1001, 0.7978846
        %v1259 = vmul.f32 %v652, 0.044715
        %v1260 = vmul.f32 %v654, 0.044715
        %v1261 = vmul.f32 %v845, 0.044715
        %v1262 = vmul.f32 %v847, 0.044715
        %v1263 = vmul.f32 %v656, 0.044715
        %v1264 = vmul.f32 %v658, 0.044715
        %v1265 = vmul.f32 %v849, 0.044715
        %v1266 = vmul.f32 %v851, 0.044715
        %v1267 = vmul.f32 %v662, 0.044715
        %v1268 = vmul.f32 %v664, 0.044715
        %v1269 = vmul.f32 %v855, 0.044715
        %v1270 = vmul.f32 %v857, 0.044715
        %v1271 = vmul.f32 %v666, 0.044715
        %v1272 = vmul.f32 %v668, 0.044715
        %v1273 = vmul.f32 %v859, 0.044715
        %v1274 = vmul.f32 %v861, 0.044715
        %v1275 = vmul.f32 %v672, 0.044715
        %v1276 = vmul.f32 %v674, 0.044715
        %v1277 = vmul.f32 %v865, 0.044715
        %v1278 = vmul.f32 %v867, 0.044715
        %v1279 = vmul.f32 %v676, 0.044715
        %v1280 = vmul.f32 %v678, 0.044715
        %v1281 = vmul.f32 %v869, 0.044715
        %v1282 = vmul.f32 %v871, 0.044715
        %v1283 = vmul.f32 %v682, 0.044715
        %v1284 = vmul.f32 %v684, 0.044715
        %v1285 = vmul.f32 %v875, 0.044715
        %v1286 = vmul.f32 %v877, 0.044715
        %v1287 = vmul.f32 %v686, 0.044715
        %v1288 = vmul.f32 %v688, 0.044715
        %v1289 = vmul.f32 %v879, 0.044715
        %v1290 = vmul.f32 %v881, 0.044715
        %v1291 = vmul.f32 %v692, 0.044715
        %v1292 = vmul.f32 %v694, 0.044715
        %v1293 = vmul.f32 %v885, 0.044715
        %v1294 = vmul.f32 %v887, 0.044715
        %v1295 = vmul.f32 %v696, 0.044715
        %v1296 = vmul.f32 %v698, 0.044715
        %v1297 = vmul.f32 %v889, 0.044715
        %v1298 = vmul.f32 %v891, 0.044715
        %v1299 = vmul.f32 %v702, 0.044715
        %v1300 = vmul.f32 %v704, 0.044715
        %v1301 = vmul.f32 %v895, 0.044715
        %v1302 = vmul.f32 %v897, 0.044715
        %v1303 = vmul.f32 %v706, 0.044715
        %v1304 = vmul.f32 %v708, 0.044715
        %v1305 = vmul.f32 %v899, 0.044715
        %v1306 = vmul.f32 %v901, 0.044715
        %v1307 = vmul.f32 %v712, 0.044715
        %v1308 = vmul.f32 %v714, 0.044715
        %v1309 = vmul.f32 %v905, 0.044715
        %v1310 = vmul.f32 %v907, 0.044715
        %v1311 = vmul.f32 %v716, 0.044715
        %v1312 = vmul.f32 %v718, 0.044715
        %v1313 = vmul.f32 %v909, 0.044715
        %v1314 = vmul.f32 %v911, 0.044715
        %v1315 = vmul.f32 %v722, 0.044715
        %v1316 = vmul.f32 %v724, 0.044715
        %v1317 = vmul.f32 %v915, 0.044715
        %v1318 = vmul.f32 %v917, 0.044715
        %v1319 = vmul.f32 %v726, 0.044715
        %v1320 = vmul.f32 %v728, 0.044715
        %v1321 = vmul.f32 %v919, 0.044715
        %v1322 = vmul.f32 %v921, 0.044715
        %v1323 = vmul.f32 %v732, 0.044715
        %v1324 = vmul.f32 %v734, 0.044715
        %v1325 = vmul.f32 %v925, 0.044715
        %v1326 = vmul.f32 %v927, 0.044715
        %v1327 = vmul.f32 %v736, 0.044715
        %v1328 = vmul.f32 %v738, 0.044715
        %v1329 = vmul.f32 %v929, 0.044715
        %v1330 = vmul.f32 %v931, 0.044715
        %v1331 = vmul.f32 %v742, 0.044715
        %v1332 = vmul.f32 %v744, 0.044715
        %v1333 = vmul.f32 %v935, 0.044715
        %v1334 = vmul.f32 %v937, 0.044715
        %v1335 = vmul.f32 %v746, 0.044715
        %v1336 = vmul.f32 %v748, 0.044715
        %v1337 = vmul.f32 %v939, 0.044715
        %v1338 = vmul.f32 %v941, 0.044715
        %v1339 = vmul.f32 %v752, 0.044715
        %v1340 = vmul.f32 %v754, 0.044715
        %v1341 = vmul.f32 %v945, 0.044715
        %v1342 = vmul.f32 %v947, 0.044715
        %v1343 = vmul.f32 %v756, 0.044715
        %v1344 = vmul.f32 %v758, 0.044715
        %v1345 = vmul.f32 %v949, 0.044715
        %v1346 = vmul.f32 %v951, 0.044715
        %v1347 = vmul.f32 %v762, 0.044715
        %v1348 = vmul.f32 %v764, 0.044715
        %v1349 = vmul.f32 %v955, 0.044715
        %v1350 = vmul.f32 %v957, 0.044715
        %v1351 = vmul.f32 %v766, 0.044715
        %v1352 = vmul.f32 %v768, 0.044715
        %v1353 = vmul.f32 %v959, 0.044715
        %v1354 = vmul.f32 %v961, 0.044715
        %v1355 = vmul.f32 %v772, 0.044715
        %v1356 = vmul.f32 %v774, 0.044715
        %v1357 = vmul.f32 %v965, 0.044715
        %v1358 = vmul.f32 %v967, 0.044715
        %v1359 = vmul.f32 %v776, 0.044715
        %v1360 = vmul.f32 %v778, 0.044715
        %v1361 = vmul.f32 %v969, 0.044715
        %v1362 = vmul.f32 %v971, 0.044715
        %v1363 = vmul.f32 %v782, 0.044715
        %v1364 = vmul.f32 %v784, 0.044715
        %v1365 = vmul.f32 %v975, 0.044715
        %v1366 = vmul.f32 %v977, 0.044715
        %v1367 = vmul.f32 %v786, 0.044715
        %v1368 = vmul.f32 %v788, 0.044715
        %v1369 = vmul.f32 %v979, 0.044715
        %v1370 = vmul.f32 %v981, 0.044715
        %v1371 = vmul.f32 %v792, 0.044715
        %v1372 = vmul.f32 %v794, 0.044715
        %v1373 = vmul.f32 %v985, 0.044715
        %v1374 = vmul.f32 %v987, 0.044715
        %v1375 = vmul.f32 %v796, 0.044715
        %v1376 = vmul.f32 %v798, 0.044715
        %v1377 = vmul.f32 %v989, 0.044715
        %v1378 = vmul.f32 %v991, 0.044715
        %v1379 = vmul.f32 %v802, 0.044715
        %v1380 = vmul.f32 %v804, 0.044715
        %v1381 = vmul.f32 %v995, 0.044715
        %v1382 = vmul.f32 %v997, 0.044715
        %v1383 = vmul.f32 %v806, 0.044715
        %v1384 = vmul.f32 %v808, 0.044715
        %v1385 = vmul.f32 %v999, 0.044715
        %v1386 = vmul.f32 %v1001, 0.044715
        %v1387 = vmul.f32 %v1259, %v652
        %v1388 = vmul.f32 %v1260, %v654
        %v1389 = vmul.f32 %v1261, %v845
        %v1390 = vmul.f32 %v1262, %v847
        %v1391 = vmul.f32 %v1263, %v656
        %v1392 = vmul.f32 %v1264, %v658
        %v1393 = vmul.f32 %v1265, %v849
        %v1394 = vmul.f32 %v1266, %v851
        %v1395 = vmul.f32 %v1267, %v662
        %v1396 = vmul.f32 %v1268, %v664
        %v1397 = vmul.f32 %v1269, %v855
        %v1398 = vmul.f32 %v1270, %v857
        %v1399 = vmul.f32 %v1271, %v666
        %v1400 = vmul.f32 %v1272, %v668
        %v1401 = vmul.f32 %v1273, %v859
        %v1402 = vmul.f32 %v1274, %v861
        %v1403 = vmul.f32 %v1275, %v672
        %v1404 = vmul.f32 %v1276, %v674
        %v1405 = vmul.f32 %v1277, %v865
        %v1406 = vmul.f32 %v1278, %v867
        %v1407 = vmul.f32 %v1279, %v676
        %v1408 = vmul.f32 %v1280, %v678
        %v1409 = vmul.f32 %v1281, %v869
        %v1410 = vmul.f32 %v1282, %v871
        %v1411 = vmul.f32 %v1283, %v682
        %v1412 = vmul.f32 %v1284, %v684
        %v1413 = vmul.f32 %v1285, %v875
        %v1414 = vmul.f32 %v1286, %v877
        %v1415 = vmul.f32 %v1287, %v686
        %v1416 = vmul.f32 %v1288, %v688
        %v1417 = vmul.f32 %v1289, %v879
        %v1418 = vmul.f32 %v1290, %v881
        %v1419 = vmul.f32 %v1291, %v692
        %v1420 = vmul.f32 %v1292, %v694
        %v1421 = vmul.f32 %v1293, %v885
        %v1422 = vmul.f32 %v1294, %v887
        %v1423 = vmul.f32 %v1295, %v696
        %v1424 = vmul.f32 %v1296, %v698
        %v1425 = vmul.f32 %v1297, %v889
        %v1426 = vmul.f32 %v1298, %v891
        %v1427 = vmul.f32 %v1299, %v702
        %v1428 = vmul.f32 %v1300, %v704
        %v1429 = vmul.f32 %v1301, %v895
        %v1430 = vmul.f32 %v1302, %v897
        %v1431 = vmul.f32 %v1303, %v706
        %v1432 = vmul.f32 %v1304, %v708
        %v1433 = vmul.f32 %v1305, %v899
        %v1434 = vmul.f32 %v1306, %v901
        %v1435 = vmul.f32 %v1307, %v712
        %v1436 = vmul.f32 %v1308, %v714
        %v1437 = vmul.f32 %v1309, %v905
        %v1438 = vmul.f32 %v1310, %v907
        %v1439 = vmul.f32 %v1311, %v716
        %v1440 = vmul.f32 %v1312, %v718
        %v1441 = vmul.f32 %v1313, %v909
        %v1442 = vmul.f32 %v1314, %v911
        %v1443 = vmul.f32 %v1315, %v722
        %v1444 = vmul.f32 %v1316, %v724
        %v1445 = vmul.f32 %v1317, %v915
        %v1446 = vmul.f32 %v1318, %v917
        %v1447 = vmul.f32 %v1319, %v726
        %v1448 = vmul.f32 %v1320, %v728
        %v1449 = vmul.f32 %v1321, %v919
        %v1450 = vmul.f32 %v1322, %v921
        %v1451 = vmul.f32 %v1323, %v732
        %v1452 = vmul.f32 %v1324, %v734
        %v1453 = vmul.f32 %v1325, %v925
        %v1454 = vmul.f32 %v1326, %v927
        %v1455 = vmul.f32 %v1327, %v736
        %v1456 = vmul.f32 %v1328, %v738
        %v1457 = vmul.f32 %v1329, %v929
        %v1458 = vmul.f32 %v1330, %v931
        %v1459 = vmul.f32 %v1331, %v742
        %v1460 = vmul.f32 %v1332, %v744
        %v1461 = vmul.f32 %v1333, %v935
        %v1462 = vmul.f32 %v1334, %v937
        %v1463 = vmul.f32 %v1335, %v746
        %v1464 = vmul.f32 %v1336, %v748
        %v1465 = vmul.f32 %v1337, %v939
        %v1466 = vmul.f32 %v1338, %v941
        %v1467 = vmul.f32 %v1339, %v752
        %v1468 = vmul.f32 %v1340, %v754
        %v1469 = vmul.f32 %v1341, %v945
        %v1470 = vmul.f32 %v1342, %v947
        %v1471 = vmul.f32 %v1343, %v756
        %v1472 = vmul.f32 %v1344, %v758
        %v1473 = vmul.f32 %v1345, %v949
        %v1474 = vmul.f32 %v1346, %v951
        %v1475 = vmul.f32 %v1347, %v762
        %v1476 = vmul.f32 %v1348, %v764
        %v1477 = vmul.f32 %v1349, %v955
        %v1478 = vmul.f32 %v1350, %v957
        %v1479 = vmul.f32 %v1351, %v766
        %v1480 = vmul.f32 %v1352, %v768
        %v1481 = vmul.f32 %v1353, %v959
        %v1482 = vmul.f32 %v1354, %v961
        %v1483 = vmul.f32 %v1355, %v772
        %v1484 = vmul.f32 %v1356, %v774
        %v1485 = vmul.f32 %v1357, %v965
        %v1486 = vmul.f32 %v1358, %v967
        %v1487 = vmul.f32 %v1359, %v776
        %v1488 = vmul.f32 %v1360, %v778
        %v1489 = vmul.f32 %v1361, %v969
        %v1490 = vmul.f32 %v1362, %v971
        %v1491 = vmul.f32 %v1363, %v782
        %v1492 = vmul.f32 %v1364, %v784
        %v1493 = vmul.f32 %v1365, %v975
        %v1494 = vmul.f32 %v1366, %v977
        %v1495 = vmul.f32 %v1367, %v786
        %v1496 = vmul.f32 %v1368, %v788
        %v1497 = vmul.f32 %v1369, %v979
        %v1498 = vmul.f32 %v1370, %v981
        %v1499 = vmul.f32 %v1371, %v792
        %v1500 = vmul.f32 %v1372, %v794
        %v1501 = vmul.f32 %v1373, %v985
        %v1502 = vmul.f32 %v1374, %v987
        %v1503 = vmul.f32 %v1375, %v796
        %v1504 = vmul.f32 %v1376, %v798
        %v1505 = vmul.f32 %v1377, %v989
        %v1506 = vmul.f32 %v1378, %v991
        %v1507 = vmul.f32 %v1379, %v802
        %v1508 = vmul.f32 %v1380, %v804
        %v1509 = vmul.f32 %v1381, %v995
        %v1510 = vmul.f32 %v1382, %v997
        %v1511 = vmul.f32 %v1383, %v806
        %v1512 = vmul.f32 %v1384, %v808
        %v1513 = vmul.f32 %v1385, %v999
        %v1514 = vmul.f32 %v1386, %v1001
        %v1515 = vadd.f32 %v1387, 1.0
        %v1516 = vadd.f32 %v1388, 1.0
        %v1517 = vadd.f32 %v1389, 1.0
        %v1518 = vadd.f32 %v1390, 1.0
        %v1519 = vadd.f32 %v1391, 1.0
        %v1520 = vadd.f32 %v1392, 1.0
        %v1521 = vadd.f32 %v1393, 1.0
        %v1522 = vadd.f32 %v1394, 1.0
        %v1523 = vadd.f32 %v1395, 1.0
        %v1524 = vadd.f32 %v1396, 1.0
        %v1525 = vadd.f32 %v1397, 1.0
        %v1526 = vadd.f32 %v1398, 1.0
        %v1527 = vadd.f32 %v1399, 1.0
        %v1528 = vadd.f32 %v1400, 1.0
        %v1529 = vadd.f32 %v1401, 1.0
        %v1530 = vadd.f32 %v1402, 1.0
        %v1531 = vadd.f32 %v1403, 1.0
        %v1532 = vadd.f32 %v1404, 1.0
        %v1533 = vadd.f32 %v1405, 1.0
        %v1534 = vadd.f32 %v1406, 1.0
        %v1535 = vadd.f32 %v1407, 1.0
        %v1536 = vadd.f32 %v1408, 1.0
        %v1537 = vadd.f32 %v1409, 1.0
        %v1538 = vadd.f32 %v1410, 1.0
        %v1539 = vadd.f32 %v1411, 1.0
        %v1540 = vadd.f32 %v1412, 1.0
        %v1541 = vadd.f32 %v1413, 1.0
        %v1542 = vadd.f32 %v1414, 1.0
        %v1543 = vadd.f32 %v1415, 1.0
        %v1544 = vadd.f32 %v1416, 1.0
        %v1545 = vadd.f32 %v1417, 1.0
        %v1546 = vadd.f32 %v1418, 1.0
        %v1547 = vadd.f32 %v1419, 1.0
        %v1548 = vadd.f32 %v1420, 1.0
        %v1549 = vadd.f32 %v1421, 1.0
        %v1550 = vadd.f32 %v1422, 1.0
        %v1551 = vadd.f32 %v1423, 1.0
        %v1552 = vadd.f32 %v1424, 1.0
        %v1553 = vadd.f32 %v1425, 1.0
        %v1554 = vadd.f32 %v1426, 1.0
        %v1555 = vadd.f32 %v1427, 1.0
        %v1556 = vadd.f32 %v1428, 1.0
        %v1557 = vadd.f32 %v1429, 1.0
        %v1558 = vadd.f32 %v1430, 1.0
        %v1559 = vadd.f32 %v1431, 1.0
        %v1560 = vadd.f32 %v1432, 1.0
        %v1561 = vadd.f32 %v1433, 1.0
        %v1562 = vadd.f32 %v1434, 1.0
        %v1563 = vadd.f32 %v1435, 1.0
        %v1564 = vadd.f32 %v1436, 1.0
        %v1565 = vadd.f32 %v1437, 1.0
        %v1566 = vadd.f32 %v1438, 1.0
        %v1567 = vadd.f32 %v1439, 1.0
        %v1568 = vadd.f32 %v1440, 1.0
        %v1569 = vadd.f32 %v1441, 1.0
        %v1570 = vadd.f32 %v1442, 1.0
        %v1571 = vadd.f32 %v1443, 1.0
        %v1572 = vadd.f32 %v1444, 1.0
        %v1573 = vadd.f32 %v1445, 1.0
        %v1574 = vadd.f32 %v1446, 1.0
        %v1575 = vadd.f32 %v1447, 1.0
        %v1576 = vadd.f32 %v1448, 1.0
        %v1577 = vadd.f32 %v1449, 1.0
        %v1578 = vadd.f32 %v1450, 1.0
        %v1579 = vadd.f32 %v1451, 1.0
        %v1580 = vadd.f32 %v1452, 1.0
        %v1581 = vadd.f32 %v1453, 1.0
        %v1582 = vadd.f32 %v1454, 1.0
        %v1583 = vadd.f32 %v1455, 1.0
        %v1584 = vadd.f32 %v1456, 1.0
        %v1585 = vadd.f32 %v1457, 1.0
        %v1586 = vadd.f32 %v1458, 1.0
        %v1587 = vadd.f32 %v1459, 1.0
        %v1588 = vadd.f32 %v1460, 1.0
        %v1589 = vadd.f32 %v1461, 1.0
        %v1590 = vadd.f32 %v1462, 1.0
        %v1591 = vadd.f32 %v1463, 1.0
        %v1592 = vadd.f32 %v1464, 1.0
        %v1593 = vadd.f32 %v1465, 1.0
        %v1594 = vadd.f32 %v1466, 1.0
        %v1595 = vadd.f32 %v1467, 1.0
        %v1596 = vadd.f32 %v1468, 1.0
        %v1597 = vadd.f32 %v1469, 1.0
        %v1598 = vadd.f32 %v1470, 1.0
        %v1599 = vadd.f32 %v1471, 1.0
        %v1600 = vadd.f32 %v1472, 1.0
        %v1601 = vadd.f32 %v1473, 1.0
        %v1602 = vadd.f32 %v1474, 1.0
        %v1603 = vadd.f32 %v1475, 1.0
        %v1604 = vadd.f32 %v1476, 1.0
        %v1605 = vadd.f32 %v1477, 1.0
        %v1606 = vadd.f32 %v1478, 1.0
        %v1607 = vadd.f32 %v1479, 1.0
        %v1608 = vadd.f32 %v1480, 1.0
        %v1609 = vadd.f32 %v1481, 1.0
        %v1610 = vadd.f32 %v1482, 1.0
        %v1611 = vadd.f32 %v1483, 1.0
        %v1612 = vadd.f32 %v1484, 1.0
        %v1613 = vadd.f32 %v1485, 1.0
        %v1614 = vadd.f32 %v1486, 1.0
        %v1615 = vadd.f32 %v1487, 1.0
        %v1616 = vadd.f32 %v1488, 1.0
        %v1617 = vadd.f32 %v1489, 1.0
        %v1618 = vadd.f32 %v1490, 1.0
        %v1619 = vadd.f32 %v1491, 1.0
        %v1620 = vadd.f32 %v1492, 1.0
        %v1621 = vadd.f32 %v1493, 1.0
        %v1622 = vadd.f32 %v1494, 1.0
        %v1623 = vadd.f32 %v1495, 1.0
        %v1624 = vadd.f32 %v1496, 1.0
        %v1625 = vadd.f32 %v1497, 1.0
        %v1626 = vadd.f32 %v1498, 1.0
        %v1627 = vadd.f32 %v1499, 1.0
        %v1628 = vadd.f32 %v1500, 1.0
        %v1629 = vadd.f32 %v1501, 1.0
        %v1630 = vadd.f32 %v1502, 1.0
        %v1631 = vadd.f32 %v1503, 1.0
        %v1632 = vadd.f32 %v1504, 1.0
        %v1633 = vadd.f32 %v1505, 1.0
        %v1634 = vadd.f32 %v1506, 1.0
        %v1635 = vadd.f32 %v1507, 1.0
        %v1636 = vadd.f32 %v1508, 1.0
        %v1637 = vadd.f32 %v1509, 1.0
        %v1638 = vadd.f32 %v1510, 1.0
        %v1639 = vadd.f32 %v1511, 1.0
        %v1640 = vadd.f32 %v1512, 1.0
        %v1641 = vadd.f32 %v1513, 1.0
        %v1642 = vadd.f32 %v1514, 1.0
        %v1643 = vmul.f32 %v1131, %v1515
        %v1644 = vmul.f32 %v1132, %v1516
        %v1645 = vmul.f32 %v1133, %v1517
        %v1646 = vmul.f32 %v1134, %v1518
        %v1647 = vmul.f32 %v1135, %v1519
        %v1648 = vmul.f32 %v1136, %v1520
        %v1649 = vmul.f32 %v1137, %v1521
        %v1650 = vmul.f32 %v1138, %v1522
        %v1651 = vmul.f32 %v1139, %v1523
        %v1652 = vmul.f32 %v1140, %v1524
        %v1653 = vmul.f32 %v1141, %v1525
        %v1654 = vmul.f32 %v1142, %v1526
        %v1655 = vmul.f32 %v1143, %v1527
        %v1656 = vmul.f32 %v1144, %v1528
        %v1657 = vmul.f32 %v1145, %v1529
        %v1658 = vmul.f32 %v1146, %v1530
        %v1659 = vmul.f32 %v1147, %v1531
        %v1660 = vmul.f32 %v1148, %v1532
        %v1661 = vmul.f32 %v1149, %v1533
        %v1662 = vmul.f32 %v1150, %v1534
        %v1663 = vmul.f32 %v1151, %v1535
        %v1664 = vmul.f32 %v1152, %v1536
        %v1665 = vmul.f32 %v1153, %v1537
        %v1666 = vmul.f32 %v1154, %v1538
        %v1667 = vmul.f32 %v1155, %v1539
        %v1668 = vmul.f32 %v1156, %v1540
        %v1669 = vmul.f32 %v1157, %v1541
        %v1670 = vmul.f32 %v1158, %v1542
        %v1671 = vmul.f32 %v1159, %v1543
        %v1672 = vmul.f32 %v1160, %v1544
        %v1673 = vmul.f32 %v1161, %v1545
        %v1674 = vmul.f32 %v1162, %v1546
        %v1675 = vmul.f32 %v1163, %v1547
        %v1676 = vmul.f32 %v1164, %v1548
        %v1677 = vmul.f32 %v1165, %v1549
        %v1678 = vmul.f32 %v1166, %v1550
        %v1679 = vmul.f32 %v1167, %v1551
        %v1680 = vmul.f32 %v1168, %v1552
        %v1681 = vmul.f32 %v1169, %v1553
        %v1682 = vmul.f32 %v1170, %v1554
        %v1683 = vmul.f32 %v1171, %v1555
        %v1684 = vmul.f32 %v1172, %v1556
        %v1685 = vmul.f32 %v1173, %v1557
        %v1686 = vmul.f32 %v1174, %v1558
        %v1687 = vmul.f32 %v1175, %v1559
        %v1688 = vmul.f32 %v1176, %v1560
        %v1689 = vmul.f32 %v1177, %v1561
        %v1690 = vmul.f32 %v1178, %v1562
        %v1691 = vmul.f32 %v1179, %v1563
        %v1692 = vmul.f32 %v1180, %v1564
        %v1693 = vmul.f32 %v1181, %v1565
        %v1694 = vmul.f32 %v1182, %v1566
        %v1695 = vmul.f32 %v1183, %v1567
        %v1696 = vmul.f32 %v1184, %v1568
        %v1697 = vmul.f32 %v1185, %v1569
        %v1698 = vmul.f32 %v1186, %v1570
        %v1699 = vmul.f32 %v1187, %v1571
        %v1700 = vmul.f32 %v1188, %v1572
        %v1701 = vmul.f32 %v1189, %v1573
        %v1702 = vmul.f32 %v1190, %v1574
        %v1703 = vmul.f32 %v1191, %v1575
        %v1704 = vmul.f32 %v1192, %v1576
        %v1705 = vmul.f32 %v1193, %v1577
        %v1706 = vmul.f32 %v1194, %v1578
        %v1707 = vmul.f32 %v1195, %v1579
        %v1708 = vmul.f32 %v1196, %v1580
        %v1709 = vmul.f32 %v1197, %v1581
        %v1710 = vmul.f32 %v1198, %v1582
        %v1711 = vmul.f32 %v1199, %v1583
        %v1712 = vmul.f32 %v1200, %v1584
        %v1713 = vmul.f32 %v1201, %v1585
        %v1714 = vmul.f32 %v1202, %v1586
        %v1715 = vmul.f32 %v1203, %v1587
        %v1716 = vmul.f32 %v1204, %v1588
        %v1717 = vmul.f32 %v1205, %v1589
        %v1718 = vmul.f32 %v1206, %v1590
        %v1719 = vmul.f32 %v1207, %v1591
        %v1720 = vmul.f32 %v1208, %v1592
        %v1721 = vmul.f32 %v1209, %v1593
        %v1722 = vmul.f32 %v1210, %v1594
        %v1723 = vmul.f32 %v1211, %v1595
        %v1724 = vmul.f32 %v1212, %v1596
        %v1725 = vmul.f32 %v1213, %v1597
        %v1726 = vmul.f32 %v1214, %v1598
        %v1727 = vmul.f32 %v1215, %v1599
        %v1728 = vmul.f32 %v1216, %v1600
        %v1729 = vmul.f32 %v1217, %v1601
        %v1730 = vmul.f32 %v1218, %v1602
        %v1731 = vmul.f32 %v1219, %v1603
        %v1732 = vmul.f32 %v1220, %v1604
        %v1733 = vmul.f32 %v1221, %v1605
        %v1734 = vmul.f32 %v1222, %v1606
        %v1735 = vmul.f32 %v1223, %v1607
        %v1736 = vmul.f32 %v1224, %v1608
        %v1737 = vmul.f32 %v1225, %v1609
        %v1738 = vmul.f32 %v1226, %v1610
        %v1739 = vmul.f32 %v1227, %v1611
        %v1740 = vmul.f32 %v1228, %v1612
        %v1741 = vmul.f32 %v1229, %v1613
        %v1742 = vmul.f32 %v1230, %v1614
        %v1743 = vmul.f32 %v1231, %v1615
        %v1744 = vmul.f32 %v1232, %v1616
        %v1745 = vmul.f32 %v1233, %v1617
        %v1746 = vmul.f32 %v1234, %v1618
        %v1747 = vmul.f32 %v1235, %v1619
        %v1748 = vmul.f32 %v1236, %v1620
        %v1749 = vmul.f32 %v1237, %v1621
        %v1750 = vmul.f32 %v1238, %v1622
        %v1751 = vmul.f32 %v1239, %v1623
        %v1752 = vmul.f32 %v1240, %v1624
        %v1753 = vmul.f32 %v1241, %v1625
        %v1754 = vmul.f32 %v1242, %v1626
        %v1755 = vmul.f32 %v1243, %v1627
        %v1756 = vmul.f32 %v1244, %v1628
        %v1757 = vmul.f32 %v1245, %v1629
        %v1758 = vmul.f32 %v1246, %v1630
        %v1759 = vmul.f32 %v1247, %v1631
        %v1760 = vmul.f32 %v1248, %v1632
        %v1761 = vmul.f32 %v1249, %v1633
        %v1762 = vmul.f32 %v1250, %v1634
        %v1763 = vmul.f32 %v1251, %v1635
        %v1764 = vmul.f32 %v1252, %v1636
        %v1765 = vmul.f32 %v1253, %v1637
        %v1766 = vmul.f32 %v1254, %v1638
        %v1767 = vmul.f32 %v1255, %v1639
        %v1768 = vmul.f32 %v1256, %v1640
        %v1769 = vmul.f32 %v1257, %v1641
        %v1770 = vmul.f32 %v1258, %v1642
        %v1771 = vtanh.pop %v1643
        %v1772 = vtanh.pop %v1644
        %v1773 = vtanh.pop %v1645
        %v1774 = vtanh.pop %v1646
        %v1775 = vtanh.pop %v1647
        %v1776 = vtanh.pop %v1648
        %v1777 = vtanh.pop %v1649
        %v1778 = vtanh.pop %v1650
        %v1779 = vtanh.pop %v1651
        %v1780 = vtanh.pop %v1652
        %v1781 = vtanh.pop %v1653
        %v1782 = vtanh.pop %v1654
        %v1783 = vtanh.pop %v1655
        %v1784 = vtanh.pop %v1656
        %v1785 = vtanh.pop %v1657
        %v1786 = vtanh.pop %v1658
        %v1787 = vtanh.pop %v1659
        %v1788 = vtanh.pop %v1660
        %v1789 = vtanh.pop %v1661
        %v1790 = vtanh.pop %v1662
        %v1791 = vtanh.pop %v1663
        %v1792 = vtanh.pop %v1664
        %v1793 = vtanh.pop %v1665
        %v1794 = vtanh.pop %v1666
        %v1795 = vtanh.pop %v1667
        %v1796 = vtanh.pop %v1668
        %v1797 = vtanh.pop %v1669
        %v1798 = vtanh.pop %v1670
        %v1799 = vtanh.pop %v1671
        %v1800 = vtanh.pop %v1672
        %v1801 = vtanh.pop %v1673
        %v1802 = vtanh.pop %v1674
        %v1803 = vtanh.pop %v1675
        %v1804 = vtanh.pop %v1676
        %v1805 = vtanh.pop %v1677
        %v1806 = vtanh.pop %v1678
        %v1807 = vtanh.pop %v1679
        %v1808 = vtanh.pop %v1680
        %v1809 = vtanh.pop %v1681
        %v1810 = vtanh.pop %v1682
        %v1811 = vtanh.pop %v1683
        %v1812 = vtanh.pop %v1684
        %v1813 = vtanh.pop %v1685
        %v1814 = vtanh.pop %v1686
        %v1815 = vtanh.pop %v1687
        %v1816 = vtanh.pop %v1688
        %v1817 = vtanh.pop %v1689
        %v1818 = vtanh.pop %v1690
        %v1819 = vtanh.pop %v1691
        %v1820 = vtanh.pop %v1692
        %v1821 = vtanh.pop %v1693
        %v1822 = vtanh.pop %v1694
        %v1823 = vtanh.pop %v1695
        %v1824 = vtanh.pop %v1696
        %v1825 = vtanh.pop %v1697
        %v1826 = vtanh.pop %v1698
        %v1827 = vtanh.pop %v1699
        %v1828 = vtanh.pop %v1700
        %v1829 = vtanh.pop %v1701
        %v1830 = vtanh.pop %v1702
        %v1831 = vtanh.pop %v1703
        %v1832 = vtanh.pop %v1704
        %v1833 = vtanh.pop %v1705
        %v1834 = vtanh.pop %v1706
        %v1835 = vtanh.pop %v1707
        %v1836 = vtanh.pop %v1708
        %v1837 = vtanh.pop %v1709
        %v1838 = vtanh.pop %v1710
        %v1839 = vtanh.pop %v1711
        %v1840 = vtanh.pop %v1712
        %v1841 = vtanh.pop %v1713
        %v1842 = vtanh.pop %v1714
        %v1843 = vtanh.pop %v1715
        %v1844 = vtanh.pop %v1716
        %v1845 = vtanh.pop %v1717
        %v1846 = vtanh.pop %v1718
        %v1847 = vtanh.pop %v1719
        %v1848 = vtanh.pop %v1720
        %v1849 = vtanh.pop %v1721
        %v1850 = vtanh.pop %v1722
        %v1851 = vtanh.pop %v1723
        %v1852 = vtanh.pop %v1724
        %v1853 = vtanh.pop %v1725
        %v1854 = vtanh.pop %v1726
        %v1855 = vtanh.pop %v1727
        %v1856 = vtanh.pop %v1728
        %v1857 = vtanh.pop %v1729
        %v1858 = vtanh.pop %v1730
        %v1859 = vtanh.pop %v1731
        %v1860 = vtanh.pop %v1732
        %v1861 = vtanh.pop %v1733
        %v1862 = vtanh.pop %v1734
        %v1863 = vtanh.pop %v1735
        %v1864 = vtanh.pop %v1736
        %v1865 = vtanh.pop %v1737
        %v1866 = vtanh.pop %v1738
        %v1867 = vtanh.pop %v1739
        %v1868 = vtanh.pop %v1740
        %v1869 = vtanh.pop %v1741
        %v1870 = vtanh.pop %v1742
        %v1871 = vtanh.pop %v1743
        %v1872 = vtanh.pop %v1744
        %v1873 = vtanh.pop %v1745
        %v1874 = vtanh.pop %v1746
        %v1875 = vtanh.pop %v1747
        %v1876 = vtanh.pop %v1748
        %v1877 = vtanh.pop %v1749
        %v1878 = vtanh.pop %v1750
        %v1879 = vtanh.pop %v1751
        %v1880 = vtanh.pop %v1752
        %v1881 = vtanh.pop %v1753
        %v1882 = vtanh.pop %v1754
        %v1883 = vtanh.pop %v1755
        %v1884 = vtanh.pop %v1756
        %v1885 = vtanh.pop %v1757
        %v1886 = vtanh.pop %v1758
        %v1887 = vtanh.pop %v1759
        %v1888 = vtanh.pop %v1760
        %v1889 = vtanh.pop %v1761
        %v1890 = vtanh.pop %v1762
        %v1891 = vtanh.pop %v1763
        %v1892 = vtanh.pop %v1764
        %v1893 = vtanh.pop %v1765
        %v1894 = vtanh.pop %v1766
        %v1895 = vtanh.pop %v1767
        %v1896 = vtanh.pop %v1768
        %v1897 = vtanh.pop %v1769
        %v1898 = vtanh.pop %v1770
        %v1899 = vadd.f32 %v1771, 1.0
        %v1900 = vadd.f32 %v1772, 1.0
        %v1901 = vadd.f32 %v1773, 1.0
        %v1902 = vadd.f32 %v1774, 1.0
        %v1903 = vadd.f32 %v1775, 1.0
        %v1904 = vadd.f32 %v1776, 1.0
        %v1905 = vadd.f32 %v1777, 1.0
        %v1906 = vadd.f32 %v1778, 1.0
        %v1907 = vadd.f32 %v1779, 1.0
        %v1908 = vadd.f32 %v1780, 1.0
        %v1909 = vadd.f32 %v1781, 1.0
        %v1910 = vadd.f32 %v1782, 1.0
        %v1911 = vadd.f32 %v1783, 1.0
        %v1912 = vadd.f32 %v1784, 1.0
        %v1913 = vadd.f32 %v1785, 1.0
        %v1914 = vadd.f32 %v1786, 1.0
        %v1915 = vadd.f32 %v1787, 1.0
        %v1916 = vadd.f32 %v1788, 1.0
        %v1917 = vadd.f32 %v1789, 1.0
        %v1918 = vadd.f32 %v1790, 1.0
        %v1919 = vadd.f32 %v1791, 1.0
        %v1920 = vadd.f32 %v1792, 1.0
        %v1921 = vadd.f32 %v1793, 1.0
        %v1922 = vadd.f32 %v1794, 1.0
        %v1923 = vadd.f32 %v1795, 1.0
        %v1924 = vadd.f32 %v1796, 1.0
        %v1925 = vadd.f32 %v1797, 1.0
        %v1926 = vadd.f32 %v1798, 1.0
        %v1927 = vadd.f32 %v1799, 1.0
        %v1928 = vadd.f32 %v1800, 1.0
        %v1929 = vadd.f32 %v1801, 1.0
        %v1930 = vadd.f32 %v1802, 1.0
        %v1931 = vadd.f32 %v1803, 1.0
        %v1932 = vadd.f32 %v1804, 1.0
        %v1933 = vadd.f32 %v1805, 1.0
        %v1934 = vadd.f32 %v1806, 1.0
        %v1935 = vadd.f32 %v1807, 1.0
        %v1936 = vadd.f32 %v1808, 1.0
        %v1937 = vadd.f32 %v1809, 1.0
        %v1938 = vadd.f32 %v1810, 1.0
        %v1939 = vadd.f32 %v1811, 1.0
        %v1940 = vadd.f32 %v1812, 1.0
        %v1941 = vadd.f32 %v1813, 1.0
        %v1942 = vadd.f32 %v1814, 1.0
        %v1943 = vadd.f32 %v1815, 1.0
        %v1944 = vadd.f32 %v1816, 1.0
        %v1945 = vadd.f32 %v1817, 1.0
        %v1946 = vadd.f32 %v1818, 1.0
        %v1947 = vadd.f32 %v1819, 1.0
        %v1948 = vadd.f32 %v1820, 1.0
        %v1949 = vadd.f32 %v1821, 1.0
        %v1950 = vadd.f32 %v1822, 1.0
        %v1951 = vadd.f32 %v1823, 1.0
        %v1952 = vadd.f32 %v1824, 1.0
        %v1953 = vadd.f32 %v1825, 1.0
        %v1954 = vadd.f32 %v1826, 1.0
        %v1955 = vadd.f32 %v1827, 1.0
        %v1956 = vadd.f32 %v1828, 1.0
        %v1957 = vadd.f32 %v1829, 1.0
        %v1958 = vadd.f32 %v1830, 1.0
        %v1959 = vadd.f32 %v1831, 1.0
        %v1960 = vadd.f32 %v1832, 1.0
        %v1961 = vadd.f32 %v1833, 1.0
        %v1962 = vadd.f32 %v1834, 1.0
        %v1963 = vadd.f32 %v1835, 1.0
        %v1964 = vadd.f32 %v1836, 1.0
        %v1965 = vadd.f32 %v1837, 1.0
        %v1966 = vadd.f32 %v1838, 1.0
        %v1967 = vadd.f32 %v1839, 1.0
        %v1968 = vadd.f32 %v1840, 1.0
        %v1969 = vadd.f32 %v1841, 1.0
        %v1970 = vadd.f32 %v1842, 1.0
        %v1971 = vadd.f32 %v1843, 1.0
        %v1972 = vadd.f32 %v1844, 1.0
        %v1973 = vadd.f32 %v1845, 1.0
        %v1974 = vadd.f32 %v1846, 1.0
        %v1975 = vadd.f32 %v1847, 1.0
        %v1976 = vadd.f32 %v1848, 1.0
        %v1977 = vadd.f32 %v1849, 1.0
        %v1978 = vadd.f32 %v1850, 1.0
        %v1979 = vadd.f32 %v1851, 1.0
        %v1980 = vadd.f32 %v1852, 1.0
        %v1981 = vadd.f32 %v1853, 1.0
        %v1982 = vadd.f32 %v1854, 1.0
        %v1983 = vadd.f32 %v1855, 1.0
        %v1984 = vadd.f32 %v1856, 1.0
        %v1985 = vadd.f32 %v1857, 1.0
        %v1986 = vadd.f32 %v1858, 1.0
        %v1987 = vadd.f32 %v1859, 1.0
        %v1988 = vadd.f32 %v1860, 1.0
        %v1989 = vadd.f32 %v1861, 1.0
        %v1990 = vadd.f32 %v1862, 1.0
        %v1991 = vadd.f32 %v1863, 1.0
        %v1992 = vadd.f32 %v1864, 1.0
        %v1993 = vadd.f32 %v1865, 1.0
        %v1994 = vadd.f32 %v1866, 1.0
        %v1995 = vadd.f32 %v1867, 1.0
        %v1996 = vadd.f32 %v1868, 1.0
        %v1997 = vadd.f32 %v1869, 1.0
        %v1998 = vadd.f32 %v1870, 1.0
        %v1999 = vadd.f32 %v1871, 1.0
        %v2000 = vadd.f32 %v1872, 1.0
        %v2001 = vadd.f32 %v1873, 1.0
        %v2002 = vadd.f32 %v1874, 1.0
        %v2003 = vadd.f32 %v1875, 1.0
        %v2004 = vadd.f32 %v1876, 1.0
        %v2005 = vadd.f32 %v1877, 1.0
        %v2006 = vadd.f32 %v1878, 1.0
        %v2007 = vadd.f32 %v1879, 1.0
        %v2008 = vadd.f32 %v1880, 1.0
        %v2009 = vadd.f32 %v1881, 1.0
        %v2010 = vadd.f32 %v1882, 1.0
        %v2011 = vadd.f32 %v1883, 1.0
        %v2012 = vadd.f32 %v1884, 1.0
        %v2013 = vadd.f32 %v1885, 1.0
        %v2014 = vadd.f32 %v1886, 1.0
        %v2015 = vadd.f32 %v1887, 1.0
        %v2016 = vadd.f32 %v1888, 1.0
        %v2017 = vadd.f32 %v1889, 1.0
        %v2018 = vadd.f32 %v1890, 1.0
        %v2019 = vadd.f32 %v1891, 1.0
        %v2020 = vadd.f32 %v1892, 1.0
        %v2021 = vadd.f32 %v1893, 1.0
        %v2022 = vadd.f32 %v1894, 1.0
        %v2023 = vadd.f32 %v1895, 1.0
        %v2024 = vadd.f32 %v1896, 1.0
        %v2025 = vadd.f32 %v1897, 1.0
        %v2026 = vadd.f32 %v1898, 1.0
        %v2027 = vmul.f32 %v1003, %v1899
        %v2028 = vmul.f32 %v1004, %v1900
        %v2029 = vmul.f32 %v1005, %v1901
        %v2030 = vmul.f32 %v1006, %v1902
        %v2031 = vmul.f32 %v1007, %v1903
        %v2032 = vmul.f32 %v1008, %v1904
        %v2033 = vmul.f32 %v1009, %v1905
        %v2034 = vmul.f32 %v1010, %v1906
        %v2035 = vmul.f32 %v1011, %v1907
        %v2036 = vmul.f32 %v1012, %v1908
        %v2037 = vmul.f32 %v1013, %v1909
        %v2038 = vmul.f32 %v1014, %v1910
        %v2039 = vmul.f32 %v1015, %v1911
        %v2040 = vmul.f32 %v1016, %v1912
        %v2041 = vmul.f32 %v1017, %v1913
        %v2042 = vmul.f32 %v1018, %v1914
        %v2043 = vmul.f32 %v1019, %v1915
        %v2044 = vmul.f32 %v1020, %v1916
        %v2045 = vmul.f32 %v1021, %v1917
        %v2046 = vmul.f32 %v1022, %v1918
        %v2047 = vmul.f32 %v1023, %v1919
        %v2048 = vmul.f32 %v1024, %v1920
        %v2049 = vmul.f32 %v1025, %v1921
        %v2050 = vmul.f32 %v1026, %v1922
        %v2051 = vmul.f32 %v1027, %v1923
        %v2052 = vmul.f32 %v1028, %v1924
        %v2053 = vmul.f32 %v1029, %v1925
        %v2054 = vmul.f32 %v1030, %v1926
        %v2055 = vmul.f32 %v1031, %v1927
        %v2056 = vmul.f32 %v1032, %v1928
        %v2057 = vmul.f32 %v1033, %v1929
        %v2058 = vmul.f32 %v1034, %v1930
        %v2059 = vmul.f32 %v1035, %v1931
        %v2060 = vmul.f32 %v1036, %v1932
        %v2061 = vmul.f32 %v1037, %v1933
        %v2062 = vmul.f32 %v1038, %v1934
        %v2063 = vmul.f32 %v1039, %v1935
        %v2064 = vmul.f32 %v1040, %v1936
        %v2065 = vmul.f32 %v1041, %v1937
        %v2066 = vmul.f32 %v1042, %v1938
        %v2067 = vmul.f32 %v1043, %v1939
        %v2068 = vmul.f32 %v1044, %v1940
        %v2069 = vmul.f32 %v1045, %v1941
        %v2070 = vmul.f32 %v1046, %v1942
        %v2071 = vmul.f32 %v1047, %v1943
        %v2072 = vmul.f32 %v1048, %v1944
        %v2073 = vmul.f32 %v1049, %v1945
        %v2074 = vmul.f32 %v1050, %v1946
        %v2075 = vmul.f32 %v1051, %v1947
        %v2076 = vmul.f32 %v1052, %v1948
        %v2077 = vmul.f32 %v1053, %v1949
        %v2078 = vmul.f32 %v1054, %v1950
        %v2079 = vmul.f32 %v1055, %v1951
        %v2080 = vmul.f32 %v1056, %v1952
        %v2081 = vmul.f32 %v1057, %v1953
        %v2082 = vmul.f32 %v1058, %v1954
        %v2083 = vmul.f32 %v1059, %v1955
        %v2084 = vmul.f32 %v1060, %v1956
        %v2085 = vmul.f32 %v1061, %v1957
        %v2086 = vmul.f32 %v1062, %v1958
        %v2087 = vmul.f32 %v1063, %v1959
        %v2088 = vmul.f32 %v1064, %v1960
        %v2089 = vmul.f32 %v1065, %v1961
        %v2090 = vmul.f32 %v1066, %v1962
        %v2091 = vmul.f32 %v1067, %v1963
        %v2092 = vmul.f32 %v1068, %v1964
        %v2093 = vmul.f32 %v1069, %v1965
        %v2094 = vmul.f32 %v1070, %v1966
        %v2095 = vmul.f32 %v1071, %v1967
        %v2096 = vmul.f32 %v1072, %v1968
        %v2097 = vmul.f32 %v1073, %v1969
        %v2098 = vmul.f32 %v1074, %v1970
        %v2099 = vmul.f32 %v1075, %v1971
        %v2100 = vmul.f32 %v1076, %v1972
        %v2101 = vmul.f32 %v1077, %v1973
        %v2102 = vmul.f32 %v1078, %v1974
        %v2103 = vmul.f32 %v1079, %v1975
        %v2104 = vmul.f32 %v1080, %v1976
        %v2105 = vmul.f32 %v1081, %v1977
        %v2106 = vmul.f32 %v1082, %v1978
        %v2107 = vmul.f32 %v1083, %v1979
        %v2108 = vmul.f32 %v1084, %v1980
        %v2109 = vmul.f32 %v1085, %v1981
        %v2110 = vmul.f32 %v1086, %v1982
        %v2111 = vmul.f32 %v1087, %v1983
        %v2112 = vmul.f32 %v1088, %v1984
        %v2113 = vmul.f32 %v1089, %v1985
        %v2114 = vmul.f32 %v1090, %v1986
        %v2115 = vmul.f32 %v1091, %v1987
        %v2116 = vmul.f32 %v1092, %v1988
        %v2117 = vmul.f32 %v1093, %v1989
        %v2118 = vmul.f32 %v1094, %v1990
        %v2119 = vmul.f32 %v1095, %v1991
        %v2120 = vmul.f32 %v1096, %v1992
        %v2121 = vmul.f32 %v1097, %v1993
        %v2122 = vmul.f32 %v1098, %v1994
        %v2123 = vmul.f32 %v1099, %v1995
        %v2124 = vmul.f32 %v1100, %v1996
        %v2125 = vmul.f32 %v1101, %v1997
        %v2126 = vmul.f32 %v1102, %v1998
        %v2127 = vmul.f32 %v1103, %v1999
        %v2128 = vmul.f32 %v1104, %v2000
        %v2129 = vmul.f32 %v1105, %v2001
        %v2130 = vmul.f32 %v1106, %v2002
        %v2131 = vmul.f32 %v1107, %v2003
        %v2132 = vmul.f32 %v1108, %v2004
        %v2133 = vmul.f32 %v1109, %v2005
        %v2134 = vmul.f32 %v1110, %v2006
        %v2135 = vmul.f32 %v1111, %v2007
        %v2136 = vmul.f32 %v1112, %v2008
        %v2137 = vmul.f32 %v1113, %v2009
        %v2138 = vmul.f32 %v1114, %v2010
        %v2139 = vmul.f32 %v1115, %v2011
        %v2140 = vmul.f32 %v1116, %v2012
        %v2141 = vmul.f32 %v1117, %v2013
        %v2142 = vmul.f32 %v1118, %v2014
        %v2143 = vmul.f32 %v1119, %v2015
        %v2144 = vmul.f32 %v1120, %v2016
        %v2145 = vmul.f32 %v1121, %v2017
        %v2146 = vmul.f32 %v1122, %v2018
        %v2147 = vmul.f32 %v1123, %v2019
        %v2148 = vmul.f32 %v1124, %v2020
        %v2149 = vmul.f32 %v1125, %v2021
        %v2150 = vmul.f32 %v1126, %v2022
        %v2151 = vmul.f32 %v1127, %v2023
        %v2152 = vmul.f32 %v1128, %v2024
        %v2153 = vmul.f32 %v1129, %v2025
        %v2154 = vmul.f32 %v1130, %v2026
        %v2155 = vpack.c.bf16 %v2031, %v2027
        %v2156 = vpack.c.bf16 %v2032, %v2028
        %v2157 = vpack.c.bf16 %v2033, %v2029
        %v2158 = vpack.c.bf16 %v2034, %v2030
        %v2159 = vpack.c.bf16 %v2039, %v2035
        %v2160 = vpack.c.bf16 %v2040, %v2036
        %v2161 = vpack.c.bf16 %v2041, %v2037
        %v2162 = vpack.c.bf16 %v2042, %v2038
        %v2163 = vpack.c.bf16 %v2047, %v2043
        %v2164 = vpack.c.bf16 %v2048, %v2044
        %v2165 = vpack.c.bf16 %v2049, %v2045
        %v2166 = vpack.c.bf16 %v2050, %v2046
        %v2167 = vpack.c.bf16 %v2055, %v2051
        %v2168 = vpack.c.bf16 %v2056, %v2052
        %v2169 = vpack.c.bf16 %v2057, %v2053
        %v2170 = vpack.c.bf16 %v2058, %v2054
        %v2171 = vpack.c.bf16 %v2063, %v2059
        %v2172 = vpack.c.bf16 %v2064, %v2060
        %v2173 = vpack.c.bf16 %v2065, %v2061
        %v2174 = vpack.c.bf16 %v2066, %v2062
        %v2175 = vpack.c.bf16 %v2071, %v2067
        %v2176 = vpack.c.bf16 %v2072, %v2068
        %v2177 = vpack.c.bf16 %v2073, %v2069
        %v2178 = vpack.c.bf16 %v2074, %v2070
        %v2179 = vpack.c.bf16 %v2079, %v2075
        %v2180 = vpack.c.bf16 %v2080, %v2076
        %v2181 = vpack.c.bf16 %v2081, %v2077
        %v2182 = vpack.c.bf16 %v2082, %v2078
        %v2183 = vpack.c.bf16 %v2087, %v2083
        %v2184 = vpack.c.bf16 %v2088, %v2084
        %v2185 = vpack.c.bf16 %v2089, %v2085
        %v2186 = vpack.c.bf16 %v2090, %v2086
        %v2187 = vpack.c.bf16 %v2095, %v2091
        %v2188 = vpack.c.bf16 %v2096, %v2092
        %v2189 = vpack.c.bf16 %v2097, %v2093
        %v2190 = vpack.c.bf16 %v2098, %v2094
        %v2191 = vpack.c.bf16 %v2103, %v2099
        %v2192 = vpack.c.bf16 %v2104, %v2100
        %v2193 = vpack.c.bf16 %v2105, %v2101
        %v2194 = vpack.c.bf16 %v2106, %v2102
        %v2195 = vpack.c.bf16 %v2111, %v2107
        %v2196 = vpack.c.bf16 %v2112, %v2108
        %v2197 = vpack.c.bf16 %v2113, %v2109
        %v2198 = vpack.c.bf16 %v2114, %v2110
        %v2199 = vpack.c.bf16 %v2119, %v2115
        %v2200 = vpack.c.bf16 %v2120, %v2116
        %v2201 = vpack.c.bf16 %v2121, %v2117
        %v2202 = vpack.c.bf16 %v2122, %v2118
        %v2203 = vpack.c.bf16 %v2127, %v2123
        %v2204 = vpack.c.bf16 %v2128, %v2124
        %v2205 = vpack.c.bf16 %v2129, %v2125
        %v2206 = vpack.c.bf16 %v2130, %v2126
        %v2207 = vpack.c.bf16 %v2135, %v2131
        %v2208 = vpack.c.bf16 %v2136, %v2132
        %v2209 = vpack.c.bf16 %v2137, %v2133
        %v2210 = vpack.c.bf16 %v2138, %v2134
        %v2211 = vpack.c.bf16 %v2143, %v2139
        %v2212 = vpack.c.bf16 %v2144, %v2140
        %v2213 = vpack.c.bf16 %v2145, %v2141
        %v2214 = vpack.c.bf16 %v2146, %v2142
        %v2215 = vpack.c.bf16 %v2151, %v2147
        %v2216 = vpack.c.bf16 %v2152, %v2148
        %v2217 = vpack.c.bf16 %v2153, %v2149
        %v2218 = vpack.c.bf16 %v2154, %v2150
        %v2219 = vld [vmem:[#allocation7] sm:$0xf]
        %v2220 = vld [vmem:[#allocation7 + $0x4] sm:$0xf]
        %v2221 = vld [vmem:[#allocation7 + $0x8] sm:$0xf]
        %v2222 = vld [vmem:[#allocation7 + $0xc] sm:$0xf]
        %v2223 = vld [vmem:[#allocation7 + $0x10] sm:$0xf]
        %v2224 = vld [vmem:[#allocation7 + $0x14] sm:$0xf]
        %v2225 = vld [vmem:[#allocation7 + $0x18] sm:$0xf]
        %v2226 = vld [vmem:[#allocation7 + $0x1c] sm:$0xf]
        %v2227 = vld [vmem:[#allocation7 + $0x20] sm:$0xf]
        %v2228 = vld [vmem:[#allocation7 + $0x24] sm:$0xf]
        %v2229 = vld [vmem:[#allocation7 + $0x28] sm:$0xf]
        %v2230 = vld [vmem:[#allocation7 + $0x2c] sm:$0xf]
        %v2231 = vld [vmem:[#allocation7 + $0x30] sm:$0xf]
        %v2232 = vld [vmem:[#allocation7 + $0x34] sm:$0xf]
        %v2233 = vld [vmem:[#allocation7 + $0x38] sm:$0xf]
        %v2234 = vld [vmem:[#allocation7 + $0x3c] sm:$0xf]
        %v2235 = vld [vmem:[#allocation7 + $0x40] sm:$0xf]
        %v2236 = vld [vmem:[#allocation7 + $0x44] sm:$0xf]
        %v2237 = vld [vmem:[#allocation7 + $0x48] sm:$0xf]
        %v2238 = vld [vmem:[#allocation7 + $0x4c] sm:$0xf]
        %v2239 = vld [vmem:[#allocation7 + $0x50] sm:$0xf]
        %v2240 = vld [vmem:[#allocation7 + $0x54] sm:$0xf]
        %v2241 = vld [vmem:[#allocation7 + $0x58] sm:$0xf]
        %v2242 = vld [vmem:[#allocation7 + $0x5c] sm:$0xf]
        %v2243 = vld [vmem:[#allocation7 + $0x60] sm:$0xf]
        %v2244 = vld [vmem:[#allocation7 + $0x64] sm:$0xf]
        %v2245 = vld [vmem:[#allocation7 + $0x68] sm:$0xf]
        %v2246 = vld [vmem:[#allocation7 + $0x6c] sm:$0xf]
        %v2247 = vld [vmem:[#allocation7 + $0x70] sm:$0xf]
        %v2248 = vld [vmem:[#allocation7 + $0x74] sm:$0xf]
        %v2249 = vld [vmem:[#allocation7 + $0x78] sm:$0xf]
        %v2250 = vld [vmem:[#allocation7 + $0x7c] sm:$0xf]
        %v2251 = vld [vmem:[#allocation7 + $0x80] sm:$0xf]
        %v2252 = vld [vmem:[#allocation7 + $0x84] sm:$0xf]
        %v2253 = vld [vmem:[#allocation7 + $0x88] sm:$0xf]
        %v2254 = vld [vmem:[#allocation7 + $0x8c] sm:$0xf]
        %v2255 = vld [vmem:[#allocation7 + $0x90] sm:$0xf]
        %v2256 = vld [vmem:[#allocation7 + $0x94] sm:$0xf]
        %v2257 = vld [vmem:[#allocation7 + $0x98] sm:$0xf]
        %v2258 = vld [vmem:[#allocation7 + $0x9c] sm:$0xf]
        %v2259 = vld [vmem:[#allocation7 + $0xa0] sm:$0xf]
        %v2260 = vld [vmem:[#allocation7 + $0xa4] sm:$0xf]
        %v2261 = vld [vmem:[#allocation7 + $0xa8] sm:$0xf]
        %v2262 = vld [vmem:[#allocation7 + $0xac] sm:$0xf]
        %v2263 = vld [vmem:[#allocation7 + $0xb0] sm:$0xf]
        %v2264 = vld [vmem:[#allocation7 + $0xb4] sm:$0xf]
        %v2265 = vld [vmem:[#allocation7 + $0xb8] sm:$0xf]
        %v2266 = vld [vmem:[#allocation7 + $0xbc] sm:$0xf]
        %v2267 = vld [vmem:[#allocation7 + $0xc0] sm:$0xf]
        %v2268 = vld [vmem:[#allocation7 + $0xc4] sm:$0xf]
        %v2269 = vld [vmem:[#allocation7 + $0xc8] sm:$0xf]
        %v2270 = vld [vmem:[#allocation7 + $0xcc] sm:$0xf]
        %v2271 = vld [vmem:[#allocation7 + $0xd0] sm:$0xf]
        %v2272 = vld [vmem:[#allocation7 + $0xd4] sm:$0xf]
        %v2273 = vld [vmem:[#allocation7 + $0xd8] sm:$0xf]
        %v2274 = vld [vmem:[#allocation7 + $0xdc] sm:$0xf]
        %v2275 = vld [vmem:[#allocation7 + $0xe0] sm:$0xf]
        %v2276 = vld [vmem:[#allocation7 + $0xe4] sm:$0xf]
        %v2277 = vld [vmem:[#allocation7 + $0xe8] sm:$0xf]
        %v2278 = vld [vmem:[#allocation7 + $0xec] sm:$0xf]
        %v2279 = vld [vmem:[#allocation7 + $0xf0] sm:$0xf]
        %v2280 = vld [vmem:[#allocation7 + $0xf4] sm:$0xf]
        %v2281 = vld [vmem:[#allocation7 + $0xf8] sm:$0xf]
        %v2282 = vld [vmem:[#allocation7 + $0xfc] sm:$0xf]
        %v2283 = vld [vmem:[%s4] sm:$0x1]
        %v2285 = vlaneseq
        %v2286 = vshrl.u32 %v2285, 7
        %v2287 = vsub.s32 0, %v2286
        %v2288 = vrot.slane %v2283, %v2287
        %v2354 = vunpack.c.l.b16 %v2219
        %v2355 = vunpack.c.l.b16 %v2220
        %v2356 = vunpack.c.l.b16 %v2221
        %v2357 = vunpack.c.l.b16 %v2222
        %v2358 = vunpack.c.l.b16 %v2223
        %v2359 = vunpack.c.l.b16 %v2224
        %v2360 = vunpack.c.l.b16 %v2225
        %v2361 = vunpack.c.l.b16 %v2226
        %v2362 = vunpack.c.l.b16 %v2227
        %v2363 = vunpack.c.l.b16 %v2228
        %v2364 = vunpack.c.l.b16 %v2229
        %v2365 = vunpack.c.l.b16 %v2230
        %v2366 = vunpack.c.l.b16 %v2231
        %v2367 = vunpack.c.l.b16 %v2232
        %v2368 = vunpack.c.l.b16 %v2233
        %v2369 = vunpack.c.l.b16 %v2234
        %v2370 = vunpack.c.l.b16 %v2235
        %v2371 = vunpack.c.l.b16 %v2236
        %v2372 = vunpack.c.l.b16 %v2237
        %v2373 = vunpack.c.l.b16 %v2238
        %v2374 = vunpack.c.l.b16 %v2239
        %v2375 = vunpack.c.l.b16 %v2240
        %v2376 = vunpack.c.l.b16 %v2241
        %v2377 = vunpack.c.l.b16 %v2242
        %v2378 = vunpack.c.l.b16 %v2243
        %v2379 = vunpack.c.l.b16 %v2244
        %v2380 = vunpack.c.l.b16 %v2245
        %v2381 = vunpack.c.l.b16 %v2246
        %v2382 = vunpack.c.l.b16 %v2247
        %v2383 = vunpack.c.l.b16 %v2248
        %v2384 = vunpack.c.l.b16 %v2249
        %v2385 = vunpack.c.l.b16 %v2250
        %v2386 = vunpack.c.l.b16 %v2251
        %v2387 = vunpack.c.l.b16 %v2252
        %v2388 = vunpack.c.l.b16 %v2253
        %v2389 = vunpack.c.l.b16 %v2254
        %v2390 = vunpack.c.l.b16 %v2255
        %v2391 = vunpack.c.l.b16 %v2256
        %v2392 = vunpack.c.l.b16 %v2257
        %v2393 = vunpack.c.l.b16 %v2258
        %v2394 = vunpack.c.l.b16 %v2259
        %v2395 = vunpack.c.l.b16 %v2260
        %v2396 = vunpack.c.l.b16 %v2261
        %v2397 = vunpack.c.l.b16 %v2262
        %v2398 = vunpack.c.l.b16 %v2263
        %v2399 = vunpack.c.l.b16 %v2264
        %v2400 = vunpack.c.l.b16 %v2265
        %v2401 = vunpack.c.l.b16 %v2266
        %v2402 = vunpack.c.l.b16 %v2267
        %v2403 = vunpack.c.l.b16 %v2268
        %v2404 = vunpack.c.l.b16 %v2269
        %v2405 = vunpack.c.l.b16 %v2270
        %v2406 = vunpack.c.l.b16 %v2271
        %v2407 = vunpack.c.l.b16 %v2272
        %v2408 = vunpack.c.l.b16 %v2273
        %v2409 = vunpack.c.l.b16 %v2274
        %v2410 = vunpack.c.l.b16 %v2275
        %v2411 = vunpack.c.l.b16 %v2276
        %v2412 = vunpack.c.l.b16 %v2277
        %v2413 = vunpack.c.l.b16 %v2278
        %v2414 = vunpack.c.l.b16 %v2279
        %v2415 = vunpack.c.l.b16 %v2280
        %v2416 = vunpack.c.l.b16 %v2281
        %v2417 = vunpack.c.l.b16 %v2282
        %v2418 = vpack.c.b16 %v2355, %v2354
        %v2419 = vpack.c.b16 %v2357, %v2356
        %v2420 = vpack.c.b16 %v2359, %v2358
        %v2421 = vpack.c.b16 %v2361, %v2360
        %v2422 = vpack.c.b16 %v2363, %v2362
        %v2423 = vpack.c.b16 %v2365, %v2364
        %v2424 = vpack.c.b16 %v2367, %v2366
        %v2425 = vpack.c.b16 %v2369, %v2368
        %v2426 = vpack.c.b16 %v2371, %v2370
        %v2427 = vpack.c.b16 %v2373, %v2372
        %v2428 = vpack.c.b16 %v2375, %v2374
        %v2429 = vpack.c.b16 %v2377, %v2376
        %v2430 = vpack.c.b16 %v2379, %v2378
        %v2431 = vpack.c.b16 %v2381, %v2380
        %v2432 = vpack.c.b16 %v2383, %v2382
        %v2433 = vpack.c.b16 %v2385, %v2384
        %v2434 = vpack.c.b16 %v2387, %v2386
        %v2435 = vpack.c.b16 %v2389, %v2388
        %v2436 = vpack.c.b16 %v2391, %v2390
        %v2437 = vpack.c.b16 %v2393, %v2392
        %v2438 = vpack.c.b16 %v2395, %v2394
        %v2439 = vpack.c.b16 %v2397, %v2396
        %v2440 = vpack.c.b16 %v2399, %v2398
        %v2441 = vpack.c.b16 %v2401, %v2400
        %v2442 = vpack.c.b16 %v2403, %v2402
        %v2443 = vpack.c.b16 %v2405, %v2404
        %v2444 = vpack.c.b16 %v2407, %v2406
        %v2445 = vpack.c.b16 %v2409, %v2408
        %v2446 = vpack.c.b16 %v2411, %v2410
        %v2447 = vpack.c.b16 %v2413, %v2412
        %v2448 = vpack.c.b16 %v2415, %v2414
        %v2449 = vpack.c.b16 %v2417, %v2416
        %2482 = vmatprep.subr.bf16.mxu0 0
        %2483 = vmatpush1.bf16.msra.mxu0 %v2418
        %2484 = vmatprep.subr.bf16.mxu0 0
        %2485 = vmatpush1.bf16.msra.mxu0 %v2419
        %2486 = vmatprep.subr.bf16.mxu0 0
        %2487 = vmatpush1.bf16.msra.mxu0 %v2420
        %2488 = vmatprep.subr.bf16.mxu0 0
        %2489 = vmatpush1.bf16.msra.mxu0 %v2421
        %2490 = vmatprep.subr.bf16.mxu0 0
        %2491 = vmatpush1.bf16.msra.mxu0 %v2422
        %2492 = vmatprep.subr.bf16.mxu0 0
        %2493 = vmatpush1.bf16.msra.mxu0 %v2423
        %2494 = vmatprep.subr.bf16.mxu0 0
        %2495 = vmatpush1.bf16.msra.mxu0 %v2424
        %2496 = vmatprep.subr.bf16.mxu0 0
        %2497 = vmatpush1.bf16.msra.mxu0 %v2425
        %2498 = vmatprep.subr.bf16.mxu0 0
        %2499 = vmatpush1.bf16.msra.mxu0 %v2426
        %2500 = vmatprep.subr.bf16.mxu0 0
        %2501 = vmatpush1.bf16.msra.mxu0 %v2427
        %2502 = vmatprep.subr.bf16.mxu0 0
        %2503 = vmatpush1.bf16.msra.mxu0 %v2428
        %2504 = vmatprep.subr.bf16.mxu0 0
        %2505 = vmatpush1.bf16.msra.mxu0 %v2429
        %2506 = vmatprep.subr.bf16.mxu0 0
        %2507 = vmatpush1.bf16.msra.mxu0 %v2430
        %2508 = vmatprep.subr.bf16.mxu0 0
        %2509 = vmatpush1.bf16.msra.mxu0 %v2431
        %2510 = vmatprep.subr.bf16.mxu0 0
        %2511 = vmatpush1.bf16.msra.mxu0 %v2432
        %2512 = vmatprep.subr.bf16.mxu0 0
        %2513 = vmatpush1.bf16.msra.mxu0 %v2433
        %2514 = vmatprep.mubr.bf16.mxu0 %v2156
        %2515 = vmatmul.mubr.bf16.gmra.mrb[0].mxu0 %v2155
        %v2516 = vpop.f32.mrb[0].mxu0
        %v2517 = vadd.f32 %v2288, %v2516
        %v2518 = vpop.f32.mrb[0].mxu0
        %v2519 = vpop.f32.mrb[0].mxu0
        %v2520 = vadd.f32 %v2288, %v2519
        %v2521 = vpop.f32.mrb[0].mxu0
        %2522 = vmatprep.mubr.bf16.mxu0 %v2160
        %2523 = vmatmul.mubr.bf16.gmra.mrb[0].mxu0 %v2159
        %v2524 = vpop.f32.mrb[0].mxu0
        %v2525 = vadd.f32 %v2288, %v2524
        %v2526 = vpop.f32.mrb[0].mxu0
        %v2527 = vpop.f32.mrb[0].mxu0
        %v2528 = vadd.f32 %v2288, %v2527
        %v2529 = vpop.f32.mrb[0].mxu0
        %2530 = vmatprep.mubr.bf16.mxu0 %v2164
        %2531 = vmatmul.mubr.bf16.gmra.mrb[0].mxu0 %v2163
        %v2532 = vpop.f32.mrb[0].mxu0
        %v2533 = vadd.f32 %v2288, %v2532
        %v2534 = vpop.f32.mrb[0].mxu0
        %v2535 = vpop.f32.mrb[0].mxu0
        %v2536 = vadd.f32 %v2288, %v2535
        %v2537 = vpop.f32.mrb[0].mxu0
        %2538 = vmatprep.mubr.bf16.mxu0 %v2168
        %2539 = vmatmul.mubr.bf16.gmra.mrb[0].mxu0 %v2167
        %v2540 = vpop.f32.mrb[0].mxu0
        %v2541 = vadd.f32 %v2288, %v2540
        %v2542 = vpop.f32.mrb[0].mxu0
        %v2543 = vpop.f32.mrb[0].mxu0
        %v2544 = vadd.f32 %v2288, %v2543
        %v2545 = vpop.f32.mrb[0].mxu0
        %2546 = vmatprep.mubr.bf16.mxu0 %v2172
        %2547 = vmatmul.mubr.bf16.gmra.mrb[0].mxu0 %v2171
        %v2548 = vpop.f32.mrb[0].mxu0
        %v2549 = vadd.f32 %v2288, %v2548
        %v2550 = vpop.f32.mrb[0].mxu0
        %v2551 = vpop.f32.mrb[0].mxu0
        %v2552 = vadd.f32 %v2288, %v2551
        %v2553 = vpop.f32.mrb[0].mxu0
        %2554 = vmatprep.mubr.bf16.mxu0 %v2176
        %2555 = vmatmul.mubr.bf16.gmra.mrb[0].mxu0 %v2175
        %v2556 = vpop.f32.mrb[0].mxu0
        %v2557 = vadd.f32 %v2288, %v2556
        %v2558 = vpop.f32.mrb[0].mxu0
        %v2559 = vpop.f32.mrb[0].mxu0
        %v2560 = vadd.f32 %v2288, %v2559
        %v2561 = vpop.f32.mrb[0].mxu0
        %2562 = vmatprep.mubr.bf16.mxu0 %v2180
        %2563 = vmatmul.mubr.bf16.gmra.mrb[0].mxu0 %v2179
        %v2564 = vpop.f32.mrb[0].mxu0
        %v2565 = vadd.f32 %v2288, %v2564
        %v2566 = vpop.f32.mrb[0].mxu0
        %v2567 = vpop.f32.mrb[0].mxu0
        %v2568 = vadd.f32 %v2288, %v2567
        %v2569 = vpop.f32.mrb[0].mxu0
        %2570 = vmatprep.mubr.bf16.mxu0 %v2184
        %2571 = vmatmul.mubr.bf16.gmra.mrb[0].mxu0 %v2183
        %v2572 = vpop.f32.mrb[0].mxu0
        %v2573 = vadd.f32 %v2288, %v2572
        %v2574 = vpop.f32.mrb[0].mxu0
        %v2575 = vpop.f32.mrb[0].mxu0
        %v2576 = vadd.f32 %v2288, %v2575
        %v2577 = vpop.f32.mrb[0].mxu0
        %2578 = vmatprep.mubr.bf16.mxu0 %v2188
        %2579 = vmatmul.mubr.bf16.gmra.mrb[0].mxu0 %v2187
        %v2580 = vpop.f32.mrb[0].mxu0
        %v2581 = vadd.f32 %v2288, %v2580
        %v2582 = vpop.f32.mrb[0].mxu0
        %v2583 = vpop.f32.mrb[0].mxu0
        %v2584 = vadd.f32 %v2288, %v2583
        %v2585 = vpop.f32.mrb[0].mxu0
        %2586 = vmatprep.mubr.bf16.mxu0 %v2192
        %2587 = vmatmul.mubr.bf16.gmra.mrb[0].mxu0 %v2191
        %v2588 = vpop.f32.mrb[0].mxu0
        %v2589 = vadd.f32 %v2288, %v2588
        %v2590 = vpop.f32.mrb[0].mxu0
        %v2591 = vpop.f32.mrb[0].mxu0
        %v2592 = vadd.f32 %v2288, %v2591
        %v2593 = vpop.f32.mrb[0].mxu0
        %2594 = vmatprep.mubr.bf16.mxu0 %v2196
        %2595 = vmatmul.mubr.bf16.gmra.mrb[0].mxu0 %v2195
        %v2596 = vpop.f32.mrb[0].mxu0
        %v2597 = vadd.f32 %v2288, %v2596
        %v2598 = vpop.f32.mrb[0].mxu0
        %v2599 = vpop.f32.mrb[0].mxu0
        %v2600 = vadd.f32 %v2288, %v2599
        %v2601 = vpop.f32.mrb[0].mxu0
        %2602 = vmatprep.mubr.bf16.mxu0 %v2200
        %2603 = vmatmul.mubr.bf16.gmra.mrb[0].mxu0 %v2199
        %v2604 = vpop.f32.mrb[0].mxu0
        %v2605 = vadd.f32 %v2288, %v2604
        %v2606 = vpop.f32.mrb[0].mxu0
        %v2607 = vpop.f32.mrb[0].mxu0
        %v2608 = vadd.f32 %v2288, %v2607
        %v2609 = vpop.f32.mrb[0].mxu0
        %2610 = vmatprep.mubr.bf16.mxu0 %v2204
        %2611 = vmatmul.mubr.bf16.gmra.mrb[0].mxu0 %v2203
        %v2612 = vpop.f32.mrb[0].mxu0
        %v2613 = vadd.f32 %v2288, %v2612
        %v2614 = vpop.f32.mrb[0].mxu0
        %v2615 = vpop.f32.mrb[0].mxu0
        %v2616 = vadd.f32 %v2288, %v2615
        %v2617 = vpop.f32.mrb[0].mxu0
        %2618 = vmatprep.mubr.bf16.mxu0 %v2208
        %2619 = vmatmul.mubr.bf16.gmra.mrb[0].mxu0 %v2207
        %v2620 = vpop.f32.mrb[0].mxu0
        %v2621 = vadd.f32 %v2288, %v2620
        %v2622 = vpop.f32.mrb[0].mxu0
        %v2623 = vpop.f32.mrb[0].mxu0
        %v2624 = vadd.f32 %v2288, %v2623
        %v2625 = vpop.f32.mrb[0].mxu0
        %2626 = vmatprep.mubr.bf16.mxu0 %v2212
        %2627 = vmatmul.mubr.bf16.gmra.mrb[0].mxu0 %v2211
        %v2628 = vpop.f32.mrb[0].mxu0
        %v2629 = vadd.f32 %v2288, %v2628
        %v2630 = vpop.f32.mrb[0].mxu0
        %v2631 = vpop.f32.mrb[0].mxu0
        %v2632 = vadd.f32 %v2288, %v2631
        %v2633 = vpop.f32.mrb[0].mxu0
        %2634 = vmatprep.mubr.bf16.mxu0 %v2216
        %2635 = vmatmul.mubr.bf16.gmra.mrb[0].mxu0 %v2215
        %v2636 = vpop.f32.mrb[0].mxu0
        %v2637 = vadd.f32 %v2288, %v2636
        %v2638 = vpop.f32.mrb[0].mxu0
        %v2639 = vpop.f32.mrb[0].mxu0
        %v2640 = vadd.f32 %v2288, %v2639
        %v2641 = vpop.f32.mrb[0].mxu0
        %2642 = vdwg.mxu0
        %2643 = vmatprep.subr.bf16.mxu0 0
        %2644 = vmatpush1.bf16.msra.mxu0 %v2434
        %2645 = vmatprep.subr.bf16.mxu0 0
        %2646 = vmatpush1.bf16.msra.mxu0 %v2435
        %2647 = vmatprep.subr.bf16.mxu0 0
        %2648 = vmatpush1.bf16.msra.mxu0 %v2436
        %2649 = vmatprep.subr.bf16.mxu0 0
        %2650 = vmatpush1.bf16.msra.mxu0 %v2437
        %2651 = vmatprep.subr.bf16.mxu0 0
        %2652 = vmatpush1.bf16.msra.mxu0 %v2438
        %2653 = vmatprep.subr.bf16.mxu0 0
        %2654 = vmatpush1.bf16.msra.mxu0 %v2439
        %2655 = vmatprep.subr.bf16.mxu0 0
        %2656 = vmatpush1.bf16.msra.mxu0 %v2440
        %2657 = vmatprep.subr.bf16.mxu0 0
        %2658 = vmatpush1.bf16.msra.mxu0 %v2441
        %2659 = vmatprep.subr.bf16.mxu0 0
        %2660 = vmatpush1.bf16.msra.mxu0 %v2442
        %2661 = vmatprep.subr.bf16.mxu0 0
        %2662 = vmatpush1.bf16.msra.mxu0 %v2443
        %2663 = vmatprep.subr.bf16.mxu0 0
        %2664 = vmatpush1.bf16.msra.mxu0 %v2444
        %2665 = vmatprep.subr.bf16.mxu0 0
        %2666 = vmatpush1.bf16.msra.mxu0 %v2445
        %2667 = vmatprep.subr.bf16.mxu0 0
        %2668 = vmatpush1.bf16.msra.mxu0 %v2446
        %2669 = vmatprep.subr.bf16.mxu0 0
        %2670 = vmatpush1.bf16.msra.mxu0 %v2447
        %2671 = vmatprep.subr.bf16.mxu0 0
        %2672 = vmatpush1.bf16.msra.mxu0 %v2448
        %2673 = vmatprep.subr.bf16.mxu0 0
        %2674 = vmatpush1.bf16.msra.mxu0 %v2449
        %2675 = vmatprep.mubr.bf16.mxu0 %v2158
        %2676 = vmatmul.mubr.bf16.gmra.mrb[0].mxu0 %v2157
        %v2677 = vpop.f32.mrb[0].mxu0
        %v2678 = vadd.f32 %v2517, %v2677
        %v2679 = vpop.f32.mrb[0].mxu0
        %v2680 = vpop.f32.mrb[0].mxu0
        %v2681 = vadd.f32 %v2520, %v2680
        %v2682 = vpop.f32.mrb[0].mxu0
        %2683 = vmatprep.mubr.bf16.mxu0 %v2162
        %2684 = vmatmul.mubr.bf16.gmra.mrb[0].mxu0 %v2161
        %v2685 = vpop.f32.mrb[0].mxu0
        %v2686 = vadd.f32 %v2525, %v2685
        %v2687 = vpop.f32.mrb[0].mxu0
        %v2688 = vpop.f32.mrb[0].mxu0
        %v2689 = vadd.f32 %v2528, %v2688
        %v2690 = vpop.f32.mrb[0].mxu0
        %2691 = vmatprep.mubr.bf16.mxu0 %v2166
        %2692 = vmatmul.mubr.bf16.gmra.mrb[0].mxu0 %v2165
        %v2693 = vpop.f32.mrb[0].mxu0
        %v2694 = vadd.f32 %v2533, %v2693
        %v2695 = vpop.f32.mrb[0].mxu0
        %v2696 = vpop.f32.mrb[0].mxu0
        %v2697 = vadd.f32 %v2536, %v2696
        %v2698 = vpop.f32.mrb[0].mxu0
        %2699 = vmatprep.mubr.bf16.mxu0 %v2170
        %2700 = vmatmul.mubr.bf16.gmra.mrb[0].mxu0 %v2169
        %v2701 = vpop.f32.mrb[0].mxu0
        %v2702 = vadd.f32 %v2541, %v2701
        %v2703 = vpop.f32.mrb[0].mxu0
        %v2704 = vpop.f32.mrb[0].mxu0
        %v2705 = vadd.f32 %v2544, %v2704
        %v2706 = vpop.f32.mrb[0].mxu0
        %2707 = vmatprep.mubr.bf16.mxu0 %v2174
        %2708 = vmatmul.mubr.bf16.gmra.mrb[0].mxu0 %v2173
        %v2709 = vpop.f32.mrb[0].mxu0
        %v2710 = vadd.f32 %v2549, %v2709
        %v2711 = vpop.f32.mrb[0].mxu0
        %v2712 = vpop.f32.mrb[0].mxu0
        %v2713 = vadd.f32 %v2552, %v2712
        %v2714 = vpop.f32.mrb[0].mxu0
        %2715 = vmatprep.mubr.bf16.mxu0 %v2178
        %2716 = vmatmul.mubr.bf16.gmra.mrb[0].mxu0 %v2177
        %v2717 = vpop.f32.mrb[0].mxu0
        %v2718 = vadd.f32 %v2557, %v2717
        %v2719 = vpop.f32.mrb[0].mxu0
        %v2720 = vpop.f32.mrb[0].mxu0
        %v2721 = vadd.f32 %v2560, %v2720
        %v2722 = vpop.f32.mrb[0].mxu0
        %2723 = vmatprep.mubr.bf16.mxu0 %v2182
        %2724 = vmatmul.mubr.bf16.gmra.mrb[0].mxu0 %v2181
        %v2725 = vpop.f32.mrb[0].mxu0
        %v2726 = vadd.f32 %v2565, %v2725
        %v2727 = vpop.f32.mrb[0].mxu0
        %v2728 = vpop.f32.mrb[0].mxu0
        %v2729 = vadd.f32 %v2568, %v2728
        %v2730 = vpop.f32.mrb[0].mxu0
        %2731 = vmatprep.mubr.bf16.mxu0 %v2186
        %2732 = vmatmul.mubr.bf16.gmra.mrb[0].mxu0 %v2185
        %v2733 = vpop.f32.mrb[0].mxu0
        %v2734 = vadd.f32 %v2573, %v2733
        %v2735 = vpop.f32.mrb[0].mxu0
        %v2736 = vpop.f32.mrb[0].mxu0
        %v2737 = vadd.f32 %v2576, %v2736
        %v2738 = vpop.f32.mrb[0].mxu0
        %2739 = vmatprep.mubr.bf16.mxu0 %v2190
        %2740 = vmatmul.mubr.bf16.gmra.mrb[0].mxu0 %v2189
        %v2741 = vpop.f32.mrb[0].mxu0
        %v2742 = vadd.f32 %v2581, %v2741
        %v2743 = vpop.f32.mrb[0].mxu0
        %v2744 = vpop.f32.mrb[0].mxu0
        %v2745 = vadd.f32 %v2584, %v2744
        %v2746 = vpop.f32.mrb[0].mxu0
        %2747 = vmatprep.mubr.bf16.mxu0 %v2194
        %2748 = vmatmul.mubr.bf16.gmra.mrb[0].mxu0 %v2193
        %v2749 = vpop.f32.mrb[0].mxu0
        %v2750 = vadd.f32 %v2589, %v2749
        %v2751 = vpop.f32.mrb[0].mxu0
        %v2752 = vpop.f32.mrb[0].mxu0
        %v2753 = vadd.f32 %v2592, %v2752
        %v2754 = vpop.f32.mrb[0].mxu0
        %2755 = vmatprep.mubr.bf16.mxu0 %v2198
        %2756 = vmatmul.mubr.bf16.gmra.mrb[0].mxu0 %v2197
        %v2757 = vpop.f32.mrb[0].mxu0
        %v2758 = vadd.f32 %v2597, %v2757
        %v2759 = vpop.f32.mrb[0].mxu0
        %v2760 = vpop.f32.mrb[0].mxu0
        %v2761 = vadd.f32 %v2600, %v2760
        %v2762 = vpop.f32.mrb[0].mxu0
        %2763 = vmatprep.mubr.bf16.mxu0 %v2202
        %2764 = vmatmul.mubr.bf16.gmra.mrb[0].mxu0 %v2201
        %v2765 = vpop.f32.mrb[0].mxu0
        %v2766 = vadd.f32 %v2605, %v2765
        %v2767 = vpop.f32.mrb[0].mxu0
        %v2768 = vpop.f32.mrb[0].mxu0
        %v2769 = vadd.f32 %v2608, %v2768
        %v2770 = vpop.f32.mrb[0].mxu0
        %2771 = vmatprep.mubr.bf16.mxu0 %v2206
        %2772 = vmatmul.mubr.bf16.gmra.mrb[0].mxu0 %v2205
        %v2773 = vpop.f32.mrb[0].mxu0
        %v2774 = vadd.f32 %v2613, %v2773
        %v2775 = vpop.f32.mrb[0].mxu0
        %v2776 = vpop.f32.mrb[0].mxu0
        %v2777 = vadd.f32 %v2616, %v2776
        %v2778 = vpop.f32.mrb[0].mxu0
        %2779 = vmatprep.mubr.bf16.mxu0 %v2210
        %2780 = vmatmul.mubr.bf16.gmra.mrb[0].mxu0 %v2209
        %v2781 = vpop.f32.mrb[0].mxu0
        %v2782 = vadd.f32 %v2621, %v2781
        %v2783 = vpop.f32.mrb[0].mxu0
        %v2784 = vpop.f32.mrb[0].mxu0
        %v2785 = vadd.f32 %v2624, %v2784
        %v2786 = vpop.f32.mrb[0].mxu0
        %2787 = vmatprep.mubr.bf16.mxu0 %v2214
        %2788 = vmatmul.mubr.bf16.gmra.mrb[0].mxu0 %v2213
        %v2789 = vpop.f32.mrb[0].mxu0
        %v2790 = vadd.f32 %v2629, %v2789
        %v2791 = vpop.f32.mrb[0].mxu0
        %v2792 = vpop.f32.mrb[0].mxu0
        %v2793 = vadd.f32 %v2632, %v2792
        %v2794 = vpop.f32.mrb[0].mxu0
        %2795 = vmatprep.mubr.bf16.mxu0 %v2218
        %2796 = vmatmul.mubr.bf16.gmra.mrb[0].mxu0 %v2217
        %v2797 = vpop.f32.mrb[0].mxu0
        %v2798 = vadd.f32 %v2637, %v2797
        %v2799 = vpop.f32.mrb[0].mxu0
        %v2800 = vpop.f32.mrb[0].mxu0
        %v2801 = vadd.f32 %v2640, %v2800
        %v2802 = vpop.f32.mrb[0].mxu0
        %2803 = vdwg.mxu0
        %2804 = vst [vmem:[%s271] sm:$0xff] %v2678
        %2805 = vst [vmem:[%s271 + $0x8] sm:$0xff] %v2681
        %2806 = vst [vmem:[%s271 + $0x10] sm:$0xff] %v2686
        %2807 = vst [vmem:[%s271 + $0x18] sm:$0xff] %v2689
        %2808 = vst [vmem:[%s271 + $0x20] sm:$0xff] %v2694
        %2809 = vst [vmem:[%s271 + $0x28] sm:$0xff] %v2697
        %2810 = vst [vmem:[%s271 + $0x30] sm:$0xff] %v2702
        %2811 = vst [vmem:[%s271 + $0x38] sm:$0xff] %v2705
        %2812 = vst [vmem:[%s271 + $0x40] sm:$0xff] %v2710
        %2813 = vst [vmem:[%s271 + $0x48] sm:$0xff] %v2713
        %2814 = vst [vmem:[%s271 + $0x50] sm:$0xff] %v2718
        %2815 = vst [vmem:[%s271 + $0x58] sm:$0xff] %v2721
        %2816 = vst [vmem:[%s271 + $0x60] sm:$0xff] %v2726
        %2817 = vst [vmem:[%s271 + $0x68] sm:$0xff] %v2729
        %2818 = vst [vmem:[%s271 + $0x70] sm:$0xff] %v2734
        %2819 = vst [vmem:[%s271 + $0x78] sm:$0xff] %v2737
        %2820 = vst [vmem:[%s271 + $0x80] sm:$0xff] %v2742
        %2821 = vst [vmem:[%s271 + $0x88] sm:$0xff] %v2745
        %2822 = vst [vmem:[%s271 + $0x90] sm:$0xff] %v2750
        %2823 = vst [vmem:[%s271 + $0x98] sm:$0xff] %v2753
        %2824 = vst [vmem:[%s271 + $0xa0] sm:$0xff] %v2758
        %2825 = vst [vmem:[%s271 + $0xa8] sm:$0xff] %v2761
        %2826 = vst [vmem:[%s271 + $0xb0] sm:$0xff] %v2766
        %2827 = vst [vmem:[%s271 + $0xb8] sm:$0xff] %v2769
        %2828 = vst [vmem:[%s271 + $0xc0] sm:$0xff] %v2774
        %2829 = vst [vmem:[%s271 + $0xc8] sm:$0xff] %v2777
        %2830 = vst [vmem:[%s271 + $0xd0] sm:$0xff] %v2782
        %2831 = vst [vmem:[%s271 + $0xd8] sm:$0xff] %v2785
        %2832 = vst [vmem:[%s271 + $0xe0] sm:$0xff] %v2790
        %2833 = vst [vmem:[%s271 + $0xe8] sm:$0xff] %v2793
        %2834 = vst [vmem:[%s271 + $0xf0] sm:$0xff] %v2798
        %2835 = vst [vmem:[%s271 + $0xf8] sm:$0xff] %v2801
        %s2836 = sand.u32 %s141, 1
        %s2837 = scalar_lea.sflag [#allocation4], %s2836
        %s2838 = sand.u32 %s141, 1
        %s2839 = smul.addr %s2838, 256
        %s2840 = scalar_lea.vmem [#allocation8], %s2839
        // Predicated region
        $region53: #{tpu_custom_call.1} parent=39 // pred_check
          %p2841 = pneg %p151
        $region54: #{tpu_custom_call.1} parent=39 // pred_check_branch
          %2843 = sbr.rel (%p2841) target = $region56
        $region55: #{tpu_custom_call.1} parent=39 // pred_region
          %s2844 = smul.u32 32, %s23
          %s2846 = ssub.s32 4096, 4096
          %2847 = vsyncadd %s2837, %s2846
          %s2848 = smul.addr %s2844, 128
          %s2849 = scalar_lea.hbm %s5, %s2848
          %s2850 = sshll.u32 %s2840, 4
          %s2851 = int_to_ptr.vmem [resolvable:$true] %s2850
          %2856 = dma.vmem_to_hbm [thread:$0]  %s2851, 4096, %s2849, %s2837, 128, 128, 8
        $region56: #{tpu_custom_call.1} parent=39 // pred_fallthru
          _
      $region40: #{tpu_custom_call.1} parent=5 // pred_fallthru
        _
      %p2857 = scmp.le.s32.totalorder 2, %s18
      // Predicated region
      $region57: #{tpu_custom_call.1} parent=5 // pred_check
        %p2858 = pneg %p2857
      $region58: #{tpu_custom_call.1} parent=5 // pred_check_branch
        %2860 = sbr.rel (%p2858) target = $region60
      $region59: #{tpu_custom_call.1} parent=5 // pred_region
        %s2861 = ssub.s32 %s18, 2
        // Predicated region
        $region61: #{tpu_custom_call.1} parent=59 // pred_check
          %p2862 = pneg %p157
        $region62: #{tpu_custom_call.1} parent=59 // pred_check_branch
          %2864 = sbr.rel (%p2862) target = $region64
        $region63: #{tpu_custom_call.1} parent=59 // pred_region
          %s2865 = sand.u32 %s142, 1
          %s2866 = scalar_lea.sflag [#allocation4], %s2865
          %s2867 = sand.u32 %s142, 1
          %s2868 = smul.addr %s2867, 256
          %s2869 = scalar_lea.vmem [#allocation8], %s2868
          %2870 = dma.done %s2866, 4096
        $region64: #{tpu_custom_call.1} parent=59 // pred_fallthru
          _
      $region60: #{tpu_custom_call.1} parent=5 // pred_fallthru
        _
    $region6: #{tpu_custom_call.1} parent=1 // loop_footer
      %s22 = sadd.s32 1, %s18
    $region7: #{tpu_custom_call.1} parent=1 // loop_footer_branch
      %17 = sbr.rel target = $region3
    $region8: #{tpu_custom_call.1} parent=1 // loop_exit
      _
    %2871 = vsyncpa [#allocation3], 1
    %s2872 = scalar_lea.sflag [#allocation3], 1
    %2873 = vsyncpa %s2872, 1
    %2874 = vsyncpa [#allocation6], 1
    %2875 = vsyncpa [#allocation4], 1
    %s2876 = scalar_lea.sflag [#allocation4], 1
    %2877 = vsyncpa %s2876, 1

</llo_original>
